<compile_context>
chip_gen: v5e
topology: v5e:2x2
jax: 0.10.0
libtpu: 0.0.40
codegen_flags: <defaults>
</compile_context>

<pallas_src>
import functools
import numpy as np

import jax
import jax.numpy as jnp
from jax.experimental import pallas as pl
from jax.experimental.pallas import tpu as pltpu

# ------------------------- small, module-consistent config -------------------------
B = 2            # batch
T = 8            # sequence length
OBS = 16         # observation_dim
H = 32           # rnn_hidden_size
L = 2            # rnn_num_layers
SHARED = (64,)   # shared_network_size
VALUE = (64,)    # value_stream_size
ADV = (64,)      # advantage_streams_size
BRANCHES = 3     # action_branches
ACTION_DIM = 5   # action_dim

# Matmul operand dtype.  bf16 operands are MXU-native single-pass on v6e/v7x;
# accumulation stays f32 and all elementwise/gate math stays f32.
DOT_DTYPE = jnp.bfloat16


# ------------------------------- parameter init -------------------------------
def _uniform(key, shape, bound):
    return jax.random.uniform(key, shape, jnp.float32, -bound, bound)


def init_params(key):
    """Deterministic synthetic parameters, PyTorch-style shapes & uniform init."""
    params = {"gru": [], "shared": [], "value": [], "adv": []}
    keys = iter(jax.random.split(key, 64))

    # GRU: per layer weight_ih (3H, in), weight_hh (3H, H), bias_ih (3H,), bias_hh (3H,)
    # gate order (r, z, n), as in torch.nn.GRU.
    for l in range(L):
        in_size = OBS if l == 0 else H
        k = 1.0 / np.sqrt(H)
        params["gru"].append(
            dict(
                w_ih=_uniform(next(keys), (3 * H, in_size), k),
                w_hh=_uniform(next(keys), (3 * H, H), k),
                b_ih=_uniform(next(keys), (3 * H,), k),
                b_hh=_uniform(next(keys), (3 * H,), k),
            )
        )

    def linear_chain(sizes_in_out):
        chain = []
        for fi, fo in sizes_in_out:
            k = 1.0 / np.sqrt(fi)
            chain.append((_uniform(next(keys), (fo, fi), k),
                          _uniform(next(keys), (fo,), k)))
        return chain

    # shared_model (Linear only, no activations — matches the PyTorch module)
    prev = H
    sizes = []
    for s in SHARED:
        sizes.append((prev, s)); prev = s
    params["shared"] = linear_chain(sizes)
    shared_final = prev

    # value_stream: hidden layers + final Linear(prev, 1)
    prev = shared_final
    sizes = []
    for s in VALUE:
        sizes.append((prev, s)); prev = s
    sizes.append((prev, 1))
    params["value"] = linear_chain(sizes)

    # advantage streams: per branch, hidden layers + final Linear(prev, action_dim)
    for _ in range(BRANCHES):
        prev = shared_final
        sizes = []
        for s in ADV:
            sizes.append((prev, s)); prev = s
        sizes.append((prev, ACTION_DIM))
        params["adv"].append(linear_chain(sizes))

    return params


# ------------------------------- Pallas kernel -------------------------------
def bdq_rnn_kernel(*refs, num_layers, hidden, seq_len, batch,
                   n_shared, n_fused, branches, action_dim):
    """Whole forward (GRU recurrence + fused linear streams + dueling combine) in VMEM."""
    idx = 0
    x_ref = refs[idx]; idx += 1                       # (T*B, OBS) f32, time-major rows
    gru_refs = []
    for _ in range(num_layers):
        # per layer: w_ih_{r,z,n} (in,H), w_hh_{r,z,n} (H,H), b_r, b_z, b_in, b_hn
        gru_refs.append(refs[idx:idx + 10]); idx += 10
    shared_refs = [refs[idx + 2 * i: idx + 2 * i + 2] for i in range(n_shared)]
    idx += 2 * n_shared
    fused_refs = [refs[idx + 2 * i: idx + 2 * i + 2] for i in range(n_fused)]
    idx += 2 * n_fused
    out_ref = refs[idx]                               # (B, branches*action_dim)

    f32 = jnp.float32

    def mm(a, w):
        # bf16 (or f32) operands, f32 accumulation on the MXU.
        return jnp.dot(a.astype(w.dtype), w, preferred_element_type=f32)

    # ---------------- GRU: layer-by-layer over the full sequence ----------------
    x_all = x_ref[...]                                # (T*B, fan_in) f32
    h = None
    for l in range(num_layers):
        (wir_ref, wiz_ref, win_ref, whr_ref, whz_ref, whn_ref,
         br_ref, bz_ref, bin_ref, bhn_ref) = gru_refs[l]

        # Batched input projections for the whole sequence (off the serial chain).
        # b_ih is folded in; b_hh is also folded for the r/z gates.
        gi_r = mm(x_all, wir_ref[...]) + br_ref[...]  # (T*B, H)
        gi_z = mm(x_all, wiz_ref[...]) + bz_ref[...]
        gi_n = mm(x_all, win_ref[...]) + bin_ref[...]

        # Hidden-to-hidden weights (per gate: no lane-offset gate slicing needed).
        whr = whr_ref[...]
        whz = whz_ref[...]
        whn = whn_ref[...]
        # Hoist the b_hh_n broadcast out of the unrolled loop (no broadcast CSE).
        bhn = jnp.broadcast_to(bhn_ref[...], (batch, hidden))

        h = jnp.zeros((batch, hidden), f32)
        last_layer = (l == num_layers - 1)
        outs = []
        for t in range(seq_len):                      # fully unrolled (T is static)
            s = t * batch
            hb = h.astype(whr.dtype)
            hh_r = mm(hb, whr)                        # only hh dots on the serial path
            hh_z = mm(hb, whz)
            hh_n = mm(hb, whn) + bhn
            r = jax.nn.sigmoid(gi_r[s:s + batch, :] + hh_r)
            z = jax.nn.sigmoid(gi_z[s:s + batch, :] + hh_z)
            n = jnp.tanh(gi_n[s:s + batch, :] + r * hh_n)
            h = (1.0 - z) * n + z * h
            if not last_layer:
                outs.append(h)
        if not last_layer:
            # All timesteps of this layer feed the next layer's batched projection.
            x_all = jnp.concatenate(outs, axis=0)     # (T*B, H)

    out = h                                           # GRU output at the last timestep

    # ------------- shared MLP (Linear only, as in the PyTorch module) -------------
    for w_ref, b_ref in shared_refs:
        out = mm(out, w_ref[...]) + b_ref[...]

    # --------- fused value + advantage streams (wide / block-diag matmuls) ---------
    for w_ref, b_ref in fused_refs:
        out = mm(out, w_ref[...]) + b_ref[...]
    # out: (B, 1 + branches*action_dim); col 0 = state value, rest = advantages.

    v = out[:, 0:1]
    q_parts = []
    for i in range(branches):
        a = out[:, 1 + i * action_dim: 1 + (i + 1) * action_dim]
        q_parts.append(v + a - jnp.mean(a, axis=1, keepdims=True))
    out_ref[...] = jnp.concatenate(q_parts, axis=1).astype(out_ref.dtype)


# ------------------------------- wrapper -------------------------------
def _block_diag(mats):
    rows = sum(m.shape[0] for m in mats)
    cols = sum(m.shape[1] for m in mats)
    out = jnp.zeros((rows, cols), mats[0].dtype)
    r = c = 0
    for m in mats:
        out = out.at[r:r + m.shape[0], c:c + m.shape[1]].set(m)
        r += m.shape[0]
        c += m.shape[1]
    return out


def _prep_operands(x_btd, params):
    """Kernel operand layout: per-gate GRU splits (lane-aligned gates), folded
    biases, fused dueling-head matrices, (fan_in, fan_out) transposes, bf16
    matmul operands, f32 (1, n) biases, and a flat time-major (T*B, OBS) input."""
    b, t, obs = x_btd.shape
    x_all = jnp.transpose(x_btd, (1, 0, 2)).reshape(t * b, obs).astype(jnp.float32)

    flat = [x_all]
    for p in params["gru"]:
        w_ih, w_hh, b_ih, b_hh = p["w_ih"], p["w_hh"], p["b_ih"], p["b_hh"]
        for g in range(3):                            # gate order: r, z, n
            flat.append(w_ih[g * H:(g + 1) * H].T.astype(DOT_DTYPE))
        for g in range(3):
            flat.append(w_hh[g * H:(g + 1) * H].T.astype(DOT_DTYPE))
        # r/z biases folded (b_ih + b_hh); n keeps them split (b_hh_n sits inside r*(.)).
        flat.append((b_ih[:H] + b_hh[:H]).reshape(1, H).astype(jnp.float32))
        flat.append((b_ih[H:2 * H] + b_hh[H:2 * H]).reshape(1, H).astype(jnp.float32))
        flat.append(b_ih[2 * H:].reshape(1, H).astype(jnp.float32))
        flat.append(b_hh[2 * H:].reshape(1, H).astype(jnp.float32))

    for w, bb in params["shared"]:
        flat += [w.T.astype(DOT_DTYPE), bb.reshape(1, -1).astype(jnp.float32)]

    # Fuse the dueling heads: layer j of [value, adv_0, ..., adv_{BR-1}] becomes one
    # wide matmul (column-concat for j == 0, block-diagonal for j > 0).
    value_chain = params["value"]
    adv_chains = params["adv"]
    assert all(len(c) == len(value_chain) for c in adv_chains)
    n_fused = len(value_chain)
    for j in range(n_fused):
        blocks_w = [value_chain[j][0].T] + [c[j][0].T for c in adv_chains]
        blocks_b = [value_chain[j][1]] + [c[j][1] for c in adv_chains]
        w = jnp.concatenate(blocks_w, axis=1) if j == 0 else _block_diag(blocks_w)
        bfused = jnp.concatenate(blocks_b, axis=0).reshape(1, -1)
        flat += [w.astype(DOT_DTYPE), bfused.astype(jnp.float32)]
    return flat, n_fused


def bdq_rnn_forward(x_btd, params):
    """x_btd: (B, T, OBS) float32 -> q_vals (B, BRANCHES, ACTION_DIM)."""
    flat, n_fused = _prep_operands(x_btd, params)
    b, t, _ = x_btd.shape

    kernel = functools.partial(
        bdq_rnn_kernel,
        num_layers=L, hidden=H, seq_len=t, batch=b,
        n_shared=len(params["shared"]), n_fused=n_fused,
        branches=BRANCHES, action_dim=ACTION_DIM,
    )

    vmem = pltpu.MemorySpace.VMEM
    # Grid-less, whole-array VMEM residency: ~50 KB total, latency-bound kernel.
    q_flat = pl.pallas_call(
        kernel,
        out_shape=jax.ShapeDtypeStruct((b, BRANCHES * ACTION_DIM), jnp.float32),
        in_specs=[pl.BlockSpec(memory_space=vmem) for _ in flat],
        out_specs=pl.BlockSpec(memory_space=vmem),
    )(*flat)
    # Lane-dense slab out of the kernel; reshape to (B, branches, action_dim) here.
    return q_flat.reshape(b, BRANCHES, ACTION_DIM)


# ------------------------------- pure-JAX reference -------------------------------
def reference_forward(x_btd, params, dot_dtype=jnp.float32):
    """PyTorch-semantics forward.  dot_dtype controls matmul operand precision so
    the kernel can be validated both structurally (matched bf16 operands, tight
    tolerance) and against strict f32 (loose tolerance)."""
    def mm(a, w_t):
        return jnp.dot(a.astype(dot_dtype), w_t.astype(dot_dtype),
                       preferred_element_type=jnp.float32)

    b = x_btd.shape[0]
    hs = [jnp.zeros((b, H), jnp.float32) for _ in range(L)]
    for t in range(x_btd.shape[1]):
        inp = x_btd[:, t, :]
        for l in range(L):
            p = params["gru"][l]
            gi = mm(inp, p["w_ih"].T) + p["b_ih"]
            gh = mm(hs[l], p["w_hh"].T) + p["b_hh"]
            r = jax.nn.sigmoid(gi[:, :H] + gh[:, :H])
            z = jax.nn.sigmoid(gi[:, H:2 * H] + gh[:, H:2 * H])
            n = jnp.tanh(gi[:, 2 * H:] + r * gh[:, 2 * H:])
            hs[l] = (1.0 - z) * n + z * hs[l]
            inp = hs[l]
    out = hs[-1]
    for w, bb in params["shared"]:
        out = mm(out, w.T) + bb
    v = out
    for w, bb in params["value"]:
        v = mm(v, w.T) + bb
    advs = []
    for layers in params["adv"]:
        a = out
        for w, bb in layers:
            a = mm(a, w.T) + bb
        advs.append(a)
    advs = jnp.stack(advs, axis=1)
    return v[:, :, None] + advs - advs.mean(axis=2, keepdims=True)


# ------------------------------- main -------------------------------
if __name__ == "__main__":
    key = jax.random.PRNGKey(0)
    k_params, k_x = jax.random.split(key)
    params = init_params(k_params)
    x = jax.random.normal(k_x, (B, T, OBS), jnp.float32)

    q_kernel = jax.block_until_ready(bdq_rnn_forward(x, params))
    assert q_kernel.shape == (B, BRANCHES, ACTION_DIM), q_kernel.shape

    # Structural check: reference with matched matmul operand precision (tight).
    q_ref_matched = jax.block_until_ready(reference_forward(x, params, DOT_DTYPE))
    np.testing.assert_allclose(np.asarray(q_kernel), np.asarray(q_ref_matched),
                               rtol=5e-3, atol=5e-3)

    # Fidelity check vs strict-f32 PyTorch semantics (looser; bf16 matmul operands).
    q_ref_f32 = jax.block_until_ready(reference_forward(x, params, jnp.float32))
    np.testing.assert_allclose(np.asarray(q_kernel), np.asarray(q_ref_f32),
                               rtol=6e-2, atol=6e-2)

    print("KERNEL_OK")
</pallas_src>

<mosaic_0001>
module attributes {stable_mosaic.version = 11 : i64} {
  func.func @bdq_rnn_kernel(%arg0: memref<16x16xf32, #tpu.memory_space<vmem>>, %arg1: memref<16x32xbf16, #tpu.memory_space<vmem>>, %arg2: memref<16x32xbf16, #tpu.memory_space<vmem>>, %arg3: memref<16x32xbf16, #tpu.memory_space<vmem>>, %arg4: memref<32x32xbf16, #tpu.memory_space<vmem>>, %arg5: memref<32x32xbf16, #tpu.memory_space<vmem>>, %arg6: memref<32x32xbf16, #tpu.memory_space<vmem>>, %arg7: memref<1x32xf32, #tpu.memory_space<vmem>>, %arg8: memref<1x32xf32, #tpu.memory_space<vmem>>, %arg9: memref<1x32xf32, #tpu.memory_space<vmem>>, %arg10: memref<1x32xf32, #tpu.memory_space<vmem>>, %arg11: memref<32x32xbf16, #tpu.memory_space<vmem>>, %arg12: memref<32x32xbf16, #tpu.memory_space<vmem>>, %arg13: memref<32x32xbf16, #tpu.memory_space<vmem>>, %arg14: memref<32x32xbf16, #tpu.memory_space<vmem>>, %arg15: memref<32x32xbf16, #tpu.memory_space<vmem>>, %arg16: memref<32x32xbf16, #tpu.memory_space<vmem>>, %arg17: memref<1x32xf32, #tpu.memory_space<vmem>>, %arg18: memref<1x32xf32, #tpu.memory_space<vmem>>, %arg19: memref<1x32xf32, #tpu.memory_space<vmem>>, %arg20: memref<1x32xf32, #tpu.memory_space<vmem>>, %arg21: memref<32x64xbf16, #tpu.memory_space<vmem>>, %arg22: memref<1x64xf32, #tpu.memory_space<vmem>>, %arg23: memref<64x256xbf16, #tpu.memory_space<vmem>>, %arg24: memref<1x256xf32, #tpu.memory_space<vmem>>, %arg25: memref<256x16xbf16, #tpu.memory_space<vmem>>, %arg26: memref<1x16xf32, #tpu.memory_space<vmem>>, %arg27: memref<2x15xf32, #tpu.memory_space<vmem>>) attributes {dimension_semantics = [], scalar_prefetch = 0 : i64, scratch_operands = 0 : i64, tpu.core_type = #tpu.core_type<tc>} {
    %c0 = arith.constant 0 : index
    %c0_0 = arith.constant 0 : index
    %0 = vector.load %arg0[%c0, %c0_0] : memref<16x16xf32, #tpu.memory_space<vmem>>, vector<16x16xf32>
    %c0_1 = arith.constant 0 : index
    %c0_2 = arith.constant 0 : index
    %1 = vector.load %arg1[%c0_1, %c0_2] : memref<16x32xbf16, #tpu.memory_space<vmem>>, vector<16x32xbf16>
    %2 = arith.truncf %0 : vector<16x16xf32> to vector<16x16xbf16>
    %cst = arith.constant dense<0.000000e+00> : vector<16x32xf32>
    %3 = tpu.matmul %2, %1, %cst {dimension_numbers = #tpu.dot_dimension_numbers<[1], [0], [0], [1], [0, 0, 1, 1], [], []>} : vector<16x16xbf16>, vector<16x32xbf16>, vector<16x32xf32> -> vector<16x32xf32>
    %c0_3 = arith.constant 0 : index
    %c0_4 = arith.constant 0 : index
    %4 = vector.load %arg7[%c0_3, %c0_4] : memref<1x32xf32, #tpu.memory_space<vmem>>, vector<1x32xf32>
    %5 = vector.broadcast %4 : vector<1x32xf32> to vector<16x32xf32>
    %6 = arith.addf %3, %5 : vector<16x32xf32>
    %c0_5 = arith.constant 0 : index
    %c0_6 = arith.constant 0 : index
    %7 = vector.load %arg2[%c0_5, %c0_6] : memref<16x32xbf16, #tpu.memory_space<vmem>>, vector<16x32xbf16>
    %8 = arith.truncf %0 : vector<16x16xf32> to vector<16x16xbf16>
    %cst_7 = arith.constant dense<0.000000e+00> : vector<16x32xf32>
    %9 = tpu.matmul %8, %7, %cst_7 {dimension_numbers = #tpu.dot_dimension_numbers<[1], [0], [0], [1], [0, 0, 1, 1], [], []>} : vector<16x16xbf16>, vector<16x32xbf16>, vector<16x32xf32> -> vector<16x32xf32>
    %c0_8 = arith.constant 0 : index
    %c0_9 = arith.constant 0 : index
    %10 = vector.load %arg8[%c0_8, %c0_9] : memref<1x32xf32, #tpu.memory_space<vmem>>, vector<1x32xf32>
    %11 = vector.broadcast %10 : vector<1x32xf32> to vector<16x32xf32>
    %12 = arith.addf %9, %11 : vector<16x32xf32>
    %c0_10 = arith.constant 0 : index
    %c0_11 = arith.constant 0 : index
    %13 = vector.load %arg3[%c0_10, %c0_11] : memref<16x32xbf16, #tpu.memory_space<vmem>>, vector<16x32xbf16>
    %14 = arith.truncf %0 : vector<16x16xf32> to vector<16x16xbf16>
    %cst_12 = arith.constant dense<0.000000e+00> : vector<16x32xf32>
    %15 = tpu.matmul %14, %13, %cst_12 {dimension_numbers = #tpu.dot_dimension_numbers<[1], [0], [0], [1], [0, 0, 1, 1], [], []>} : vector<16x16xbf16>, vector<16x32xbf16>, vector<16x32xf32> -> vector<16x32xf32>
    %c0_13 = arith.constant 0 : index
    %c0_14 = arith.constant 0 : index
    %16 = vector.load %arg9[%c0_13, %c0_14] : memref<1x32xf32, #tpu.memory_space<vmem>>, vector<1x32xf32>
    %17 = vector.broadcast %16 : vector<1x32xf32> to vector<16x32xf32>
    %18 = arith.addf %15, %17 : vector<16x32xf32>
    %c0_15 = arith.constant 0 : index
    %c0_16 = arith.constant 0 : index
    %19 = vector.load %arg4[%c0_15, %c0_16] : memref<32x32xbf16, #tpu.memory_space<vmem>>, vector<32x32xbf16>
    %c0_17 = arith.constant 0 : index
    %c0_18 = arith.constant 0 : index
    %20 = vector.load %arg5[%c0_17, %c0_18] : memref<32x32xbf16, #tpu.memory_space<vmem>>, vector<32x32xbf16>
    %c0_19 = arith.constant 0 : index
    %c0_20 = arith.constant 0 : index
    %21 = vector.load %arg6[%c0_19, %c0_20] : memref<32x32xbf16, #tpu.memory_space<vmem>>, vector<32x32xbf16>
    %c0_21 = arith.constant 0 : index
    %c0_22 = arith.constant 0 : index
    %22 = vector.load %arg10[%c0_21, %c0_22] : memref<1x32xf32, #tpu.memory_space<vmem>>, vector<1x32xf32>
    %23 = vector.shape_cast %22 : vector<1x32xf32> to vector<1x32xf32>
    %24 = vector.broadcast %23 : vector<1x32xf32> to vector<2x32xf32>
    %cst_23 = arith.constant 0.000000e+00 : f32
    %25 = vector.broadcast %cst_23 : f32 to vector<2x32xf32>
    %26 = arith.truncf %25 : vector<2x32xf32> to vector<2x32xbf16>
    %cst_24 = arith.constant dense<0.000000e+00> : vector<2x32xf32>
    %27 = tpu.matmul %26, %19, %cst_24 {dimension_numbers = #tpu.dot_dimension_numbers<[1], [0], [0], [1], [0, 0, 1, 1], [], []>} : vector<2x32xbf16>, vector<32x32xbf16>, vector<2x32xf32> -> vector<2x32xf32>
    %cst_25 = arith.constant dense<0.000000e+00> : vector<2x32xf32>
    %28 = tpu.matmul %26, %20, %cst_25 {dimension_numbers = #tpu.dot_dimension_numbers<[1], [0], [0], [1], [0, 0, 1, 1], [], []>} : vector<2x32xbf16>, vector<32x32xbf16>, vector<2x32xf32> -> vector<2x32xf32>
    %cst_26 = arith.constant dense<0.000000e+00> : vector<2x32xf32>
    %29 = tpu.matmul %26, %21, %cst_26 {dimension_numbers = #tpu.dot_dimension_numbers<[1], [0], [0], [1], [0, 0, 1, 1], [], []>} : vector<2x32xbf16>, vector<32x32xbf16>, vector<2x32xf32> -> vector<2x32xf32>
    %30 = arith.addf %29, %24 : vector<2x32xf32>
    %31 = vector.extract_strided_slice %6 {offsets = [0, 0], sizes = [2, 32], strides = [1, 1]} : vector<16x32xf32> to vector<2x32xf32>
    %32 = arith.addf %31, %27 : vector<2x32xf32>
    %33 = arith.negf %32 : vector<2x32xf32>
    %34 = math.exp %33 : vector<2x32xf32>
    %cst_27 = arith.constant 1.000000e+00 : f32
    %35 = vector.broadcast %cst_27 : f32 to vector<2x32xf32>
    %36 = arith.addf %35, %34 : vector<2x32xf32>
    %37 = arith.divf %35, %36 : vector<2x32xf32>
    %38 = vector.extract_strided_slice %12 {offsets = [0, 0], sizes = [2, 32], strides = [1, 1]} : vector<16x32xf32> to vector<2x32xf32>
    %39 = arith.addf %38, %28 : vector<2x32xf32>
    %40 = arith.negf %39 : vector<2x32xf32>
    %41 = math.exp %40 : vector<2x32xf32>
    %cst_28 = arith.constant 1.000000e+00 : f32
    %42 = vector.broadcast %cst_28 : f32 to vector<2x32xf32>
    %43 = arith.addf %42, %41 : vector<2x32xf32>
    %44 = arith.divf %42, %43 : vector<2x32xf32>
    %45 = vector.extract_strided_slice %18 {offsets = [0, 0], sizes = [2, 32], strides = [1, 1]} : vector<16x32xf32> to vector<2x32xf32>
    %46 = arith.mulf %37, %30 : vector<2x32xf32>
    %47 = arith.addf %45, %46 : vector<2x32xf32>
    %48 = math.tanh %47 : vector<2x32xf32>
    %cst_29 = arith.constant 1.000000e+00 : f32
    %49 = vector.broadcast %cst_29 : f32 to vector<2x32xf32>
    %50 = arith.subf %49, %44 : vector<2x32xf32>
    %51 = arith.mulf %50, %48 : vector<2x32xf32>
    %52 = arith.mulf %44, %25 : vector<2x32xf32>
    %53 = arith.addf %51, %52 : vector<2x32xf32>
    %54 = arith.truncf %53 : vector<2x32xf32> to vector<2x32xbf16>
    %cst_30 = arith.constant dense<0.000000e+00> : vector<2x32xf32>
    %55 = tpu.matmul %54, %19, %cst_30 {dimension_numbers = #tpu.dot_dimension_numbers<[1], [0], [0], [1], [0, 0, 1, 1], [], []>} : vector<2x32xbf16>, vector<32x32xbf16>, vector<2x32xf32> -> vector<2x32xf32>
    %cst_31 = arith.constant dense<0.000000e+00> : vector<2x32xf32>
    %56 = tpu.matmul %54, %20, %cst_31 {dimension_numbers = #tpu.dot_dimension_numbers<[1], [0], [0], [1], [0, 0, 1, 1], [], []>} : vector<2x32xbf16>, vector<32x32xbf16>, vector<2x32xf32> -> vector<2x32xf32>
    %cst_32 = arith.constant dense<0.000000e+00> : vector<2x32xf32>
    %57 = tpu.matmul %54, %21, %cst_32 {dimension_numbers = #tpu.dot_dimension_numbers<[1], [0], [0], [1], [0, 0, 1, 1], [], []>} : vector<2x32xbf16>, vector<32x32xbf16>, vector<2x32xf32> -> vector<2x32xf32>
    %58 = arith.addf %57, %24 : vector<2x32xf32>
    %59 = vector.extract_strided_slice %6 {offsets = [2, 0], sizes = [2, 32], strides = [1, 1]} : vector<16x32xf32> to vector<2x32xf32>
    %60 = arith.addf %59, %55 : vector<2x32xf32>
    %61 = arith.negf %60 : vector<2x32xf32>
    %62 = math.exp %61 : vector<2x32xf32>
    %cst_33 = arith.constant 1.000000e+00 : f32
    %63 = vector.broadcast %cst_33 : f32 to vector<2x32xf32>
    %64 = arith.addf %63, %62 : vector<2x32xf32>
    %65 = arith.divf %63, %64 : vector<2x32xf32>
    %66 = vector.extract_strided_slice %12 {offsets = [2, 0], sizes = [2, 32], strides = [1, 1]} : vector<16x32xf32> to vector<2x32xf32>
    %67 = arith.addf %66, %56 : vector<2x32xf32>
    %68 = arith.negf %67 : vector<2x32xf32>
    %69 = math.exp %68 : vector<2x32xf32>
    %cst_34 = arith.constant 1.000000e+00 : f32
    %70 = vector.broadcast %cst_34 : f32 to vector<2x32xf32>
    %71 = arith.addf %70, %69 : vector<2x32xf32>
    %72 = arith.divf %70, %71 : vector<2x32xf32>
    %73 = vector.extract_strided_slice %18 {offsets = [2, 0], sizes = [2, 32], strides = [1, 1]} : vector<16x32xf32> to vector<2x32xf32>
    %74 = arith.mulf %65, %58 : vector<2x32xf32>
    %75 = arith.addf %73, %74 : vector<2x32xf32>
    %76 = math.tanh %75 : vector<2x32xf32>
    %cst_35 = arith.constant 1.000000e+00 : f32
    %77 = vector.broadcast %cst_35 : f32 to vector<2x32xf32>
    %78 = arith.subf %77, %72 : vector<2x32xf32>
    %79 = arith.mulf %78, %76 : vector<2x32xf32>
    %80 = arith.mulf %72, %53 : vector<2x32xf32>
    %81 = arith.addf %79, %80 : vector<2x32xf32>
    %82 = arith.truncf %81 : vector<2x32xf32> to vector<2x32xbf16>
    %cst_36 = arith.constant dense<0.000000e+00> : vector<2x32xf32>
    %83 = tpu.matmul %82, %19, %cst_36 {dimension_numbers = #tpu.dot_dimension_numbers<[1], [0], [0], [1], [0, 0, 1, 1], [], []>} : vector<2x32xbf16>, vector<32x32xbf16>, vector<2x32xf32> -> vector<2x32xf32>
    %cst_37 = arith.constant dense<0.000000e+00> : vector<2x32xf32>
    %84 = tpu.matmul %82, %20, %cst_37 {dimension_numbers = #tpu.dot_dimension_numbers<[1], [0], [0], [1], [0, 0, 1, 1], [], []>} : vector<2x32xbf16>, vector<32x32xbf16>, vector<2x32xf32> -> vector<2x32xf32>
    %cst_38 = arith.constant dense<0.000000e+00> : vector<2x32xf32>
    %85 = tpu.matmul %82, %21, %cst_38 {dimension_numbers = #tpu.dot_dimension_numbers<[1], [0], [0], [1], [0, 0, 1, 1], [], []>} : vector<2x32xbf16>, vector<32x32xbf16>, vector<2x32xf32> -> vector<2x32xf32>
    %86 = arith.addf %85, %24 : vector<2x32xf32>
    %87 = vector.extract_strided_slice %6 {offsets = [4, 0], sizes = [2, 32], strides = [1, 1]} : vector<16x32xf32> to vector<2x32xf32>
    %88 = arith.addf %87, %83 : vector<2x32xf32>
    %89 = arith.negf %88 : vector<2x32xf32>
    %90 = math.exp %89 : vector<2x32xf32>
    %cst_39 = arith.constant 1.000000e+00 : f32
    %91 = vector.broadcast %cst_39 : f32 to vector<2x32xf32>
    %92 = arith.addf %91, %90 : vector<2x32xf32>
    %93 = arith.divf %91, %92 : vector<2x32xf32>
    %94 = vector.extract_strided_slice %12 {offsets = [4, 0], sizes = [2, 32], strides = [1, 1]} : vector<16x32xf32> to vector<2x32xf32>
    %95 = arith.addf %94, %84 : vector<2x32xf32>
    %96 = arith.negf %95 : vector<2x32xf32>
    %97 = math.exp %96 : vector<2x32xf32>
    %cst_40 = arith.constant 1.000000e+00 : f32
    %98 = vector.broadcast %cst_40 : f32 to vector<2x32xf32>
    %99 = arith.addf %98, %97 : vector<2x32xf32>
    %100 = arith.divf %98, %99 : vector<2x32xf32>
    %101 = vector.extract_strided_slice %18 {offsets = [4, 0], sizes = [2, 32], strides = [1, 1]} : vector<16x32xf32> to vector<2x32xf32>
    %102 = arith.mulf %93, %86 : vector<2x32xf32>
    %103 = arith.addf %101, %102 : vector<2x32xf32>
    %104 = math.tanh %103 : vector<2x32xf32>
    %cst_41 = arith.constant 1.000000e+00 : f32
    %105 = vector.broadcast %cst_41 : f32 to vector<2x32xf32>
    %106 = arith.subf %105, %100 : vector<2x32xf32>
    %107 = arith.mulf %106, %104 : vector<2x32xf32>
    %108 = arith.mulf %100, %81 : vector<2x32xf32>
    %109 = arith.addf %107, %108 : vector<2x32xf32>
    %110 = arith.truncf %109 : vector<2x32xf32> to vector<2x32xbf16>
    %cst_42 = arith.constant dense<0.000000e+00> : vector<2x32xf32>
    %111 = tpu.matmul %110, %19, %cst_42 {dimension_numbers = #tpu.dot_dimension_numbers<[1], [0], [0], [1], [0, 0, 1, 1], [], []>} : vector<2x32xbf16>, vector<32x32xbf16>, vector<2x32xf32> -> vector<2x32xf32>
    %cst_43 = arith.constant dense<0.000000e+00> : vector<2x32xf32>
    %112 = tpu.matmul %110, %20, %cst_43 {dimension_numbers = #tpu.dot_dimension_numbers<[1], [0], [0], [1], [0, 0, 1, 1], [], []>} : vector<2x32xbf16>, vector<32x32xbf16>, vector<2x32xf32> -> vector<2x32xf32>
    %cst_44 = arith.constant dense<0.000000e+00> : vector<2x32xf32>
    %113 = tpu.matmul %110, %21, %cst_44 {dimension_numbers = #tpu.dot_dimension_numbers<[1], [0], [0], [1], [0, 0, 1, 1], [], []>} : vector<2x32xbf16>, vector<32x32xbf16>, vector<2x32xf32> -> vector<2x32xf32>
    %114 = arith.addf %113, %24 : vector<2x32xf32>
    %115 = vector.extract_strided_slice %6 {offsets = [6, 0], sizes = [2, 32], strides = [1, 1]} : vector<16x32xf32> to vector<2x32xf32>
    %116 = arith.addf %115, %111 : vector<2x32xf32>
    %117 = arith.negf %116 : vector<2x32xf32>
    %118 = math.exp %117 : vector<2x32xf32>
    %cst_45 = arith.constant 1.000000e+00 : f32
    %119 = vector.broadcast %cst_45 : f32 to vector<2x32xf32>
    %120 = arith.addf %119, %118 : vector<2x32xf32>
    %121 = arith.divf %119, %120 : vector<2x32xf32>
    %122 = vector.extract_strided_slice %12 {offsets = [6, 0], sizes = [2, 32], strides = [1, 1]} : vector<16x32xf32> to vector<2x32xf32>
    %123 = arith.addf %122, %112 : vector<2x32xf32>
    %124 = arith.negf %123 : vector<2x32xf32>
    %125 = math.exp %124 : vector<2x32xf32>
    %cst_46 = arith.constant 1.000000e+00 : f32
    %126 = vector.broadcast %cst_46 : f32 to vector<2x32xf32>
    %127 = arith.addf %126, %125 : vector<2x32xf32>
    %128 = arith.divf %126, %127 : vector<2x32xf32>
    %129 = vector.extract_strided_slice %18 {offsets = [6, 0], sizes = [2, 32], strides = [1, 1]} : vector<16x32xf32> to vector<2x32xf32>
    %130 = arith.mulf %121, %114 : vector<2x32xf32>
    %131 = arith.addf %129, %130 : vector<2x32xf32>
    %132 = math.tanh %131 : vector<2x32xf32>
    %cst_47 = arith.constant 1.000000e+00 : f32
    %133 = vector.broadcast %cst_47 : f32 to vector<2x32xf32>
    %134 = arith.subf %133, %128 : vector<2x32xf32>
    %135 = arith.mulf %134, %132 : vector<2x32xf32>
    %136 = arith.mulf %128, %109 : vector<2x32xf32>
    %137 = arith.addf %135, %136 : vector<2x32xf32>
    %138 = arith.truncf %137 : vector<2x32xf32> to vector<2x32xbf16>
    %cst_48 = arith.constant dense<0.000000e+00> : vector<2x32xf32>
    %139 = tpu.matmul %138, %19, %cst_48 {dimension_numbers = #tpu.dot_dimension_numbers<[1], [0], [0], [1], [0, 0, 1, 1], [], []>} : vector<2x32xbf16>, vector<32x32xbf16>, vector<2x32xf32> -> vector<2x32xf32>
    %cst_49 = arith.constant dense<0.000000e+00> : vector<2x32xf32>
    %140 = tpu.matmul %138, %20, %cst_49 {dimension_numbers = #tpu.dot_dimension_numbers<[1], [0], [0], [1], [0, 0, 1, 1], [], []>} : vector<2x32xbf16>, vector<32x32xbf16>, vector<2x32xf32> -> vector<2x32xf32>
    %cst_50 = arith.constant dense<0.000000e+00> : vector<2x32xf32>
    %141 = tpu.matmul %138, %21, %cst_50 {dimension_numbers = #tpu.dot_dimension_numbers<[1], [0], [0], [1], [0, 0, 1, 1], [], []>} : vector<2x32xbf16>, vector<32x32xbf16>, vector<2x32xf32> -> vector<2x32xf32>
    %142 = arith.addf %141, %24 : vector<2x32xf32>
    %143 = vector.extract_strided_slice %6 {offsets = [8, 0], sizes = [2, 32], strides = [1, 1]} : vector<16x32xf32> to vector<2x32xf32>
    %144 = arith.addf %143, %139 : vector<2x32xf32>
    %145 = arith.negf %144 : vector<2x32xf32>
    %146 = math.exp %145 : vector<2x32xf32>
    %cst_51 = arith.constant 1.000000e+00 : f32
    %147 = vector.broadcast %cst_51 : f32 to vector<2x32xf32>
    %148 = arith.addf %147, %146 : vector<2x32xf32>
    %149 = arith.divf %147, %148 : vector<2x32xf32>
    %150 = vector.extract_strided_slice %12 {offsets = [8, 0], sizes = [2, 32], strides = [1, 1]} : vector<16x32xf32> to vector<2x32xf32>
    %151 = arith.addf %150, %140 : vector<2x32xf32>
    %152 = arith.negf %151 : vector<2x32xf32>
    %153 = math.exp %152 : vector<2x32xf32>
    %cst_52 = arith.constant 1.000000e+00 : f32
    %154 = vector.broadcast %cst_52 : f32 to vector<2x32xf32>
    %155 = arith.addf %154, %153 : vector<2x32xf32>
    %156 = arith.divf %154, %155 : vector<2x32xf32>
    %157 = vector.extract_strided_slice %18 {offsets = [8, 0], sizes = [2, 32], strides = [1, 1]} : vector<16x32xf32> to vector<2x32xf32>
    %158 = arith.mulf %149, %142 : vector<2x32xf32>
    %159 = arith.addf %157, %158 : vector<2x32xf32>
    %160 = math.tanh %159 : vector<2x32xf32>
    %cst_53 = arith.constant 1.000000e+00 : f32
    %161 = vector.broadcast %cst_53 : f32 to vector<2x32xf32>
    %162 = arith.subf %161, %156 : vector<2x32xf32>
    %163 = arith.mulf %162, %160 : vector<2x32xf32>
    %164 = arith.mulf %156, %137 : vector<2x32xf32>
    %165 = arith.addf %163, %164 : vector<2x32xf32>
    %166 = arith.truncf %165 : vector<2x32xf32> to vector<2x32xbf16>
    %cst_54 = arith.constant dense<0.000000e+00> : vector<2x32xf32>
    %167 = tpu.matmul %166, %19, %cst_54 {dimension_numbers = #tpu.dot_dimension_numbers<[1], [0], [0], [1], [0, 0, 1, 1], [], []>} : vector<2x32xbf16>, vector<32x32xbf16>, vector<2x32xf32> -> vector<2x32xf32>
    %cst_55 = arith.constant dense<0.000000e+00> : vector<2x32xf32>
    %168 = tpu.matmul %166, %20, %cst_55 {dimension_numbers = #tpu.dot_dimension_numbers<[1], [0], [0], [1], [0, 0, 1, 1], [], []>} : vector<2x32xbf16>, vector<32x32xbf16>, vector<2x32xf32> -> vector<2x32xf32>
    %cst_56 = arith.constant dense<0.000000e+00> : vector<2x32xf32>
    %169 = tpu.matmul %166, %21, %cst_56 {dimension_numbers = #tpu.dot_dimension_numbers<[1], [0], [0], [1], [0, 0, 1, 1], [], []>} : vector<2x32xbf16>, vector<32x32xbf16>, vector<2x32xf32> -> vector<2x32xf32>
    %170 = arith.addf %169, %24 : vector<2x32xf32>
    %171 = vector.extract_strided_slice %6 {offsets = [10, 0], sizes = [2, 32], strides = [1, 1]} : vector<16x32xf32> to vector<2x32xf32>
    %172 = arith.addf %171, %167 : vector<2x32xf32>
    %173 = arith.negf %172 : vector<2x32xf32>
    %174 = math.exp %173 : vector<2x32xf32>
    %cst_57 = arith.constant 1.000000e+00 : f32
    %175 = vector.broadcast %cst_57 : f32 to vector<2x32xf32>
    %176 = arith.addf %175, %174 : vector<2x32xf32>
    %177 = arith.divf %175, %176 : vector<2x32xf32>
    %178 = vector.extract_strided_slice %12 {offsets = [10, 0], sizes = [2, 32], strides = [1, 1]} : vector<16x32xf32> to vector<2x32xf32>
    %179 = arith.addf %178, %168 : vector<2x32xf32>
    %180 = arith.negf %179 : vector<2x32xf32>
    %181 = math.exp %180 : vector<2x32xf32>
    %cst_58 = arith.constant 1.000000e+00 : f32
    %182 = vector.broadcast %cst_58 : f32 to vector<2x32xf32>
    %183 = arith.addf %182, %181 : vector<2x32xf32>
    %184 = arith.divf %182, %183 : vector<2x32xf32>
    %185 = vector.extract_strided_slice %18 {offsets = [10, 0], sizes = [2, 32], strides = [1, 1]} : vector<16x32xf32> to vector<2x32xf32>
    %186 = arith.mulf %177, %170 : vector<2x32xf32>
    %187 = arith.addf %185, %186 : vector<2x32xf32>
    %188 = math.tanh %187 : vector<2x32xf32>
    %cst_59 = arith.constant 1.000000e+00 : f32
    %189 = vector.broadcast %cst_59 : f32 to vector<2x32xf32>
    %190 = arith.subf %189, %184 : vector<2x32xf32>
    %191 = arith.mulf %190, %188 : vector<2x32xf32>
    %192 = arith.mulf %184, %165 : vector<2x32xf32>
    %193 = arith.addf %191, %192 : vector<2x32xf32>
    %194 = arith.truncf %193 : vector<2x32xf32> to vector<2x32xbf16>
    %cst_60 = arith.constant dense<0.000000e+00> : vector<2x32xf32>
    %195 = tpu.matmul %194, %19, %cst_60 {dimension_numbers = #tpu.dot_dimension_numbers<[1], [0], [0], [1], [0, 0, 1, 1], [], []>} : vector<2x32xbf16>, vector<32x32xbf16>, vector<2x32xf32> -> vector<2x32xf32>
    %cst_61 = arith.constant dense<0.000000e+00> : vector<2x32xf32>
    %196 = tpu.matmul %194, %20, %cst_61 {dimension_numbers = #tpu.dot_dimension_numbers<[1], [0], [0], [1], [0, 0, 1, 1], [], []>} : vector<2x32xbf16>, vector<32x32xbf16>, vector<2x32xf32> -> vector<2x32xf32>
    %cst_62 = arith.constant dense<0.000000e+00> : vector<2x32xf32>
    %197 = tpu.matmul %194, %21, %cst_62 {dimension_numbers = #tpu.dot_dimension_numbers<[1], [0], [0], [1], [0, 0, 1, 1], [], []>} : vector<2x32xbf16>, vector<32x32xbf16>, vector<2x32xf32> -> vector<2x32xf32>
    %198 = arith.addf %197, %24 : vector<2x32xf32>
    %199 = vector.extract_strided_slice %6 {offsets = [12, 0], sizes = [2, 32], strides = [1, 1]} : vector<16x32xf32> to vector<2x32xf32>
    %200 = arith.addf %199, %195 : vector<2x32xf32>
    %201 = arith.negf %200 : vector<2x32xf32>
    %202 = math.exp %201 : vector<2x32xf32>
    %cst_63 = arith.constant 1.000000e+00 : f32
    %203 = vector.broadcast %cst_63 : f32 to vector<2x32xf32>
    %204 = arith.addf %203, %202 : vector<2x32xf32>
    %205 = arith.divf %203, %204 : vector<2x32xf32>
    %206 = vector.extract_strided_slice %12 {offsets = [12, 0], sizes = [2, 32], strides = [1, 1]} : vector<16x32xf32> to vector<2x32xf32>
    %207 = arith.addf %206, %196 : vector<2x32xf32>
    %208 = arith.negf %207 : vector<2x32xf32>
    %209 = math.exp %208 : vector<2x32xf32>
    %cst_64 = arith.constant 1.000000e+00 : f32
    %210 = vector.broadcast %cst_64 : f32 to vector<2x32xf32>
    %211 = arith.addf %210, %209 : vector<2x32xf32>
    %212 = arith.divf %210, %211 : vector<2x32xf32>
    %213 = vector.extract_strided_slice %18 {offsets = [12, 0], sizes = [2, 32], strides = [1, 1]} : vector<16x32xf32> to vector<2x32xf32>
    %214 = arith.mulf %205, %198 : vector<2x32xf32>
    %215 = arith.addf %213, %214 : vector<2x32xf32>
    %216 = math.tanh %215 : vector<2x32xf32>
    %cst_65 = arith.constant 1.000000e+00 : f32
    %217 = vector.broadcast %cst_65 : f32 to vector<2x32xf32>
    %218 = arith.subf %217, %212 : vector<2x32xf32>
    %219 = arith.mulf %218, %216 : vector<2x32xf32>
    %220 = arith.mulf %212, %193 : vector<2x32xf32>
    %221 = arith.addf %219, %220 : vector<2x32xf32>
    %222 = arith.truncf %221 : vector<2x32xf32> to vector<2x32xbf16>
    %cst_66 = arith.constant dense<0.000000e+00> : vector<2x32xf32>
    %223 = tpu.matmul %222, %19, %cst_66 {dimension_numbers = #tpu.dot_dimension_numbers<[1], [0], [0], [1], [0, 0, 1, 1], [], []>} : vector<2x32xbf16>, vector<32x32xbf16>, vector<2x32xf32> -> vector<2x32xf32>
    %cst_67 = arith.constant dense<0.000000e+00> : vector<2x32xf32>
    %224 = tpu.matmul %222, %20, %cst_67 {dimension_numbers = #tpu.dot_dimension_numbers<[1], [0], [0], [1], [0, 0, 1, 1], [], []>} : vector<2x32xbf16>, vector<32x32xbf16>, vector<2x32xf32> -> vector<2x32xf32>
    %cst_68 = arith.constant dense<0.000000e+00> : vector<2x32xf32>
    %225 = tpu.matmul %222, %21, %cst_68 {dimension_numbers = #tpu.dot_dimension_numbers<[1], [0], [0], [1], [0, 0, 1, 1], [], []>} : vector<2x32xbf16>, vector<32x32xbf16>, vector<2x32xf32> -> vector<2x32xf32>
    %226 = arith.addf %225, %24 : vector<2x32xf32>
    %227 = vector.extract_strided_slice %6 {offsets = [14, 0], sizes = [2, 32], strides = [1, 1]} : vector<16x32xf32> to vector<2x32xf32>
    %228 = arith.addf %227, %223 : vector<2x32xf32>
    %229 = arith.negf %228 : vector<2x32xf32>
    %230 = math.exp %229 : vector<2x32xf32>
    %cst_69 = arith.constant 1.000000e+00 : f32
    %231 = vector.broadcast %cst_69 : f32 to vector<2x32xf32>
    %232 = arith.addf %231, %230 : vector<2x32xf32>
    %233 = arith.divf %231, %232 : vector<2x32xf32>
    %234 = vector.extract_strided_slice %12 {offsets = [14, 0], sizes = [2, 32], strides = [1, 1]} : vector<16x32xf32> to vector<2x32xf32>
    %235 = arith.addf %234, %224 : vector<2x32xf32>
    %236 = arith.negf %235 : vector<2x32xf32>
    %237 = math.exp %236 : vector<2x32xf32>
    %cst_70 = arith.constant 1.000000e+00 : f32
    %238 = vector.broadcast %cst_70 : f32 to vector<2x32xf32>
    %239 = arith.addf %238, %237 : vector<2x32xf32>
    %240 = arith.divf %238, %239 : vector<2x32xf32>
    %241 = vector.extract_strided_slice %18 {offsets = [14, 0], sizes = [2, 32], strides = [1, 1]} : vector<16x32xf32> to vector<2x32xf32>
    %242 = arith.mulf %233, %226 : vector<2x32xf32>
    %243 = arith.addf %241, %242 : vector<2x32xf32>
    %244 = math.tanh %243 : vector<2x32xf32>
    %cst_71 = arith.constant 1.000000e+00 : f32
    %245 = vector.broadcast %cst_71 : f32 to vector<2x32xf32>
    %246 = arith.subf %245, %240 : vector<2x32xf32>
    %247 = arith.mulf %246, %244 : vector<2x32xf32>
    %248 = arith.mulf %240, %221 : vector<2x32xf32>
    %249 = arith.addf %247, %248 : vector<2x32xf32>
    %250 = tpu.concatenate %53, %81, %109, %137, %165, %193, %221, %249 in 0 : vector<2x32xf32>, vector<2x32xf32>, vector<2x32xf32>, vector<2x32xf32>, vector<2x32xf32>, vector<2x32xf32>, vector<2x32xf32>, vector<2x32xf32> -> vector<16x32xf32>
    %c0_72 = arith.constant 0 : index
    %c0_73 = arith.constant 0 : index
    %251 = vector.load %arg11[%c0_72, %c0_73] : memref<32x32xbf16, #tpu.memory_space<vmem>>, vector<32x32xbf16>
    %252 = arith.truncf %250 : vector<16x32xf32> to vector<16x32xbf16>
    %cst_74 = arith.constant dense<0.000000e+00> : vector<16x32xf32>
    %253 = tpu.matmul %252, %251, %cst_74 {dimension_numbers = #tpu.dot_dimension_numbers<[1], [0], [0], [1], [0, 0, 1, 1], [], []>} : vector<16x32xbf16>, vector<32x32xbf16>, vector<16x32xf32> -> vector<16x32xf32>
    %c0_75 = arith.constant 0 : index
    %c0_76 = arith.constant 0 : index
    %254 = vector.load %arg17[%c0_75, %c0_76] : memref<1x32xf32, #tpu.memory_space<vmem>>, vector<1x32xf32>
    %255 = vector.broadcast %254 : vector<1x32xf32> to vector<16x32xf32>
    %256 = arith.addf %253, %255 : vector<16x32xf32>
    %c0_77 = arith.constant 0 : index
    %c0_78 = arith.constant 0 : index
    %257 = vector.load %arg12[%c0_77, %c0_78] : memref<32x32xbf16, #tpu.memory_space<vmem>>, vector<32x32xbf16>
    %258 = arith.truncf %250 : vector<16x32xf32> to vector<16x32xbf16>
    %cst_79 = arith.constant dense<0.000000e+00> : vector<16x32xf32>
    %259 = tpu.matmul %258, %257, %cst_79 {dimension_numbers = #tpu.dot_dimension_numbers<[1], [0], [0], [1], [0, 0, 1, 1], [], []>} : vector<16x32xbf16>, vector<32x32xbf16>, vector<16x32xf32> -> vector<16x32xf32>
    %c0_80 = arith.constant 0 : index
    %c0_81 = arith.constant 0 : index
    %260 = vector.load %arg18[%c0_80, %c0_81] : memref<1x32xf32, #tpu.memory_space<vmem>>, vector<1x32xf32>
    %261 = vector.broadcast %260 : vector<1x32xf32> to vector<16x32xf32>
    %262 = arith.addf %259, %261 : vector<16x32xf32>
    %c0_82 = arith.constant 0 : index
    %c0_83 = arith.constant 0 : index
    %263 = vector.load %arg13[%c0_82, %c0_83] : memref<32x32xbf16, #tpu.memory_space<vmem>>, vector<32x32xbf16>
    %264 = arith.truncf %250 : vector<16x32xf32> to vector<16x32xbf16>
    %cst_84 = arith.constant dense<0.000000e+00> : vector<16x32xf32>
    %265 = tpu.matmul %264, %263, %cst_84 {dimension_numbers = #tpu.dot_dimension_numbers<[1], [0], [0], [1], [0, 0, 1, 1], [], []>} : vector<16x32xbf16>, vector<32x32xbf16>, vector<16x32xf32> -> vector<16x32xf32>
    %c0_85 = arith.constant 0 : index
    %c0_86 = arith.constant 0 : index
    %266 = vector.load %arg19[%c0_85, %c0_86] : memref<1x32xf32, #tpu.memory_space<vmem>>, vector<1x32xf32>
    %267 = vector.broadcast %266 : vector<1x32xf32> to vector<16x32xf32>
    %268 = arith.addf %265, %267 : vector<16x32xf32>
    %c0_87 = arith.constant 0 : index
    %c0_88 = arith.constant 0 : index
    %269 = vector.load %arg14[%c0_87, %c0_88] : memref<32x32xbf16, #tpu.memory_space<vmem>>, vector<32x32xbf16>
    %c0_89 = arith.constant 0 : index
    %c0_90 = arith.constant 0 : index
    %270 = vector.load %arg15[%c0_89, %c0_90] : memref<32x32xbf16, #tpu.memory_space<vmem>>, vector<32x32xbf16>
    %c0_91 = arith.constant 0 : index
    %c0_92 = arith.constant 0 : index
    %271 = vector.load %arg16[%c0_91, %c0_92] : memref<32x32xbf16, #tpu.memory_space<vmem>>, vector<32x32xbf16>
    %c0_93 = arith.constant 0 : index
    %c0_94 = arith.constant 0 : index
    %272 = vector.load %arg20[%c0_93, %c0_94] : memref<1x32xf32, #tpu.memory_space<vmem>>, vector<1x32xf32>
    %273 = vector.shape_cast %272 : vector<1x32xf32> to vector<1x32xf32>
    %274 = vector.broadcast %273 : vector<1x32xf32> to vector<2x32xf32>
    %cst_95 = arith.constant 0.000000e+00 : f32
    %275 = vector.broadcast %cst_95 : f32 to vector<2x32xf32>
    %276 = arith.truncf %275 : vector<2x32xf32> to vector<2x32xbf16>
    %cst_96 = arith.constant dense<0.000000e+00> : vector<2x32xf32>
    %277 = tpu.matmul %276, %269, %cst_96 {dimension_numbers = #tpu.dot_dimension_numbers<[1], [0], [0], [1], [0, 0, 1, 1], [], []>} : vector<2x32xbf16>, vector<32x32xbf16>, vector<2x32xf32> -> vector<2x32xf32>
    %cst_97 = arith.constant dense<0.000000e+00> : vector<2x32xf32>
    %278 = tpu.matmul %276, %270, %cst_97 {dimension_numbers = #tpu.dot_dimension_numbers<[1], [0], [0], [1], [0, 0, 1, 1], [], []>} : vector<2x32xbf16>, vector<32x32xbf16>, vector<2x32xf32> -> vector<2x32xf32>
    %cst_98 = arith.constant dense<0.000000e+00> : vector<2x32xf32>
    %279 = tpu.matmul %276, %271, %cst_98 {dimension_numbers = #tpu.dot_dimension_numbers<[1], [0], [0], [1], [0, 0, 1, 1], [], []>} : vector<2x32xbf16>, vector<32x32xbf16>, vector<2x32xf32> -> vector<2x32xf32>
    %280 = arith.addf %279, %274 : vector<2x32xf32>
    %281 = vector.extract_strided_slice %256 {offsets = [0, 0], sizes = [2, 32], strides = [1, 1]} : vector<16x32xf32> to vector<2x32xf32>
    %282 = arith.addf %281, %277 : vector<2x32xf32>
    %283 = arith.negf %282 : vector<2x32xf32>
    %284 = math.exp %283 : vector<2x32xf32>
    %cst_99 = arith.constant 1.000000e+00 : f32
    %285 = vector.broadcast %cst_99 : f32 to vector<2x32xf32>
    %286 = arith.addf %285, %284 : vector<2x32xf32>
    %287 = arith.divf %285, %286 : vector<2x32xf32>
    %288 = vector.extract_strided_slice %262 {offsets = [0, 0], sizes = [2, 32], strides = [1, 1]} : vector<16x32xf32> to vector<2x32xf32>
    %289 = arith.addf %288, %278 : vector<2x32xf32>
    %290 = arith.negf %289 : vector<2x32xf32>
    %291 = math.exp %290 : vector<2x32xf32>
    %cst_100 = arith.constant 1.000000e+00 : f32
    %292 = vector.broadcast %cst_100 : f32 to vector<2x32xf32>
    %293 = arith.addf %292, %291 : vector<2x32xf32>
    %294 = arith.divf %292, %293 : vector<2x32xf32>
    %295 = vector.extract_strided_slice %268 {offsets = [0, 0], sizes = [2, 32], strides = [1, 1]} : vector<16x32xf32> to vector<2x32xf32>
    %296 = arith.mulf %287, %280 : vector<2x32xf32>
    %297 = arith.addf %295, %296 : vector<2x32xf32>
    %298 = math.tanh %297 : vector<2x32xf32>
    %cst_101 = arith.constant 1.000000e+00 : f32
    %299 = vector.broadcast %cst_101 : f32 to vector<2x32xf32>
    %300 = arith.subf %299, %294 : vector<2x32xf32>
    %301 = arith.mulf %300, %298 : vector<2x32xf32>
    %302 = arith.mulf %294, %275 : vector<2x32xf32>
    %303 = arith.addf %301, %302 : vector<2x32xf32>
    %304 = arith.truncf %303 : vector<2x32xf32> to vector<2x32xbf16>
    %cst_102 = arith.constant dense<0.000000e+00> : vector<2x32xf32>
    %305 = tpu.matmul %304, %269, %cst_102 {dimension_numbers = #tpu.dot_dimension_numbers<[1], [0], [0], [1], [0, 0, 1, 1], [], []>} : vector<2x32xbf16>, vector<32x32xbf16>, vector<2x32xf32> -> vector<2x32xf32>
    %cst_103 = arith.constant dense<0.000000e+00> : vector<2x32xf32>
    %306 = tpu.matmul %304, %270, %cst_103 {dimension_numbers = #tpu.dot_dimension_numbers<[1], [0], [0], [1], [0, 0, 1, 1], [], []>} : vector<2x32xbf16>, vector<32x32xbf16>, vector<2x32xf32> -> vector<2x32xf32>
    %cst_104 = arith.constant dense<0.000000e+00> : vector<2x32xf32>
    %307 = tpu.matmul %304, %271, %cst_104 {dimension_numbers = #tpu.dot_dimension_numbers<[1], [0], [0], [1], [0, 0, 1, 1], [], []>} : vector<2x32xbf16>, vector<32x32xbf16>, vector<2x32xf32> -> vector<2x32xf32>
    %308 = arith.addf %307, %274 : vector<2x32xf32>
    %309 = vector.extract_strided_slice %256 {offsets = [2, 0], sizes = [2, 32], strides = [1, 1]} : vector<16x32xf32> to vector<2x32xf32>
    %310 = arith.addf %309, %305 : vector<2x32xf32>
    %311 = arith.negf %310 : vector<2x32xf32>
    %312 = math.exp %311 : vector<2x32xf32>
    %cst_105 = arith.constant 1.000000e+00 : f32
    %313 = vector.broadcast %cst_105 : f32 to vector<2x32xf32>
    %314 = arith.addf %313, %312 : vector<2x32xf32>
    %315 = arith.divf %313, %314 : vector<2x32xf32>
    %316 = vector.extract_strided_slice %262 {offsets = [2, 0], sizes = [2, 32], strides = [1, 1]} : vector<16x32xf32> to vector<2x32xf32>
    %317 = arith.addf %316, %306 : vector<2x32xf32>
    %318 = arith.negf %317 : vector<2x32xf32>
    %319 = math.exp %318 : vector<2x32xf32>
    %cst_106 = arith.constant 1.000000e+00 : f32
    %320 = vector.broadcast %cst_106 : f32 to vector<2x32xf32>
    %321 = arith.addf %320, %319 : vector<2x32xf32>
    %322 = arith.divf %320, %321 : vector<2x32xf32>
    %323 = vector.extract_strided_slice %268 {offsets = [2, 0], sizes = [2, 32], strides = [1, 1]} : vector<16x32xf32> to vector<2x32xf32>
    %324 = arith.mulf %315, %308 : vector<2x32xf32>
    %325 = arith.addf %323, %324 : vector<2x32xf32>
    %326 = math.tanh %325 : vector<2x32xf32>
    %cst_107 = arith.constant 1.000000e+00 : f32
    %327 = vector.broadcast %cst_107 : f32 to vector<2x32xf32>
    %328 = arith.subf %327, %322 : vector<2x32xf32>
    %329 = arith.mulf %328, %326 : vector<2x32xf32>
    %330 = arith.mulf %322, %303 : vector<2x32xf32>
    %331 = arith.addf %329, %330 : vector<2x32xf32>
    %332 = arith.truncf %331 : vector<2x32xf32> to vector<2x32xbf16>
    %cst_108 = arith.constant dense<0.000000e+00> : vector<2x32xf32>
    %333 = tpu.matmul %332, %269, %cst_108 {dimension_numbers = #tpu.dot_dimension_numbers<[1], [0], [0], [1], [0, 0, 1, 1], [], []>} : vector<2x32xbf16>, vector<32x32xbf16>, vector<2x32xf32> -> vector<2x32xf32>
    %cst_109 = arith.constant dense<0.000000e+00> : vector<2x32xf32>
    %334 = tpu.matmul %332, %270, %cst_109 {dimension_numbers = #tpu.dot_dimension_numbers<[1], [0], [0], [1], [0, 0, 1, 1], [], []>} : vector<2x32xbf16>, vector<32x32xbf16>, vector<2x32xf32> -> vector<2x32xf32>
    %cst_110 = arith.constant dense<0.000000e+00> : vector<2x32xf32>
    %335 = tpu.matmul %332, %271, %cst_110 {dimension_numbers = #tpu.dot_dimension_numbers<[1], [0], [0], [1], [0, 0, 1, 1], [], []>} : vector<2x32xbf16>, vector<32x32xbf16>, vector<2x32xf32> -> vector<2x32xf32>
    %336 = arith.addf %335, %274 : vector<2x32xf32>
    %337 = vector.extract_strided_slice %256 {offsets = [4, 0], sizes = [2, 32], strides = [1, 1]} : vector<16x32xf32> to vector<2x32xf32>
    %338 = arith.addf %337, %333 : vector<2x32xf32>
    %339 = arith.negf %338 : vector<2x32xf32>
    %340 = math.exp %339 : vector<2x32xf32>
    %cst_111 = arith.constant 1.000000e+00 : f32
    %341 = vector.broadcast %cst_111 : f32 to vector<2x32xf32>
    %342 = arith.addf %341, %340 : vector<2x32xf32>
    %343 = arith.divf %341, %342 : vector<2x32xf32>
    %344 = vector.extract_strided_slice %262 {offsets = [4, 0], sizes = [2, 32], strides = [1, 1]} : vector<16x32xf32> to vector<2x32xf32>
    %345 = arith.addf %344, %334 : vector<2x32xf32>
    %346 = arith.negf %345 : vector<2x32xf32>
    %347 = math.exp %346 : vector<2x32xf32>
    %cst_112 = arith.constant 1.000000e+00 : f32
    %348 = vector.broadcast %cst_112 : f32 to vector<2x32xf32>
    %349 = arith.addf %348, %347 : vector<2x32xf32>
    %350 = arith.divf %348, %349 : vector<2x32xf32>
    %351 = vector.extract_strided_slice %268 {offsets = [4, 0], sizes = [2, 32], strides = [1, 1]} : vector<16x32xf32> to vector<2x32xf32>
    %352 = arith.mulf %343, %336 : vector<2x32xf32>
    %353 = arith.addf %351, %352 : vector<2x32xf32>
    %354 = math.tanh %353 : vector<2x32xf32>
    %cst_113 = arith.constant 1.000000e+00 : f32
    %355 = vector.broadcast %cst_113 : f32 to vector<2x32xf32>
    %356 = arith.subf %355, %350 : vector<2x32xf32>
    %357 = arith.mulf %356, %354 : vector<2x32xf32>
    %358 = arith.mulf %350, %331 : vector<2x32xf32>
    %359 = arith.addf %357, %358 : vector<2x32xf32>
    %360 = arith.truncf %359 : vector<2x32xf32> to vector<2x32xbf16>
    %cst_114 = arith.constant dense<0.000000e+00> : vector<2x32xf32>
    %361 = tpu.matmul %360, %269, %cst_114 {dimension_numbers = #tpu.dot_dimension_numbers<[1], [0], [0], [1], [0, 0, 1, 1], [], []>} : vector<2x32xbf16>, vector<32x32xbf16>, vector<2x32xf32> -> vector<2x32xf32>
    %cst_115 = arith.constant dense<0.000000e+00> : vector<2x32xf32>
    %362 = tpu.matmul %360, %270, %cst_115 {dimension_numbers = #tpu.dot_dimension_numbers<[1], [0], [0], [1], [0, 0, 1, 1], [], []>} : vector<2x32xbf16>, vector<32x32xbf16>, vector<2x32xf32> -> vector<2x32xf32>
    %cst_116 = arith.constant dense<0.000000e+00> : vector<2x32xf32>
    %363 = tpu.matmul %360, %271, %cst_116 {dimension_numbers = #tpu.dot_dimension_numbers<[1], [0], [0], [1], [0, 0, 1, 1], [], []>} : vector<2x32xbf16>, vector<32x32xbf16>, vector<2x32xf32> -> vector<2x32xf32>
    %364 = arith.addf %363, %274 : vector<2x32xf32>
    %365 = vector.extract_strided_slice %256 {offsets = [6, 0], sizes = [2, 32], strides = [1, 1]} : vector<16x32xf32> to vector<2x32xf32>
    %366 = arith.addf %365, %361 : vector<2x32xf32>
    %367 = arith.negf %366 : vector<2x32xf32>
    %368 = math.exp %367 : vector<2x32xf32>
    %cst_117 = arith.constant 1.000000e+00 : f32
    %369 = vector.broadcast %cst_117 : f32 to vector<2x32xf32>
    %370 = arith.addf %369, %368 : vector<2x32xf32>
    %371 = arith.divf %369, %370 : vector<2x32xf32>
    %372 = vector.extract_strided_slice %262 {offsets = [6, 0], sizes = [2, 32], strides = [1, 1]} : vector<16x32xf32> to vector<2x32xf32>
    %373 = arith.addf %372, %362 : vector<2x32xf32>
    %374 = arith.negf %373 : vector<2x32xf32>
    %375 = math.exp %374 : vector<2x32xf32>
    %cst_118 = arith.constant 1.000000e+00 : f32
    %376 = vector.broadcast %cst_118 : f32 to vector<2x32xf32>
    %377 = arith.addf %376, %375 : vector<2x32xf32>
    %378 = arith.divf %376, %377 : vector<2x32xf32>
    %379 = vector.extract_strided_slice %268 {offsets = [6, 0], sizes = [2, 32], strides = [1, 1]} : vector<16x32xf32> to vector<2x32xf32>
    %380 = arith.mulf %371, %364 : vector<2x32xf32>
    %381 = arith.addf %379, %380 : vector<2x32xf32>
    %382 = math.tanh %381 : vector<2x32xf32>
    %cst_119 = arith.constant 1.000000e+00 : f32
    %383 = vector.broadcast %cst_119 : f32 to vector<2x32xf32>
    %384 = arith.subf %383, %378 : vector<2x32xf32>
    %385 = arith.mulf %384, %382 : vector<2x32xf32>
    %386 = arith.mulf %378, %359 : vector<2x32xf32>
    %387 = arith.addf %385, %386 : vector<2x32xf32>
    %388 = arith.truncf %387 : vector<2x32xf32> to vector<2x32xbf16>
    %cst_120 = arith.constant dense<0.000000e+00> : vector<2x32xf32>
    %389 = tpu.matmul %388, %269, %cst_120 {dimension_numbers = #tpu.dot_dimension_numbers<[1], [0], [0], [1], [0, 0, 1, 1], [], []>} : vector<2x32xbf16>, vector<32x32xbf16>, vector<2x32xf32> -> vector<2x32xf32>
    %cst_121 = arith.constant dense<0.000000e+00> : vector<2x32xf32>
    %390 = tpu.matmul %388, %270, %cst_121 {dimension_numbers = #tpu.dot_dimension_numbers<[1], [0], [0], [1], [0, 0, 1, 1], [], []>} : vector<2x32xbf16>, vector<32x32xbf16>, vector<2x32xf32> -> vector<2x32xf32>
    %cst_122 = arith.constant dense<0.000000e+00> : vector<2x32xf32>
    %391 = tpu.matmul %388, %271, %cst_122 {dimension_numbers = #tpu.dot_dimension_numbers<[1], [0], [0], [1], [0, 0, 1, 1], [], []>} : vector<2x32xbf16>, vector<32x32xbf16>, vector<2x32xf32> -> vector<2x32xf32>
    %392 = arith.addf %391, %274 : vector<2x32xf32>
    %393 = vector.extract_strided_slice %256 {offsets = [8, 0], sizes = [2, 32], strides = [1, 1]} : vector<16x32xf32> to vector<2x32xf32>
    %394 = arith.addf %393, %389 : vector<2x32xf32>
    %395 = arith.negf %394 : vector<2x32xf32>
    %396 = math.exp %395 : vector<2x32xf32>
    %cst_123 = arith.constant 1.000000e+00 : f32
    %397 = vector.broadcast %cst_123 : f32 to vector<2x32xf32>
    %398 = arith.addf %397, %396 : vector<2x32xf32>
    %399 = arith.divf %397, %398 : vector<2x32xf32>
    %400 = vector.extract_strided_slice %262 {offsets = [8, 0], sizes = [2, 32], strides = [1, 1]} : vector<16x32xf32> to vector<2x32xf32>
    %401 = arith.addf %400, %390 : vector<2x32xf32>
    %402 = arith.negf %401 : vector<2x32xf32>
    %403 = math.exp %402 : vector<2x32xf32>
    %cst_124 = arith.constant 1.000000e+00 : f32
    %404 = vector.broadcast %cst_124 : f32 to vector<2x32xf32>
    %405 = arith.addf %404, %403 : vector<2x32xf32>
    %406 = arith.divf %404, %405 : vector<2x32xf32>
    %407 = vector.extract_strided_slice %268 {offsets = [8, 0], sizes = [2, 32], strides = [1, 1]} : vector<16x32xf32> to vector<2x32xf32>
    %408 = arith.mulf %399, %392 : vector<2x32xf32>
    %409 = arith.addf %407, %408 : vector<2x32xf32>
    %410 = math.tanh %409 : vector<2x32xf32>
    %cst_125 = arith.constant 1.000000e+00 : f32
    %411 = vector.broadcast %cst_125 : f32 to vector<2x32xf32>
    %412 = arith.subf %411, %406 : vector<2x32xf32>
    %413 = arith.mulf %412, %410 : vector<2x32xf32>
    %414 = arith.mulf %406, %387 : vector<2x32xf32>
    %415 = arith.addf %413, %414 : vector<2x32xf32>
    %416 = arith.truncf %415 : vector<2x32xf32> to vector<2x32xbf16>
    %cst_126 = arith.constant dense<0.000000e+00> : vector<2x32xf32>
    %417 = tpu.matmul %416, %269, %cst_126 {dimension_numbers = #tpu.dot_dimension_numbers<[1], [0], [0], [1], [0, 0, 1, 1], [], []>} : vector<2x32xbf16>, vector<32x32xbf16>, vector<2x32xf32> -> vector<2x32xf32>
    %cst_127 = arith.constant dense<0.000000e+00> : vector<2x32xf32>
    %418 = tpu.matmul %416, %270, %cst_127 {dimension_numbers = #tpu.dot_dimension_numbers<[1], [0], [0], [1], [0, 0, 1, 1], [], []>} : vector<2x32xbf16>, vector<32x32xbf16>, vector<2x32xf32> -> vector<2x32xf32>
    %cst_128 = arith.constant dense<0.000000e+00> : vector<2x32xf32>
    %419 = tpu.matmul %416, %271, %cst_128 {dimension_numbers = #tpu.dot_dimension_numbers<[1], [0], [0], [1], [0, 0, 1, 1], [], []>} : vector<2x32xbf16>, vector<32x32xbf16>, vector<2x32xf32> -> vector<2x32xf32>
    %420 = arith.addf %419, %274 : vector<2x32xf32>
    %421 = vector.extract_strided_slice %256 {offsets = [10, 0], sizes = [2, 32], strides = [1, 1]} : vector<16x32xf32> to vector<2x32xf32>
    %422 = arith.addf %421, %417 : vector<2x32xf32>
    %423 = arith.negf %422 : vector<2x32xf32>
    %424 = math.exp %423 : vector<2x32xf32>
    %cst_129 = arith.constant 1.000000e+00 : f32
    %425 = vector.broadcast %cst_129 : f32 to vector<2x32xf32>
    %426 = arith.addf %425, %424 : vector<2x32xf32>
    %427 = arith.divf %425, %426 : vector<2x32xf32>
    %428 = vector.extract_strided_slice %262 {offsets = [10, 0], sizes = [2, 32], strides = [1, 1]} : vector<16x32xf32> to vector<2x32xf32>
    %429 = arith.addf %428, %418 : vector<2x32xf32>
    %430 = arith.negf %429 : vector<2x32xf32>
    %431 = math.exp %430 : vector<2x32xf32>
    %cst_130 = arith.constant 1.000000e+00 : f32
    %432 = vector.broadcast %cst_130 : f32 to vector<2x32xf32>
    %433 = arith.addf %432, %431 : vector<2x32xf32>
    %434 = arith.divf %432, %433 : vector<2x32xf32>
    %435 = vector.extract_strided_slice %268 {offsets = [10, 0], sizes = [2, 32], strides = [1, 1]} : vector<16x32xf32> to vector<2x32xf32>
    %436 = arith.mulf %427, %420 : vector<2x32xf32>
    %437 = arith.addf %435, %436 : vector<2x32xf32>
    %438 = math.tanh %437 : vector<2x32xf32>
    %cst_131 = arith.constant 1.000000e+00 : f32
    %439 = vector.broadcast %cst_131 : f32 to vector<2x32xf32>
    %440 = arith.subf %439, %434 : vector<2x32xf32>
    %441 = arith.mulf %440, %438 : vector<2x32xf32>
    %442 = arith.mulf %434, %415 : vector<2x32xf32>
    %443 = arith.addf %441, %442 : vector<2x32xf32>
    %444 = arith.truncf %443 : vector<2x32xf32> to vector<2x32xbf16>
    %cst_132 = arith.constant dense<0.000000e+00> : vector<2x32xf32>
    %445 = tpu.matmul %444, %269, %cst_132 {dimension_numbers = #tpu.dot_dimension_numbers<[1], [0], [0], [1], [0, 0, 1, 1], [], []>} : vector<2x32xbf16>, vector<32x32xbf16>, vector<2x32xf32> -> vector<2x32xf32>
    %cst_133 = arith.constant dense<0.000000e+00> : vector<2x32xf32>
    %446 = tpu.matmul %444, %270, %cst_133 {dimension_numbers = #tpu.dot_dimension_numbers<[1], [0], [0], [1], [0, 0, 1, 1], [], []>} : vector<2x32xbf16>, vector<32x32xbf16>, vector<2x32xf32> -> vector<2x32xf32>
    %cst_134 = arith.constant dense<0.000000e+00> : vector<2x32xf32>
    %447 = tpu.matmul %444, %271, %cst_134 {dimension_numbers = #tpu.dot_dimension_numbers<[1], [0], [0], [1], [0, 0, 1, 1], [], []>} : vector<2x32xbf16>, vector<32x32xbf16>, vector<2x32xf32> -> vector<2x32xf32>
    %448 = arith.addf %447, %274 : vector<2x32xf32>
    %449 = vector.extract_strided_slice %256 {offsets = [12, 0], sizes = [2, 32], strides = [1, 1]} : vector<16x32xf32> to vector<2x32xf32>
    %450 = arith.addf %449, %445 : vector<2x32xf32>
    %451 = arith.negf %450 : vector<2x32xf32>
    %452 = math.exp %451 : vector<2x32xf32>
    %cst_135 = arith.constant 1.000000e+00 : f32
    %453 = vector.broadcast %cst_135 : f32 to vector<2x32xf32>
    %454 = arith.addf %453, %452 : vector<2x32xf32>
    %455 = arith.divf %453, %454 : vector<2x32xf32>
    %456 = vector.extract_strided_slice %262 {offsets = [12, 0], sizes = [2, 32], strides = [1, 1]} : vector<16x32xf32> to vector<2x32xf32>
    %457 = arith.addf %456, %446 : vector<2x32xf32>
    %458 = arith.negf %457 : vector<2x32xf32>
    %459 = math.exp %458 : vector<2x32xf32>
    %cst_136 = arith.constant 1.000000e+00 : f32
    %460 = vector.broadcast %cst_136 : f32 to vector<2x32xf32>
    %461 = arith.addf %460, %459 : vector<2x32xf32>
    %462 = arith.divf %460, %461 : vector<2x32xf32>
    %463 = vector.extract_strided_slice %268 {offsets = [12, 0], sizes = [2, 32], strides = [1, 1]} : vector<16x32xf32> to vector<2x32xf32>
    %464 = arith.mulf %455, %448 : vector<2x32xf32>
    %465 = arith.addf %463, %464 : vector<2x32xf32>
    %466 = math.tanh %465 : vector<2x32xf32>
    %cst_137 = arith.constant 1.000000e+00 : f32
    %467 = vector.broadcast %cst_137 : f32 to vector<2x32xf32>
    %468 = arith.subf %467, %462 : vector<2x32xf32>
    %469 = arith.mulf %468, %466 : vector<2x32xf32>
    %470 = arith.mulf %462, %443 : vector<2x32xf32>
    %471 = arith.addf %469, %470 : vector<2x32xf32>
    %472 = arith.truncf %471 : vector<2x32xf32> to vector<2x32xbf16>
    %cst_138 = arith.constant dense<0.000000e+00> : vector<2x32xf32>
    %473 = tpu.matmul %472, %269, %cst_138 {dimension_numbers = #tpu.dot_dimension_numbers<[1], [0], [0], [1], [0, 0, 1, 1], [], []>} : vector<2x32xbf16>, vector<32x32xbf16>, vector<2x32xf32> -> vector<2x32xf32>
    %cst_139 = arith.constant dense<0.000000e+00> : vector<2x32xf32>
    %474 = tpu.matmul %472, %270, %cst_139 {dimension_numbers = #tpu.dot_dimension_numbers<[1], [0], [0], [1], [0, 0, 1, 1], [], []>} : vector<2x32xbf16>, vector<32x32xbf16>, vector<2x32xf32> -> vector<2x32xf32>
    %cst_140 = arith.constant dense<0.000000e+00> : vector<2x32xf32>
    %475 = tpu.matmul %472, %271, %cst_140 {dimension_numbers = #tpu.dot_dimension_numbers<[1], [0], [0], [1], [0, 0, 1, 1], [], []>} : vector<2x32xbf16>, vector<32x32xbf16>, vector<2x32xf32> -> vector<2x32xf32>
    %476 = arith.addf %475, %274 : vector<2x32xf32>
    %477 = vector.extract_strided_slice %256 {offsets = [14, 0], sizes = [2, 32], strides = [1, 1]} : vector<16x32xf32> to vector<2x32xf32>
    %478 = arith.addf %477, %473 : vector<2x32xf32>
    %479 = arith.negf %478 : vector<2x32xf32>
    %480 = math.exp %479 : vector<2x32xf32>
    %cst_141 = arith.constant 1.000000e+00 : f32
    %481 = vector.broadcast %cst_141 : f32 to vector<2x32xf32>
    %482 = arith.addf %481, %480 : vector<2x32xf32>
    %483 = arith.divf %481, %482 : vector<2x32xf32>
    %484 = vector.extract_strided_slice %262 {offsets = [14, 0], sizes = [2, 32], strides = [1, 1]} : vector<16x32xf32> to vector<2x32xf32>
    %485 = arith.addf %484, %474 : vector<2x32xf32>
    %486 = arith.negf %485 : vector<2x32xf32>
    %487 = math.exp %486 : vector<2x32xf32>
    %cst_142 = arith.constant 1.000000e+00 : f32
    %488 = vector.broadcast %cst_142 : f32 to vector<2x32xf32>
    %489 = arith.addf %488, %487 : vector<2x32xf32>
    %490 = arith.divf %488, %489 : vector<2x32xf32>
    %491 = vector.extract_strided_slice %268 {offsets = [14, 0], sizes = [2, 32], strides = [1, 1]} : vector<16x32xf32> to vector<2x32xf32>
    %492 = arith.mulf %483, %476 : vector<2x32xf32>
    %493 = arith.addf %491, %492 : vector<2x32xf32>
    %494 = math.tanh %493 : vector<2x32xf32>
    %cst_143 = arith.constant 1.000000e+00 : f32
    %495 = vector.broadcast %cst_143 : f32 to vector<2x32xf32>
    %496 = arith.subf %495, %490 : vector<2x32xf32>
    %497 = arith.mulf %496, %494 : vector<2x32xf32>
    %498 = arith.mulf %490, %471 : vector<2x32xf32>
    %499 = arith.addf %497, %498 : vector<2x32xf32>
    %c0_144 = arith.constant 0 : index
    %c0_145 = arith.constant 0 : index
    %500 = vector.load %arg21[%c0_144, %c0_145] : memref<32x64xbf16, #tpu.memory_space<vmem>>, vector<32x64xbf16>
    %501 = arith.truncf %499 : vector<2x32xf32> to vector<2x32xbf16>
    %cst_146 = arith.constant dense<0.000000e+00> : vector<2x64xf32>
    %502 = tpu.matmul %501, %500, %cst_146 {dimension_numbers = #tpu.dot_dimension_numbers<[1], [0], [0], [1], [0, 0, 1, 1], [], []>} : vector<2x32xbf16>, vector<32x64xbf16>, vector<2x64xf32> -> vector<2x64xf32>
    %c0_147 = arith.constant 0 : index
    %c0_148 = arith.constant 0 : index
    %503 = vector.load %arg22[%c0_147, %c0_148] : memref<1x64xf32, #tpu.memory_space<vmem>>, vector<1x64xf32>
    %504 = vector.broadcast %503 : vector<1x64xf32> to vector<2x64xf32>
    %505 = arith.addf %502, %504 : vector<2x64xf32>
    %c0_149 = arith.constant 0 : index
    %c0_150 = arith.constant 0 : index
    %506 = vector.load %arg23[%c0_149, %c0_150] : memref<64x256xbf16, #tpu.memory_space<vmem>>, vector<64x256xbf16>
    %507 = arith.truncf %505 : vector<2x64xf32> to vector<2x64xbf16>
    %cst_151 = arith.constant dense<0.000000e+00> : vector<2x256xf32>
    %508 = tpu.matmul %507, %506, %cst_151 {dimension_numbers = #tpu.dot_dimension_numbers<[1], [0], [0], [1], [0, 0, 1, 1], [], []>} : vector<2x64xbf16>, vector<64x256xbf16>, vector<2x256xf32> -> vector<2x256xf32>
    %c0_152 = arith.constant 0 : index
    %c0_153 = arith.constant 0 : index
    %509 = vector.load %arg24[%c0_152, %c0_153] : memref<1x256xf32, #tpu.memory_space<vmem>>, vector<1x256xf32>
    %510 = vector.broadcast %509 : vector<1x256xf32> to vector<2x256xf32>
    %511 = arith.addf %508, %510 : vector<2x256xf32>
    %c0_154 = arith.constant 0 : index
    %c0_155 = arith.constant 0 : index
    %512 = vector.load %arg25[%c0_154, %c0_155] : memref<256x16xbf16, #tpu.memory_space<vmem>>, vector<256x16xbf16>
    %513 = arith.truncf %511 : vector<2x256xf32> to vector<2x256xbf16>
    %cst_156 = arith.constant dense<0.000000e+00> : vector<2x16xf32>
    %514 = tpu.matmul %513, %512, %cst_156 {dimension_numbers = #tpu.dot_dimension_numbers<[1], [0], [0], [1], [0, 0, 1, 1], [], []>} : vector<2x256xbf16>, vector<256x16xbf16>, vector<2x16xf32> -> vector<2x16xf32>
    %c0_157 = arith.constant 0 : index
    %c0_158 = arith.constant 0 : index
    %515 = vector.load %arg26[%c0_157, %c0_158] : memref<1x16xf32, #tpu.memory_space<vmem>>, vector<1x16xf32>
    %516 = vector.broadcast %515 : vector<1x16xf32> to vector<2x16xf32>
    %517 = arith.addf %514, %516 : vector<2x16xf32>
    %518 = vector.extract_strided_slice %517 {offsets = [0, 0], sizes = [2, 1], strides = [1, 1]} : vector<2x16xf32> to vector<2x1xf32>
    %519 = vector.extract_strided_slice %517 {offsets = [0, 1], sizes = [2, 5], strides = [1, 1]} : vector<2x16xf32> to vector<2x5xf32>
    %520 = vector.broadcast %518 : vector<2x1xf32> to vector<2x5xf32>
    %521 = arith.addf %520, %519 : vector<2x5xf32>
    %cst_159 = arith.constant dense<0.000000e+00> : vector<2xf32>
    %522 = vector.multi_reduction <add>, %519, %cst_159 [1] : vector<2x5xf32> to vector<2xf32>
    %523 = vector.shape_cast %522 : vector<2xf32> to vector<2x1xf32>
    %cst_160 = arith.constant 5.000000e+00 : f32
    %524 = vector.broadcast %cst_160 : f32 to vector<2x1xf32>
    %525 = arith.divf %523, %524 : vector<2x1xf32>
    %526 = vector.broadcast %525 : vector<2x1xf32> to vector<2x5xf32>
    %527 = arith.subf %521, %526 : vector<2x5xf32>
    %528 = vector.extract_strided_slice %517 {offsets = [0, 6], sizes = [2, 5], strides = [1, 1]} : vector<2x16xf32> to vector<2x5xf32>
    %529 = vector.broadcast %518 : vector<2x1xf32> to vector<2x5xf32>
    %530 = arith.addf %529, %528 : vector<2x5xf32>
    %cst_161 = arith.constant dense<0.000000e+00> : vector<2xf32>
    %531 = vector.multi_reduction <add>, %528, %cst_161 [1] : vector<2x5xf32> to vector<2xf32>
    %532 = vector.shape_cast %531 : vector<2xf32> to vector<2x1xf32>
    %cst_162 = arith.constant 5.000000e+00 : f32
    %533 = vector.broadcast %cst_162 : f32 to vector<2x1xf32>
    %534 = arith.divf %532, %533 : vector<2x1xf32>
    %535 = vector.broadcast %534 : vector<2x1xf32> to vector<2x5xf32>
    %536 = arith.subf %530, %535 : vector<2x5xf32>
    %537 = vector.extract_strided_slice %517 {offsets = [0, 11], sizes = [2, 5], strides = [1, 1]} : vector<2x16xf32> to vector<2x5xf32>
    %538 = vector.broadcast %518 : vector<2x1xf32> to vector<2x5xf32>
    %539 = arith.addf %538, %537 : vector<2x5xf32>
    %cst_163 = arith.constant dense<0.000000e+00> : vector<2xf32>
    %540 = vector.multi_reduction <add>, %537, %cst_163 [1] : vector<2x5xf32> to vector<2xf32>
    %541 = vector.shape_cast %540 : vector<2xf32> to vector<2x1xf32>
    %cst_164 = arith.constant 5.000000e+00 : f32
    %542 = vector.broadcast %cst_164 : f32 to vector<2x1xf32>
    %543 = arith.divf %541, %542 : vector<2x1xf32>
    %544 = vector.broadcast %543 : vector<2x1xf32> to vector<2x5xf32>
    %545 = arith.subf %539, %544 : vector<2x5xf32>
    %546 = tpu.concatenate %527, %536, %545 in 1 : vector<2x5xf32>, vector<2x5xf32>, vector<2x5xf32> -> vector<2x15xf32>
    %c0_165 = arith.constant 0 : index
    %c0_166 = arith.constant 0 : index
    %547 = vector.load %arg27[%c0_165, %c0_166] : memref<2x15xf32, #tpu.memory_space<vmem>>, vector<2x15xf32>
    tpu.vector_store %arg27[%c0_165, %c0_166], %546 {strides = array<i32>} : memref<2x15xf32, #tpu.memory_space<vmem>>, vector<2x15xf32>,
    return
  }
}

</mosaic_0001>

<llo_original>
// kernel: tpu_custom_call.1
$region0: #{tpu_custom_call.1}
  #allocation0 [shape = 'u32[]', space=smem, size = 0x4, offset = 0x4, fixed_abs, tag = 'smem constant byte address 0x4 - core index']
  #allocation1 [shape = 'u32[72,128]{1,0:T(1,128)}', space=vmem, size = 0x9000, scoped, tag = 'internal scratch']
  %s0 = inlined_call_operand.vmem [shape: f32[16,16], index: 0, kind: input, shape index: {}]
  %s1 = inlined_call_operand.hbm [shape: bf16[16,32], index: 1, kind: input, shape index: {}]
  %s2 = inlined_call_operand.hbm [shape: bf16[16,32], index: 2, kind: input, shape index: {}]
  %s3 = inlined_call_operand.hbm [shape: bf16[16,32], index: 3, kind: input, shape index: {}]
  %s4 = inlined_call_operand.vmem [shape: bf16[32,32], index: 4, kind: input, shape index: {}]
  %s5 = inlined_call_operand.vmem [shape: bf16[32,32], index: 5, kind: input, shape index: {}]
  %s6 = inlined_call_operand.vmem [shape: bf16[32,32], index: 6, kind: input, shape index: {}]
  %s7 = inlined_call_operand.vmem [shape: f32[1,32], index: 7, kind: input, shape index: {}]
  %s8 = inlined_call_operand.vmem [shape: f32[1,32], index: 8, kind: input, shape index: {}]
  %s9 = inlined_call_operand.vmem [shape: f32[1,32], index: 9, kind: input, shape index: {}]
  %s10 = inlined_call_operand.vmem [shape: f32[1,32], index: 10, kind: input, shape index: {}]
  %s11 = inlined_call_operand.vmem [shape: bf16[32,32], index: 11, kind: input, shape index: {}]
  %s12 = inlined_call_operand.hbm [shape: bf16[32,32], index: 12, kind: input, shape index: {}]
  %s13 = inlined_call_operand.hbm [shape: bf16[32,32], index: 13, kind: input, shape index: {}]
  %s14 = inlined_call_operand.hbm [shape: bf16[32,32], index: 14, kind: input, shape index: {}]
  %s15 = inlined_call_operand.hbm [shape: bf16[32,32], index: 15, kind: input, shape index: {}]
  %s16 = inlined_call_operand.hbm [shape: bf16[32,32], index: 16, kind: input, shape index: {}]
  %s17 = inlined_call_operand.vmem [shape: f32[1,32], index: 17, kind: input, shape index: {}]
  %s18 = inlined_call_operand.vmem [shape: f32[1,32], index: 18, kind: input, shape index: {}]
  %s19 = inlined_call_operand.hbm [shape: f32[1,32], index: 19, kind: input, shape index: {}]
  %s20 = inlined_call_operand.hbm [shape: f32[1,32], index: 20, kind: input, shape index: {}]
  %s21 = inlined_call_operand.hbm [shape: bf16[32,64], index: 21, kind: input, shape index: {}]
  %s22 = inlined_call_operand.hbm [shape: f32[1,64], index: 22, kind: input, shape index: {}]
  %s23 = inlined_call_operand.vmem [shape: bf16[64,256], index: 23, kind: input, shape index: {}]
  %s24 = inlined_call_operand.vmem [shape: f32[1,256], index: 24, kind: input, shape index: {}]
  %s25 = inlined_call_operand.vmem [shape: bf16[256,16], index: 25, kind: input, shape index: {}]
  %s26 = inlined_call_operand.hbm [shape: f32[1,16], index: 26, kind: input, shape index: {}]
  %s27 = inlined_call_operand.hbm [shape: f32[2,15], index: 27, kind: output, shape index: {}]
  %s28 = sld [smem:[#allocation0]]
  $region170: #{tpu_custom_call.1} parent=0
    _
  %s30 = ssub.s32 1, %s28
  %s31 = scalar_select 0, %s30, %s28
  $region1: #{tpu_custom_call.1} parent=0
    #allocation2 [shape = 'u8[4096]{0}', space=vmem, size = 0x1000, scoped, tag = 'input window, operand 1, single buffered']
    #allocation3 [shape = 's32[1]{0}', space=sflag, size = 0x4, scoped, tag = 'scoped memory for tpu_custom_call.1']
    #allocation4 [shape = 's32[1]{0}', space=sflag, size = 0x4, scoped, tag = 'scoped memory for tpu_custom_call.1']
    #allocation5 [shape = 'u8[4096]{0}', space=vmem, size = 0x1000, scoped, tag = 'input window, operand 2, single buffered']
    #allocation6 [shape = 's32[1]{0}', space=sflag, size = 0x4, scoped, tag = 'scoped memory for tpu_custom_call.1']
    #allocation7 [shape = 'u8[4096]{0}', space=vmem, size = 0x1000, scoped, tag = 'input window, operand 3, single buffered']
    #allocation8 [shape = 'u8[8192]{0}', space=vmem, size = 0x2000, scoped, tag = 'input window, operand 12, single buffered']
    #allocation9 [shape = 's32[1]{0}', space=sflag, size = 0x4, scoped, tag = 'scoped memory for tpu_custom_call.1']
    #allocation10 [shape = 'u8[8192]{0}', space=vmem, size = 0x2000, scoped, tag = 'input window, operand 13, single buffered']
    #allocation11 [shape = 'u8[8192]{0}', space=vmem, size = 0x2000, scoped, tag = 'input window, operand 14, single buffered']
    #allocation12 [shape = 's32[1]{0}', space=sflag, size = 0x4, scoped, tag = 'scoped memory for tpu_custom_call.1']
    #allocation13 [shape = 'u8[8192]{0}', space=vmem, size = 0x2000, scoped, tag = 'input window, operand 15, single buffered']
    #allocation14 [shape = 'u8[8192]{0}', space=vmem, size = 0x2000, scoped, tag = 'input window, operand 16, single buffered']
    #allocation15 [shape = 's32[1]{0}', space=sflag, size = 0x4, scoped, tag = 'scoped memory for tpu_custom_call.1']
    #allocation16 [shape = 'u8[512]{0}', space=vmem, size = 0x400, scoped, tag = 'input window, operand 19, single buffered']
    #allocation17 [shape = 'u8[512]{0}', space=vmem, size = 0x400, scoped, tag = 'input window, operand 20, single buffered']
    #allocation18 [shape = 's32[1]{0}', space=sflag, size = 0x4, scoped, tag = 'scoped memory for tpu_custom_call.1']
    #allocation19 [shape = 'u8[8192]{0}', space=vmem, size = 0x2000, scoped, tag = 'input window, operand 21, single buffered']
    #allocation20 [shape = 'u8[512]{0}', space=vmem, size = 0x400, scoped, tag = 'input window, operand 22, single buffered']
    #allocation21 [shape = 's32[1]{0}', space=sflag, size = 0x4, scoped, tag = 'scoped memory for tpu_custom_call.1']
    #allocation22 [shape = 'u8[512]{0}', space=vmem, size = 0x400, scoped, tag = 'input window, operand 26, single buffered']
    #allocation23 [shape = 'u8[1024]{0}', space=vmem, size = 0x400, scoped, tag = 'output window, operand 0, single buffered']
    %32 = vsyncpa [#allocation3], 0
    %33 = vsyncpa [#allocation6], 0
    %34 = vsyncpa [#allocation9], 0
    %35 = vsyncpa [#allocation12], 0
    %36 = vsyncpa [#allocation15], 0
    %37 = vsyncpa [#allocation18], 0
    %38 = vsyncpa [#allocation21], 0
    %39 = vsyncpa [#allocation4], 0
    // Predicated region
    $region2: #{tpu_custom_call.1} parent=1 // pred_check
      _
    $region3: #{tpu_custom_call.1} parent=1 // pred_check_branch
      %41 = sbr.rel (0) target = $region5
    $region4: #{tpu_custom_call.1} parent=1 // pred_region
      _
    $region5: #{tpu_custom_call.1} parent=1 // pred_fallthru
      _
    // Predicated region
    $region6: #{tpu_custom_call.1} parent=1 // pred_check
      _
    $region7: #{tpu_custom_call.1} parent=1 // pred_check_branch
      %43 = sbr.rel (0) target = $region9
    $region8: #{tpu_custom_call.1} parent=1 // pred_region
      %45 = vsyncadd [#allocation3], 0
      %s46 = sshll.u32 %s1, 4
      %s47 = int_to_ptr.hbm [resolvable:$true] %s46
      %s48 = sshll.u32 [#allocation2], 4
      %s49 = int_to_ptr.vmem [resolvable:$true] %s48
      %54 = dma.hbm_to_vmem [thread:$0]  %s47, 128, %s49, [#allocation3], 64, 64, 4
    $region9: #{tpu_custom_call.1} parent=1 // pred_fallthru
      _
    // Predicated region
    $region10: #{tpu_custom_call.1} parent=1 // pred_check
      _
    $region11: #{tpu_custom_call.1} parent=1 // pred_check_branch
      %56 = sbr.rel (0) target = $region13
    $region12: #{tpu_custom_call.1} parent=1 // pred_region
      %58 = vsyncadd [#allocation6], 0
      %s59 = sshll.u32 %s2, 4
      %s60 = int_to_ptr.hbm [resolvable:$true] %s59
      %s61 = sshll.u32 [#allocation5], 4
      %s62 = int_to_ptr.vmem [resolvable:$true] %s61
      %67 = dma.hbm_to_vmem [thread:$0]  %s60, 128, %s62, [#allocation6], 64, 64, 4
    $region13: #{tpu_custom_call.1} parent=1 // pred_fallthru
      _
    // Predicated region
    $region14: #{tpu_custom_call.1} parent=1 // pred_check
      _
    $region15: #{tpu_custom_call.1} parent=1 // pred_check_branch
      %69 = sbr.rel (0) target = $region17
    $region16: #{tpu_custom_call.1} parent=1 // pred_region
      %71 = vsyncadd [#allocation6], 0
      %s72 = sshll.u32 %s3, 4
      %s73 = int_to_ptr.hbm [resolvable:$true] %s72
      %s74 = sshll.u32 [#allocation7], 4
      %s75 = int_to_ptr.vmem [resolvable:$true] %s74
      %80 = dma.hbm_to_vmem [thread:$0]  %s73, 128, %s75, [#allocation6], 64, 64, 4
    $region17: #{tpu_custom_call.1} parent=1 // pred_fallthru
      _
    // Predicated region
    $region18: #{tpu_custom_call.1} parent=1 // pred_check
      _
    $region19: #{tpu_custom_call.1} parent=1 // pred_check_branch
      %82 = sbr.rel (0) target = $region21
    $region20: #{tpu_custom_call.1} parent=1 // pred_region
      _
    $region21: #{tpu_custom_call.1} parent=1 // pred_fallthru
      _
    // Predicated region
    $region22: #{tpu_custom_call.1} parent=1 // pred_check
      _
    $region23: #{tpu_custom_call.1} parent=1 // pred_check_branch
      %84 = sbr.rel (0) target = $region25
    $region24: #{tpu_custom_call.1} parent=1 // pred_region
      _
    $region25: #{tpu_custom_call.1} parent=1 // pred_fallthru
      _
    // Predicated region
    $region26: #{tpu_custom_call.1} parent=1 // pred_check
      _
    $region27: #{tpu_custom_call.1} parent=1 // pred_check_branch
      %86 = sbr.rel (0) target = $region29
    $region28: #{tpu_custom_call.1} parent=1 // pred_region
      _
    $region29: #{tpu_custom_call.1} parent=1 // pred_fallthru
      _
    // Predicated region
    $region30: #{tpu_custom_call.1} parent=1 // pred_check
      _
    $region31: #{tpu_custom_call.1} parent=1 // pred_check_branch
      %88 = sbr.rel (0) target = $region33
    $region32: #{tpu_custom_call.1} parent=1 // pred_region
      _
    $region33: #{tpu_custom_call.1} parent=1 // pred_fallthru
      _
    // Predicated region
    $region34: #{tpu_custom_call.1} parent=1 // pred_check
      _
    $region35: #{tpu_custom_call.1} parent=1 // pred_check_branch
      %90 = sbr.rel (0) target = $region37
    $region36: #{tpu_custom_call.1} parent=1 // pred_region
      _
    $region37: #{tpu_custom_call.1} parent=1 // pred_fallthru
      _
    // Predicated region
    $region38: #{tpu_custom_call.1} parent=1 // pred_check
      _
    $region39: #{tpu_custom_call.1} parent=1 // pred_check_branch
      %92 = sbr.rel (0) target = $region41
    $region40: #{tpu_custom_call.1} parent=1 // pred_region
      _
    $region41: #{tpu_custom_call.1} parent=1 // pred_fallthru
      _
    // Predicated region
    $region42: #{tpu_custom_call.1} parent=1 // pred_check
      _
    $region43: #{tpu_custom_call.1} parent=1 // pred_check_branch
      %94 = sbr.rel (0) target = $region45
    $region44: #{tpu_custom_call.1} parent=1 // pred_region
      _
    $region45: #{tpu_custom_call.1} parent=1 // pred_fallthru
      _
    // Predicated region
    $region46: #{tpu_custom_call.1} parent=1 // pred_check
      _
    $region47: #{tpu_custom_call.1} parent=1 // pred_check_branch
      %96 = sbr.rel (0) target = $region49
    $region48: #{tpu_custom_call.1} parent=1 // pred_region
      _
    $region49: #{tpu_custom_call.1} parent=1 // pred_fallthru
      _
    // Predicated region
    $region50: #{tpu_custom_call.1} parent=1 // pred_check
      _
    $region51: #{tpu_custom_call.1} parent=1 // pred_check_branch
      %98 = sbr.rel (0) target = $region53
    $region52: #{tpu_custom_call.1} parent=1 // pred_region
      %100 = vsyncadd [#allocation9], 0
      %s101 = sshll.u32 %s12, 4
      %s102 = int_to_ptr.hbm [resolvable:$true] %s101
      %s103 = sshll.u32 [#allocation8], 4
      %s104 = int_to_ptr.vmem [resolvable:$true] %s103
      %109 = dma.hbm_to_vmem [thread:$0]  %s102, 256, %s104, [#allocation9], 64, 64, 4
    $region53: #{tpu_custom_call.1} parent=1 // pred_fallthru
      _
    // Predicated region
    $region54: #{tpu_custom_call.1} parent=1 // pred_check
      _
    $region55: #{tpu_custom_call.1} parent=1 // pred_check_branch
      %111 = sbr.rel (0) target = $region57
    $region56: #{tpu_custom_call.1} parent=1 // pred_region
      %113 = vsyncadd [#allocation9], 0
      %s114 = sshll.u32 %s13, 4
      %s115 = int_to_ptr.hbm [resolvable:$true] %s114
      %s116 = sshll.u32 [#allocation10], 4
      %s117 = int_to_ptr.vmem [resolvable:$true] %s116
      %122 = dma.hbm_to_vmem [thread:$0]  %s115, 256, %s117, [#allocation9], 64, 64, 4
    $region57: #{tpu_custom_call.1} parent=1 // pred_fallthru
      _
    // Predicated region
    $region58: #{tpu_custom_call.1} parent=1 // pred_check
      _
    $region59: #{tpu_custom_call.1} parent=1 // pred_check_branch
      %124 = sbr.rel (0) target = $region61
    $region60: #{tpu_custom_call.1} parent=1 // pred_region
      %126 = vsyncadd [#allocation12], 0
      %s127 = sshll.u32 %s14, 4
      %s128 = int_to_ptr.hbm [resolvable:$true] %s127
      %s129 = sshll.u32 [#allocation11], 4
      %s130 = int_to_ptr.vmem [resolvable:$true] %s129
      %135 = dma.hbm_to_vmem [thread:$0]  %s128, 256, %s130, [#allocation12], 64, 64, 4
    $region61: #{tpu_custom_call.1} parent=1 // pred_fallthru
      _
    // Predicated region
    $region62: #{tpu_custom_call.1} parent=1 // pred_check
      _
    $region63: #{tpu_custom_call.1} parent=1 // pred_check_branch
      %137 = sbr.rel (0) target = $region65
    $region64: #{tpu_custom_call.1} parent=1 // pred_region
      %139 = vsyncadd [#allocation12], 0
      %s140 = sshll.u32 %s15, 4
      %s141 = int_to_ptr.hbm [resolvable:$true] %s140
      %s142 = sshll.u32 [#allocation13], 4
      %s143 = int_to_ptr.vmem [resolvable:$true] %s142
      %148 = dma.hbm_to_vmem [thread:$0]  %s141, 256, %s143, [#allocation12], 64, 64, 4
    $region65: #{tpu_custom_call.1} parent=1 // pred_fallthru
      _
    // Predicated region
    $region66: #{tpu_custom_call.1} parent=1 // pred_check
      _
    $region67: #{tpu_custom_call.1} parent=1 // pred_check_branch
      %150 = sbr.rel (0) target = $region69
    $region68: #{tpu_custom_call.1} parent=1 // pred_region
      %152 = vsyncadd [#allocation15], 0
      %s153 = sshll.u32 %s16, 4
      %s154 = int_to_ptr.hbm [resolvable:$true] %s153
      %s155 = sshll.u32 [#allocation14], 4
      %s156 = int_to_ptr.vmem [resolvable:$true] %s155
      %161 = dma.hbm_to_vmem [thread:$0]  %s154, 256, %s156, [#allocation15], 64, 64, 4
    $region69: #{tpu_custom_call.1} parent=1 // pred_fallthru
      _
    // Predicated region
    $region70: #{tpu_custom_call.1} parent=1 // pred_check
      _
    $region71: #{tpu_custom_call.1} parent=1 // pred_check_branch
      %163 = sbr.rel (0) target = $region73
    $region72: #{tpu_custom_call.1} parent=1 // pred_region
      _
    $region73: #{tpu_custom_call.1} parent=1 // pred_fallthru
      _
    // Predicated region
    $region74: #{tpu_custom_call.1} parent=1 // pred_check
      _
    $region75: #{tpu_custom_call.1} parent=1 // pred_check_branch
      %165 = sbr.rel (0) target = $region77
    $region76: #{tpu_custom_call.1} parent=1 // pred_region
      _
    $region77: #{tpu_custom_call.1} parent=1 // pred_fallthru
      _
    // Predicated region
    $region78: #{tpu_custom_call.1} parent=1 // pred_check
      _
    $region79: #{tpu_custom_call.1} parent=1 // pred_check_branch
      %167 = sbr.rel (0) target = $region81
    $region80: #{tpu_custom_call.1} parent=1 // pred_region
      %169 = vsyncadd [#allocation15], 0
      %s171 = sshll.u32 %s19, 4
      %s172 = int_to_ptr.hbm [resolvable:$true] %s171
      %s173 = sshll.u32 [#allocation16], 4
      %s174 = int_to_ptr.vmem [resolvable:$true] %s173
      %176 = dma.hbm_to_vmem [thread:$0]  %s172, 16, %s174, [#allocation15]
    $region81: #{tpu_custom_call.1} parent=1 // pred_fallthru
      _
    // Predicated region
    $region82: #{tpu_custom_call.1} parent=1 // pred_check
      _
    $region83: #{tpu_custom_call.1} parent=1 // pred_check_branch
      %178 = sbr.rel (0) target = $region85
    $region84: #{tpu_custom_call.1} parent=1 // pred_region
      %180 = vsyncadd [#allocation18], 0
      %s182 = sshll.u32 %s20, 4
      %s183 = int_to_ptr.hbm [resolvable:$true] %s182
      %s184 = sshll.u32 [#allocation17], 4
      %s185 = int_to_ptr.vmem [resolvable:$true] %s184
      %187 = dma.hbm_to_vmem [thread:$0]  %s183, 16, %s185, [#allocation18]
    $region85: #{tpu_custom_call.1} parent=1 // pred_fallthru
      _
    // Predicated region
    $region86: #{tpu_custom_call.1} parent=1 // pred_check
      _
    $region87: #{tpu_custom_call.1} parent=1 // pred_check_branch
      %189 = sbr.rel (0) target = $region89
    $region88: #{tpu_custom_call.1} parent=1 // pred_region
      %191 = vsyncadd [#allocation18], 0
      %s192 = sshll.u32 %s21, 4
      %s193 = int_to_ptr.hbm [resolvable:$true] %s192
      %s194 = sshll.u32 [#allocation19], 4
      %s195 = int_to_ptr.vmem [resolvable:$true] %s194
      %200 = dma.hbm_to_vmem [thread:$0]  %s193, 256, %s195, [#allocation18], 64, 64, 4
    $region89: #{tpu_custom_call.1} parent=1 // pred_fallthru
      _
    // Predicated region
    $region90: #{tpu_custom_call.1} parent=1 // pred_check
      _
    $region91: #{tpu_custom_call.1} parent=1 // pred_check_branch
      %202 = sbr.rel (0) target = $region93
    $region92: #{tpu_custom_call.1} parent=1 // pred_region
      %204 = vsyncadd [#allocation21], 0
      %s206 = sshll.u32 %s22, 4
      %s207 = int_to_ptr.hbm [resolvable:$true] %s206
      %s208 = sshll.u32 [#allocation20], 4
      %s209 = int_to_ptr.vmem [resolvable:$true] %s208
      %211 = dma.hbm_to_vmem [thread:$0]  %s207, 16, %s209, [#allocation21]
    $region93: #{tpu_custom_call.1} parent=1 // pred_fallthru
      _
    // Predicated region
    $region94: #{tpu_custom_call.1} parent=1 // pred_check
      _
    $region95: #{tpu_custom_call.1} parent=1 // pred_check_branch
      %213 = sbr.rel (0) target = $region97
    $region96: #{tpu_custom_call.1} parent=1 // pred_region
      _
    $region97: #{tpu_custom_call.1} parent=1 // pred_fallthru
      _
    // Predicated region
    $region98: #{tpu_custom_call.1} parent=1 // pred_check
      _
    $region99: #{tpu_custom_call.1} parent=1 // pred_check_branch
      %215 = sbr.rel (0) target = $region101
    $region100: #{tpu_custom_call.1} parent=1 // pred_region
      _
    $region101: #{tpu_custom_call.1} parent=1 // pred_fallthru
      _
    // Predicated region
    $region102: #{tpu_custom_call.1} parent=1 // pred_check
      _
    $region103: #{tpu_custom_call.1} parent=1 // pred_check_branch
      %217 = sbr.rel (0) target = $region105
    $region104: #{tpu_custom_call.1} parent=1 // pred_region
      _
    $region105: #{tpu_custom_call.1} parent=1 // pred_fallthru
      _
    // Predicated region
    $region106: #{tpu_custom_call.1} parent=1 // pred_check
      _
    $region107: #{tpu_custom_call.1} parent=1 // pred_check_branch
      %219 = sbr.rel (0) target = $region109
    $region108: #{tpu_custom_call.1} parent=1 // pred_region
      %221 = vsyncadd [#allocation21], 0
      %s223 = sshll.u32 %s26, 4
      %s224 = int_to_ptr.hbm [resolvable:$true] %s223
      %s225 = sshll.u32 [#allocation22], 4
      %s226 = int_to_ptr.vmem [resolvable:$true] %s225
      %228 = dma.hbm_to_vmem [thread:$0]  %s224, 16, %s226, [#allocation21]
    $region109: #{tpu_custom_call.1} parent=1 // pred_fallthru
      _
    // Predicated region
    $region110: #{tpu_custom_call.1} parent=1 // pred_check
      _
    $region111: #{tpu_custom_call.1} parent=1 // pred_check_branch
      %230 = sbr.rel (0) target = $region113
    $region112: #{tpu_custom_call.1} parent=1 // pred_region
      %232 = dma.done [#allocation3], 128
    $region113: #{tpu_custom_call.1} parent=1 // pred_fallthru
      _
    // Predicated region
    $region114: #{tpu_custom_call.1} parent=1 // pred_check
      _
    $region115: #{tpu_custom_call.1} parent=1 // pred_check_branch
      %234 = sbr.rel (0) target = $region117
    $region116: #{tpu_custom_call.1} parent=1 // pred_region
      %236 = dma.done [#allocation6], 128
    $region117: #{tpu_custom_call.1} parent=1 // pred_fallthru
      _
    // Predicated region
    $region118: #{tpu_custom_call.1} parent=1 // pred_check
      _
    $region119: #{tpu_custom_call.1} parent=1 // pred_check_branch
      %238 = sbr.rel (0) target = $region121
    $region120: #{tpu_custom_call.1} parent=1 // pred_region
      %240 = dma.done [#allocation6], 128
    $region121: #{tpu_custom_call.1} parent=1 // pred_fallthru
      _
    // Predicated region
    $region122: #{tpu_custom_call.1} parent=1 // pred_check
      _
    $region123: #{tpu_custom_call.1} parent=1 // pred_check_branch
      %242 = sbr.rel (0) target = $region125
    $region124: #{tpu_custom_call.1} parent=1 // pred_region
      %244 = dma.done [#allocation9], 256
    $region125: #{tpu_custom_call.1} parent=1 // pred_fallthru
      _
    // Predicated region
    $region126: #{tpu_custom_call.1} parent=1 // pred_check
      _
    $region127: #{tpu_custom_call.1} parent=1 // pred_check_branch
      %246 = sbr.rel (0) target = $region129
    $region128: #{tpu_custom_call.1} parent=1 // pred_region
      %248 = dma.done [#allocation9], 256
    $region129: #{tpu_custom_call.1} parent=1 // pred_fallthru
      _
    // Predicated region
    $region130: #{tpu_custom_call.1} parent=1 // pred_check
      _
    $region131: #{tpu_custom_call.1} parent=1 // pred_check_branch
      %250 = sbr.rel (0) target = $region133
    $region132: #{tpu_custom_call.1} parent=1 // pred_region
      %252 = dma.done [#allocation12], 256
    $region133: #{tpu_custom_call.1} parent=1 // pred_fallthru
      _
    // Predicated region
    $region134: #{tpu_custom_call.1} parent=1 // pred_check
      _
    $region135: #{tpu_custom_call.1} parent=1 // pred_check_branch
      %254 = sbr.rel (0) target = $region137
    $region136: #{tpu_custom_call.1} parent=1 // pred_region
      %256 = dma.done [#allocation12], 256
    $region137: #{tpu_custom_call.1} parent=1 // pred_fallthru
      _
    // Predicated region
    $region138: #{tpu_custom_call.1} parent=1 // pred_check
      _
    $region139: #{tpu_custom_call.1} parent=1 // pred_check_branch
      %258 = sbr.rel (0) target = $region141
    $region140: #{tpu_custom_call.1} parent=1 // pred_region
      %260 = dma.done [#allocation15], 256
    $region141: #{tpu_custom_call.1} parent=1 // pred_fallthru
      _
    // Predicated region
    $region142: #{tpu_custom_call.1} parent=1 // pred_check
      _
    $region143: #{tpu_custom_call.1} parent=1 // pred_check_branch
      %262 = sbr.rel (0) target = $region145
    $region144: #{tpu_custom_call.1} parent=1 // pred_region
      %264 = dma.done [#allocation15], 16
    $region145: #{tpu_custom_call.1} parent=1 // pred_fallthru
      _
    // Predicated region
    $region146: #{tpu_custom_call.1} parent=1 // pred_check
      _
    $region147: #{tpu_custom_call.1} parent=1 // pred_check_branch
      %266 = sbr.rel (0) target = $region149
    $region148: #{tpu_custom_call.1} parent=1 // pred_region
      %268 = dma.done [#allocation18], 16
    $region149: #{tpu_custom_call.1} parent=1 // pred_fallthru
      _
    // Predicated region
    $region150: #{tpu_custom_call.1} parent=1 // pred_check
      _
    $region151: #{tpu_custom_call.1} parent=1 // pred_check_branch
      %270 = sbr.rel (0) target = $region153
    $region152: #{tpu_custom_call.1} parent=1 // pred_region
      %272 = dma.done [#allocation18], 256
    $region153: #{tpu_custom_call.1} parent=1 // pred_fallthru
      _
    // Predicated region
    $region154: #{tpu_custom_call.1} parent=1 // pred_check
      _
    $region155: #{tpu_custom_call.1} parent=1 // pred_check_branch
      %274 = sbr.rel (0) target = $region157
    $region156: #{tpu_custom_call.1} parent=1 // pred_region
      %276 = dma.done [#allocation21], 16
    $region157: #{tpu_custom_call.1} parent=1 // pred_fallthru
      _
    // Predicated region
    $region158: #{tpu_custom_call.1} parent=1 // pred_check
      _
    $region159: #{tpu_custom_call.1} parent=1 // pred_check_branch
      %278 = sbr.rel (0) target = $region161
    $region160: #{tpu_custom_call.1} parent=1 // pred_region
      %280 = dma.done [#allocation21], 16
    $region161: #{tpu_custom_call.1} parent=1 // pred_fallthru
      _
    %v282 = vld [vmem:[%s0] sm:$0xff]
    %v283 = vld [vmem:[%s0 + $0x8] sm:$0xff]
    %v284 = vld [vmem:[#allocation2] sm:$0xf]
    %v285 = vld [vmem:[#allocation2 + $0x4] sm:$0xf]
    %v286 = vpack.c.bf16 %v283, %v282
    %v287 = vld [vmem:[%s7] sm:$0x1]
    %v289 = vperm.slane %v287, 0
    %v293 = vunpack.c.l.b16 %v284
    %v294 = vunpack.c.l.b16 %v285
    %v295 = vpack.c.b16 %v294, %v293
    %vm297 = vcmask 130048
    %v299 = vsel %vm297, %v286, 0
    %301 = vmatpush.bf16.msra.mxu0 0
    %302 = vmatpush.bf16.msra.mxu0 0
    %303 = vmatpush.bf16.msra.mxu0 0
    %304 = vmatpush.bf16.msra.mxu0 0
    %305 = vmatpush.bf16.msra.mxu0 0
    %306 = vmatpush.bf16.msra.mxu0 0
    %307 = vmatpush.bf16.msra.mxu0 0
    %308 = vmatpush.bf16.msra.mxu0 %v295
    %309 = vmatmul.bf16.gmra.mxu0 %v299
    %v310 = vpop.f32.mrf.mxu0
    %v311 = vadd.f32 %v289, %v310
    %v312 = vpop.f32.mrf.mxu0
    %v313 = vadd.f32 %v289, %v312
    %314 = vdwg.mxu0
    %v315 = vld [vmem:[#allocation5] sm:$0xf]
    %v316 = vld [vmem:[#allocation5 + $0x4] sm:$0xf]
    %v317 = vld [vmem:[%s8] sm:$0x1]
    %v319 = vperm.slane %v317, 0
    %v323 = vunpack.c.l.b16 %v315
    %v324 = vunpack.c.l.b16 %v316
    %v325 = vpack.c.b16 %v324, %v323
    %327 = vmatpush.bf16.msra.mxu0 0
    %328 = vmatpush.bf16.msra.mxu0 0
    %329 = vmatpush.bf16.msra.mxu0 0
    %330 = vmatpush.bf16.msra.mxu0 0
    %331 = vmatpush.bf16.msra.mxu0 0
    %332 = vmatpush.bf16.msra.mxu0 0
    %333 = vmatpush.bf16.msra.mxu0 0
    %334 = vmatpush.bf16.msra.mxu0 %v325
    %335 = vmatmul.bf16.gmra.mxu0 %v299
    %v336 = vpop.f32.mrf.mxu0
    %v337 = vadd.f32 %v319, %v336
    %v338 = vpop.f32.mrf.mxu0
    %v339 = vadd.f32 %v319, %v338
    %340 = vdwg.mxu0
    %v341 = vld [vmem:[#allocation7] sm:$0xf]
    %v342 = vld [vmem:[#allocation7 + $0x4] sm:$0xf]
    %v343 = vld [vmem:[%s9] sm:$0x1]
    %v345 = vperm.slane %v343, 0
    %v349 = vunpack.c.l.b16 %v341
    %v350 = vunpack.c.l.b16 %v342
    %v351 = vpack.c.b16 %v350, %v349
    %353 = vmatpush.bf16.msra.mxu0 0
    %354 = vmatpush.bf16.msra.mxu0 0
    %355 = vmatpush.bf16.msra.mxu0 0
    %356 = vmatpush.bf16.msra.mxu0 0
    %357 = vmatpush.bf16.msra.mxu0 0
    %358 = vmatpush.bf16.msra.mxu0 0
    %359 = vmatpush.bf16.msra.mxu0 0
    %360 = vmatpush.bf16.msra.mxu0 %v351
    %361 = vmatmul.bf16.gmra.mxu0 %v299
    %v362 = vpop.f32.mrf.mxu0
    %v363 = vadd.f32 %v345, %v362
    %v364 = vpop.f32.mrf.mxu0
    %v365 = vadd.f32 %v345, %v364
    %366 = vdwg.mxu0
    %v367 = vld [vmem:[%s4] sm:$0xf]
    %v368 = vld [vmem:[%s4 + $0x4] sm:$0xf]
    %v369 = vld [vmem:[%s4 + $0x8] sm:$0xf]
    %v370 = vld [vmem:[%s4 + $0xc] sm:$0xf]
    %v371 = vld [vmem:[%s5] sm:$0xf]
    %v372 = vld [vmem:[%s5 + $0x4] sm:$0xf]
    %v373 = vld [vmem:[%s5 + $0x8] sm:$0xf]
    %v374 = vld [vmem:[%s5 + $0xc] sm:$0xf]
    %v375 = vld [vmem:[%s6] sm:$0xf]
    %v376 = vld [vmem:[%s6 + $0x4] sm:$0xf]
    %v377 = vld [vmem:[%s6 + $0x8] sm:$0xf]
    %v378 = vld [vmem:[%s6 + $0xc] sm:$0xf]
    %v379 = vld [vmem:[%s10] sm:$0x1]
    %v381 = vperm.slane %v379, 0
    %v387 = vunpack.c.l.b16 %v367
    %v388 = vunpack.c.l.b16 %v368
    %v389 = vunpack.c.l.b16 %v369
    %v390 = vunpack.c.l.b16 %v370
    %v391 = vpack.c.b16 %v388, %v387
    %v392 = vpack.c.b16 %v390, %v389
    %vm395 = vcmask 261120
    %v397 = vsel %vm395, 0, 0
    %399 = vmatpush.bf16.msra.mxu0 0
    %400 = vmatpush.bf16.msra.mxu0 0
    %401 = vmatpush.bf16.msra.mxu0 0
    %402 = vmatpush.bf16.msra.mxu0 0
    %403 = vmatpush.bf16.msra.mxu0 0
    %404 = vmatpush.bf16.msra.mxu0 0
    %405 = vmatpush.bf16.msra.mxu0 %v392
    %406 = vmatpush.bf16.msra.mxu0 %v391
    %407 = vmatmul.bf16.gmra.mxu0 %v397
    %v408 = vpop.f32.mrf.mxu0
    %v409 = vadd.f32 0.0, %v408
    %v410 = vpop.f32.mrf.mxu0
    %411 = vdwg.mxu0
    %v416 = vunpack.c.l.b16 %v371
    %v417 = vunpack.c.l.b16 %v372
    %v418 = vunpack.c.l.b16 %v373
    %v419 = vunpack.c.l.b16 %v374
    %v420 = vpack.c.b16 %v417, %v416
    %v421 = vpack.c.b16 %v419, %v418
    %424 = vmatpush.bf16.msra.mxu0 0
    %425 = vmatpush.bf16.msra.mxu0 0
    %426 = vmatpush.bf16.msra.mxu0 0
    %427 = vmatpush.bf16.msra.mxu0 0
    %428 = vmatpush.bf16.msra.mxu0 0
    %429 = vmatpush.bf16.msra.mxu0 0
    %430 = vmatpush.bf16.msra.mxu0 %v421
    %431 = vmatpush.bf16.msra.mxu0 %v420
    %432 = vmatmul.bf16.gmra.mxu0 %v397
    %v433 = vpop.f32.mrf.mxu0
    %v434 = vadd.f32 0.0, %v433
    %v435 = vpop.f32.mrf.mxu0
    %436 = vdwg.mxu0
    %v441 = vunpack.c.l.b16 %v375
    %v442 = vunpack.c.l.b16 %v376
    %v443 = vunpack.c.l.b16 %v377
    %v444 = vunpack.c.l.b16 %v378
    %v445 = vpack.c.b16 %v442, %v441
    %v446 = vpack.c.b16 %v444, %v443
    %449 = vmatpush.bf16.msra.mxu0 0
    %450 = vmatpush.bf16.msra.mxu0 0
    %451 = vmatpush.bf16.msra.mxu0 0
    %452 = vmatpush.bf16.msra.mxu0 0
    %453 = vmatpush.bf16.msra.mxu0 0
    %454 = vmatpush.bf16.msra.mxu0 0
    %455 = vmatpush.bf16.msra.mxu0 %v446
    %456 = vmatpush.bf16.msra.mxu0 %v445
    %457 = vmatmul.bf16.gmra.mxu0 %v397
    %v458 = vpop.f32.mrf.mxu0
    %v459 = vadd.f32 %v381, %v458
    %v460 = vpop.f32.mrf.mxu0
    %461 = vdwg.mxu0
    %v462 = vadd.f32 %v311, %v409
    %v463 = vxor.u32 %v462, 2147483648
    %v464 = vmul.f32 %v463, 1.442695
    %v465 = vpow.pop %v464
    %v466 = vadd.f32 %v465, 1.0
    %v467 = vrcp.pop %v466
    %v468 = vmul.f32 %v466, %v467
    %v469 = vsub.f32 1.0, %v468
    %v470 = vmul.f32 %v467, %v469
    %v471 = vadd.f32 %v467, %v470
    %vm472 = vweird.f32 %v466
    %vm473 = vweird.f32 %v467
    %vm474 = vmor %vm472, %vm473
    %v475 = vsel %vm474, %v467, %v471
    %v476 = vand.u32 2147483647, %v466
    %vm477 = vcmp.eq.f32.partialorder %v476, 8.507059e+37
    %v478 = vand.u32 %v466, 2147483648
    %v479 = vor.u32 1.1754944e-38, %v478
    %v480 = vsel %vm477, %v479, %v475
    %v481 = vmul.f32 1.0, %v480
    %v482 = vadd.f32 %v337, %v434
    %v483 = vxor.u32 %v482, 2147483648
    %v484 = vmul.f32 %v483, 1.442695
    %v485 = vpow.pop %v484
    %v486 = vadd.f32 %v485, 1.0
    %v487 = vrcp.pop %v486
    %v488 = vmul.f32 %v486, %v487
    %v489 = vsub.f32 1.0, %v488
    %v490 = vmul.f32 %v487, %v489
    %v491 = vadd.f32 %v487, %v490
    %vm492 = vweird.f32 %v486
    %vm493 = vweird.f32 %v487
    %vm494 = vmor %vm492, %vm493
    %v495 = vsel %vm494, %v487, %v491
    %v496 = vand.u32 2147483647, %v486
    %vm497 = vcmp.eq.f32.partialorder %v496, 8.507059e+37
    %v498 = vand.u32 %v486, 2147483648
    %v499 = vor.u32 1.1754944e-38, %v498
    %v500 = vsel %vm497, %v499, %v495
    %v501 = vmul.f32 1.0, %v500
    %v502 = vmul.f32 %v481, %v459
    %v503 = vadd.f32 %v363, %v502
    %v504 = vtanh.pop %v503
    %v505 = vsub.f32 1.0, %v501
    %v506 = vmul.f32 %v505, %v504
    %v507 = vmul.f32 %v501, 0.0
    %v508 = vadd.f32 %v506, %v507
    %v509 = vpack.c.bf16 %v508, %v508
    %v511 = vsel %vm395, %v509, 0
    %513 = vmatpush.bf16.msra.mxu0 0
    %514 = vmatpush.bf16.msra.mxu0 0
    %515 = vmatpush.bf16.msra.mxu0 0
    %516 = vmatpush.bf16.msra.mxu0 0
    %517 = vmatpush.bf16.msra.mxu0 0
    %518 = vmatpush.bf16.msra.mxu0 0
    %519 = vmatpush.bf16.msra.mxu0 %v392
    %520 = vmatpush.bf16.msra.mxu0 %v391
    %521 = vmatmul.bf16.gmra.mxu0 %v511
    %v522 = vpop.f32.mrf.mxu0
    %v523 = vadd.f32 0.0, %v522
    %v524 = vpop.f32.mrf.mxu0
    %525 = vdwg.mxu0
    %526 = vmatpush.bf16.msra.mxu0 0
    %527 = vmatpush.bf16.msra.mxu0 0
    %528 = vmatpush.bf16.msra.mxu0 0
    %529 = vmatpush.bf16.msra.mxu0 0
    %530 = vmatpush.bf16.msra.mxu0 0
    %531 = vmatpush.bf16.msra.mxu0 0
    %532 = vmatpush.bf16.msra.mxu0 %v421
    %533 = vmatpush.bf16.msra.mxu0 %v420
    %534 = vmatmul.bf16.gmra.mxu0 %v511
    %v535 = vpop.f32.mrf.mxu0
    %v536 = vadd.f32 0.0, %v535
    %v537 = vpop.f32.mrf.mxu0
    %538 = vdwg.mxu0
    %539 = vmatpush.bf16.msra.mxu0 0
    %540 = vmatpush.bf16.msra.mxu0 0
    %541 = vmatpush.bf16.msra.mxu0 0
    %542 = vmatpush.bf16.msra.mxu0 0
    %543 = vmatpush.bf16.msra.mxu0 0
    %544 = vmatpush.bf16.msra.mxu0 0
    %545 = vmatpush.bf16.msra.mxu0 %v446
    %546 = vmatpush.bf16.msra.mxu0 %v445
    %547 = vmatmul.bf16.gmra.mxu0 %v511
    %v548 = vpop.f32.mrf.mxu0
    %v549 = vadd.f32 %v381, %v548
    %v550 = vpop.f32.mrf.mxu0
    %551 = vdwg.mxu0
    %v553 = vrot.slane %v523, 6
    %v555 = vadd.f32 %v311, %v553
    %v556 = vxor.u32 %v555, 2147483648
    %v557 = vmul.f32 %v556, 1.442695
    %v558 = vpow.pop %v557
    %v559 = vadd.f32 %v558, 1.0
    %v560 = vrcp.pop %v559
    %v561 = vmul.f32 %v559, %v560
    %v562 = vsub.f32 1.0, %v561
    %v563 = vmul.f32 %v560, %v562
    %v564 = vadd.f32 %v560, %v563
    %vm565 = vweird.f32 %v559
    %vm566 = vweird.f32 %v560
    %vm567 = vmor %vm565, %vm566
    %v568 = vsel %vm567, %v560, %v564
    %v569 = vand.u32 2147483647, %v559
    %vm570 = vcmp.eq.f32.partialorder %v569, 8.507059e+37
    %v571 = vand.u32 %v559, 2147483648
    %v572 = vor.u32 1.1754944e-38, %v571
    %v573 = vsel %vm570, %v572, %v568
    %v574 = vmul.f32 1.0, %v573
    %v576 = vrot.slane %v536, 6
    %v578 = vadd.f32 %v337, %v576
    %v579 = vxor.u32 %v578, 2147483648
    %v580 = vmul.f32 %v579, 1.442695
    %v581 = vpow.pop %v580
    %v582 = vadd.f32 %v581, 1.0
    %v583 = vrcp.pop %v582
    %v584 = vmul.f32 %v582, %v583
    %v585 = vsub.f32 1.0, %v584
    %v586 = vmul.f32 %v583, %v585
    %v587 = vadd.f32 %v583, %v586
    %vm588 = vweird.f32 %v582
    %vm589 = vweird.f32 %v583
    %vm590 = vmor %vm588, %vm589
    %v591 = vsel %vm590, %v583, %v587
    %v592 = vand.u32 2147483647, %v582
    %vm593 = vcmp.eq.f32.partialorder %v592, 8.507059e+37
    %v594 = vand.u32 %v582, 2147483648
    %v595 = vor.u32 1.1754944e-38, %v594
    %v596 = vsel %vm593, %v595, %v591
    %v597 = vmul.f32 1.0, %v596
    %v599 = vrot.slane %v549, 6
    %v601 = vmul.f32 %v574, %v599
    %v602 = vadd.f32 %v363, %v601
    %v603 = vtanh.pop %v602
    %v604 = vsub.f32 1.0, %v597
    %v605 = vmul.f32 %v604, %v603
    %v607 = vrot.slane %v508, 6
    %v609 = vmul.f32 %v597, %v607
    %v610 = vadd.f32 %v605, %v609
    %v611 = vpack.c.bf16 %v610, %v610
    %v613 = vrot.slane %v611, 1
    %v615 = vsel %vm395, %v613, 0
    %617 = vmatpush.bf16.msra.mxu0 0
    %618 = vmatpush.bf16.msra.mxu0 0
    %619 = vmatpush.bf16.msra.mxu0 0
    %620 = vmatpush.bf16.msra.mxu0 0
    %621 = vmatpush.bf16.msra.mxu0 0
    %622 = vmatpush.bf16.msra.mxu0 0
    %623 = vmatpush.bf16.msra.mxu0 %v392
    %624 = vmatpush.bf16.msra.mxu0 %v391
    %625 = vmatmul.bf16.gmra.mxu0 %v615
    %v626 = vpop.f32.mrf.mxu0
    %v627 = vadd.f32 0.0, %v626
    %v628 = vpop.f32.mrf.mxu0
    %629 = vdwg.mxu0
    %630 = vmatpush.bf16.msra.mxu0 0
    %631 = vmatpush.bf16.msra.mxu0 0
    %632 = vmatpush.bf16.msra.mxu0 0
    %633 = vmatpush.bf16.msra.mxu0 0
    %634 = vmatpush.bf16.msra.mxu0 0
    %635 = vmatpush.bf16.msra.mxu0 0
    %636 = vmatpush.bf16.msra.mxu0 %v421
    %637 = vmatpush.bf16.msra.mxu0 %v420
    %638 = vmatmul.bf16.gmra.mxu0 %v615
    %v639 = vpop.f32.mrf.mxu0
    %v640 = vadd.f32 0.0, %v639
    %v641 = vpop.f32.mrf.mxu0
    %642 = vdwg.mxu0
    %643 = vmatpush.bf16.msra.mxu0 0
    %644 = vmatpush.bf16.msra.mxu0 0
    %645 = vmatpush.bf16.msra.mxu0 0
    %646 = vmatpush.bf16.msra.mxu0 0
    %647 = vmatpush.bf16.msra.mxu0 0
    %648 = vmatpush.bf16.msra.mxu0 0
    %649 = vmatpush.bf16.msra.mxu0 %v446
    %650 = vmatpush.bf16.msra.mxu0 %v445
    %651 = vmatmul.bf16.gmra.mxu0 %v615
    %v652 = vpop.f32.mrf.mxu0
    %v653 = vadd.f32 %v381, %v652
    %v654 = vpop.f32.mrf.mxu0
    %655 = vdwg.mxu0
    %v657 = vrot.slane %v627, 4
    %v659 = vadd.f32 %v311, %v657
    %v660 = vxor.u32 %v659, 2147483648
    %v661 = vmul.f32 %v660, 1.442695
    %v662 = vpow.pop %v661
    %v663 = vadd.f32 %v662, 1.0
    %v664 = vrcp.pop %v663
    %v665 = vmul.f32 %v663, %v664
    %v666 = vsub.f32 1.0, %v665
    %v667 = vmul.f32 %v664, %v666
    %v668 = vadd.f32 %v664, %v667
    %vm669 = vweird.f32 %v663
    %vm670 = vweird.f32 %v664
    %vm671 = vmor %vm669, %vm670
    %v672 = vsel %vm671, %v664, %v668
    %v673 = vand.u32 2147483647, %v663
    %vm674 = vcmp.eq.f32.partialorder %v673, 8.507059e+37
    %v675 = vand.u32 %v663, 2147483648
    %v676 = vor.u32 1.1754944e-38, %v675
    %v677 = vsel %vm674, %v676, %v672
    %v678 = vmul.f32 1.0, %v677
    %v680 = vrot.slane %v640, 4
    %v682 = vadd.f32 %v337, %v680
    %v683 = vxor.u32 %v682, 2147483648
    %v684 = vmul.f32 %v683, 1.442695
    %v685 = vpow.pop %v684
    %v686 = vadd.f32 %v685, 1.0
    %v687 = vrcp.pop %v686
    %v688 = vmul.f32 %v686, %v687
    %v689 = vsub.f32 1.0, %v688
    %v690 = vmul.f32 %v687, %v689
    %v691 = vadd.f32 %v687, %v690
    %vm692 = vweird.f32 %v686
    %vm693 = vweird.f32 %v687
    %vm694 = vmor %vm692, %vm693
    %v695 = vsel %vm694, %v687, %v691
    %v696 = vand.u32 2147483647, %v686
    %vm697 = vcmp.eq.f32.partialorder %v696, 8.507059e+37
    %v698 = vand.u32 %v686, 2147483648
    %v699 = vor.u32 1.1754944e-38, %v698
    %v700 = vsel %vm697, %v699, %v695
    %v701 = vmul.f32 1.0, %v700
    %v703 = vrot.slane %v653, 4
    %v705 = vmul.f32 %v678, %v703
    %v706 = vadd.f32 %v363, %v705
    %v707 = vtanh.pop %v706
    %v708 = vsub.f32 1.0, %v701
    %v709 = vmul.f32 %v708, %v707
    %v711 = vrot.slane %v610, 6
    %v713 = vmul.f32 %v701, %v711
    %v714 = vadd.f32 %v709, %v713
    %v715 = vpack.c.bf16 %v714, %v714
    %v717 = vrot.slane %v715, 2
    %v719 = vsel %vm395, %v717, 0
    %721 = vmatpush.bf16.msra.mxu0 0
    %722 = vmatpush.bf16.msra.mxu0 0
    %723 = vmatpush.bf16.msra.mxu0 0
    %724 = vmatpush.bf16.msra.mxu0 0
    %725 = vmatpush.bf16.msra.mxu0 0
    %726 = vmatpush.bf16.msra.mxu0 0
    %727 = vmatpush.bf16.msra.mxu0 %v392
    %728 = vmatpush.bf16.msra.mxu0 %v391
    %729 = vmatmul.bf16.gmra.mxu0 %v719
    %v730 = vpop.f32.mrf.mxu0
    %v731 = vadd.f32 0.0, %v730
    %v732 = vpop.f32.mrf.mxu0
    %733 = vdwg.mxu0
    %734 = vmatpush.bf16.msra.mxu0 0
    %735 = vmatpush.bf16.msra.mxu0 0
    %736 = vmatpush.bf16.msra.mxu0 0
    %737 = vmatpush.bf16.msra.mxu0 0
    %738 = vmatpush.bf16.msra.mxu0 0
    %739 = vmatpush.bf16.msra.mxu0 0
    %740 = vmatpush.bf16.msra.mxu0 %v421
    %741 = vmatpush.bf16.msra.mxu0 %v420
    %742 = vmatmul.bf16.gmra.mxu0 %v719
    %v743 = vpop.f32.mrf.mxu0
    %v744 = vadd.f32 0.0, %v743
    %v745 = vpop.f32.mrf.mxu0
    %746 = vdwg.mxu0
    %747 = vmatpush.bf16.msra.mxu0 0
    %748 = vmatpush.bf16.msra.mxu0 0
    %749 = vmatpush.bf16.msra.mxu0 0
    %750 = vmatpush.bf16.msra.mxu0 0
    %751 = vmatpush.bf16.msra.mxu0 0
    %752 = vmatpush.bf16.msra.mxu0 0
    %753 = vmatpush.bf16.msra.mxu0 %v446
    %754 = vmatpush.bf16.msra.mxu0 %v445
    %755 = vmatmul.bf16.gmra.mxu0 %v719
    %v756 = vpop.f32.mrf.mxu0
    %v757 = vadd.f32 %v381, %v756
    %v758 = vpop.f32.mrf.mxu0
    %759 = vdwg.mxu0
    %v761 = vrot.slane %v731, 2
    %v763 = vadd.f32 %v311, %v761
    %v764 = vxor.u32 %v763, 2147483648
    %v765 = vmul.f32 %v764, 1.442695
    %v766 = vpow.pop %v765
    %v767 = vadd.f32 %v766, 1.0
    %v768 = vrcp.pop %v767
    %v769 = vmul.f32 %v767, %v768
    %v770 = vsub.f32 1.0, %v769
    %v771 = vmul.f32 %v768, %v770
    %v772 = vadd.f32 %v768, %v771
    %vm773 = vweird.f32 %v767
    %vm774 = vweird.f32 %v768
    %vm775 = vmor %vm773, %vm774
    %v776 = vsel %vm775, %v768, %v772
    %v777 = vand.u32 2147483647, %v767
    %vm778 = vcmp.eq.f32.partialorder %v777, 8.507059e+37
    %v779 = vand.u32 %v767, 2147483648
    %v780 = vor.u32 1.1754944e-38, %v779
    %v781 = vsel %vm778, %v780, %v776
    %v782 = vmul.f32 1.0, %v781
    %v784 = vrot.slane %v744, 2
    %v786 = vadd.f32 %v337, %v784
    %v787 = vxor.u32 %v786, 2147483648
    %v788 = vmul.f32 %v787, 1.442695
    %v789 = vpow.pop %v788
    %v790 = vadd.f32 %v789, 1.0
    %v791 = vrcp.pop %v790
    %v792 = vmul.f32 %v790, %v791
    %v793 = vsub.f32 1.0, %v792
    %v794 = vmul.f32 %v791, %v793
    %v795 = vadd.f32 %v791, %v794
    %vm796 = vweird.f32 %v790
    %vm797 = vweird.f32 %v791
    %vm798 = vmor %vm796, %vm797
    %v799 = vsel %vm798, %v791, %v795
    %v800 = vand.u32 2147483647, %v790
    %vm801 = vcmp.eq.f32.partialorder %v800, 8.507059e+37
    %v802 = vand.u32 %v790, 2147483648
    %v803 = vor.u32 1.1754944e-38, %v802
    %v804 = vsel %vm801, %v803, %v799
    %v805 = vmul.f32 1.0, %v804
    %v807 = vrot.slane %v757, 2
    %v809 = vmul.f32 %v782, %v807
    %v810 = vadd.f32 %v363, %v809
    %v811 = vtanh.pop %v810
    %v812 = vsub.f32 1.0, %v805
    %v813 = vmul.f32 %v812, %v811
    %v815 = vrot.slane %v714, 6
    %v817 = vmul.f32 %v805, %v815
    %v818 = vadd.f32 %v813, %v817
    %v819 = vpack.c.bf16 %v818, %v818
    %v821 = vrot.slane %v819, 3
    %v823 = vsel %vm395, %v821, 0
    %825 = vmatpush.bf16.msra.mxu0 0
    %826 = vmatpush.bf16.msra.mxu0 0
    %827 = vmatpush.bf16.msra.mxu0 0
    %828 = vmatpush.bf16.msra.mxu0 0
    %829 = vmatpush.bf16.msra.mxu0 0
    %830 = vmatpush.bf16.msra.mxu0 0
    %831 = vmatpush.bf16.msra.mxu0 %v392
    %832 = vmatpush.bf16.msra.mxu0 %v391
    %833 = vmatmul.bf16.gmra.mxu0 %v823
    %v834 = vpop.f32.mrf.mxu0
    %v835 = vadd.f32 0.0, %v834
    %v836 = vpop.f32.mrf.mxu0
    %837 = vdwg.mxu0
    %838 = vmatpush.bf16.msra.mxu0 0
    %839 = vmatpush.bf16.msra.mxu0 0
    %840 = vmatpush.bf16.msra.mxu0 0
    %841 = vmatpush.bf16.msra.mxu0 0
    %842 = vmatpush.bf16.msra.mxu0 0
    %843 = vmatpush.bf16.msra.mxu0 0
    %844 = vmatpush.bf16.msra.mxu0 %v421
    %845 = vmatpush.bf16.msra.mxu0 %v420
    %846 = vmatmul.bf16.gmra.mxu0 %v823
    %v847 = vpop.f32.mrf.mxu0
    %v848 = vadd.f32 0.0, %v847
    %v849 = vpop.f32.mrf.mxu0
    %850 = vdwg.mxu0
    %851 = vmatpush.bf16.msra.mxu0 0
    %852 = vmatpush.bf16.msra.mxu0 0
    %853 = vmatpush.bf16.msra.mxu0 0
    %854 = vmatpush.bf16.msra.mxu0 0
    %855 = vmatpush.bf16.msra.mxu0 0
    %856 = vmatpush.bf16.msra.mxu0 0
    %857 = vmatpush.bf16.msra.mxu0 %v446
    %858 = vmatpush.bf16.msra.mxu0 %v445
    %859 = vmatmul.bf16.gmra.mxu0 %v823
    %v860 = vpop.f32.mrf.mxu0
    %v861 = vadd.f32 %v381, %v860
    %v862 = vpop.f32.mrf.mxu0
    %863 = vdwg.mxu0
    %v864 = vadd.f32 %v313, %v835
    %v865 = vxor.u32 %v864, 2147483648
    %v866 = vmul.f32 %v865, 1.442695
    %v867 = vpow.pop %v866
    %v868 = vadd.f32 %v867, 1.0
    %v869 = vrcp.pop %v868
    %v870 = vmul.f32 %v868, %v869
    %v871 = vsub.f32 1.0, %v870
    %v872 = vmul.f32 %v869, %v871
    %v873 = vadd.f32 %v869, %v872
    %vm874 = vweird.f32 %v868
    %vm875 = vweird.f32 %v869
    %vm876 = vmor %vm874, %vm875
    %v877 = vsel %vm876, %v869, %v873
    %v878 = vand.u32 2147483647, %v868
    %vm879 = vcmp.eq.f32.partialorder %v878, 8.507059e+37
    %v880 = vand.u32 %v868, 2147483648
    %v881 = vor.u32 1.1754944e-38, %v880
    %v882 = vsel %vm879, %v881, %v877
    %v883 = vmul.f32 1.0, %v882
    %v884 = vadd.f32 %v339, %v848
    %v885 = vxor.u32 %v884, 2147483648
    %v886 = vmul.f32 %v885, 1.442695
    %v887 = vpow.pop %v886
    %v888 = vadd.f32 %v887, 1.0
    %v889 = vrcp.pop %v888
    %v890 = vmul.f32 %v888, %v889
    %v891 = vsub.f32 1.0, %v890
    %v892 = vmul.f32 %v889, %v891
    %v893 = vadd.f32 %v889, %v892
    %vm894 = vweird.f32 %v888
    %vm895 = vweird.f32 %v889
    %vm896 = vmor %vm894, %vm895
    %v897 = vsel %vm896, %v889, %v893
    %v898 = vand.u32 2147483647, %v888
    %vm899 = vcmp.eq.f32.partialorder %v898, 8.507059e+37
    %v900 = vand.u32 %v888, 2147483648
    %v901 = vor.u32 1.1754944e-38, %v900
    %v902 = vsel %vm899, %v901, %v897
    %v903 = vmul.f32 1.0, %v902
    %v904 = vmul.f32 %v883, %v861
    %v905 = vadd.f32 %v365, %v904
    %v906 = vtanh.pop %v905
    %v907 = vsub.f32 1.0, %v903
    %v908 = vmul.f32 %v907, %v906
    %v910 = vrot.slane %v818, 6
    %v912 = vmul.f32 %v903, %v910
    %v913 = vadd.f32 %v908, %v912
    %v914 = vpack.c.bf16 %v913, %v913
    %v916 = vsel %vm395, %v914, 0
    %918 = vmatpush.bf16.msra.mxu0 0
    %919 = vmatpush.bf16.msra.mxu0 0
    %920 = vmatpush.bf16.msra.mxu0 0
    %921 = vmatpush.bf16.msra.mxu0 0
    %922 = vmatpush.bf16.msra.mxu0 0
    %923 = vmatpush.bf16.msra.mxu0 0
    %924 = vmatpush.bf16.msra.mxu0 %v392
    %925 = vmatpush.bf16.msra.mxu0 %v391
    %926 = vmatmul.bf16.gmra.mxu0 %v916
    %v927 = vpop.f32.mrf.mxu0
    %v928 = vadd.f32 0.0, %v927
    %v929 = vpop.f32.mrf.mxu0
    %930 = vdwg.mxu0
    %931 = vmatpush.bf16.msra.mxu0 0
    %932 = vmatpush.bf16.msra.mxu0 0
    %933 = vmatpush.bf16.msra.mxu0 0
    %934 = vmatpush.bf16.msra.mxu0 0
    %935 = vmatpush.bf16.msra.mxu0 0
    %936 = vmatpush.bf16.msra.mxu0 0
    %937 = vmatpush.bf16.msra.mxu0 %v421
    %938 = vmatpush.bf16.msra.mxu0 %v420
    %939 = vmatmul.bf16.gmra.mxu0 %v916
    %v940 = vpop.f32.mrf.mxu0
    %v941 = vadd.f32 0.0, %v940
    %v942 = vpop.f32.mrf.mxu0
    %943 = vdwg.mxu0
    %944 = vmatpush.bf16.msra.mxu0 0
    %945 = vmatpush.bf16.msra.mxu0 0
    %946 = vmatpush.bf16.msra.mxu0 0
    %947 = vmatpush.bf16.msra.mxu0 0
    %948 = vmatpush.bf16.msra.mxu0 0
    %949 = vmatpush.bf16.msra.mxu0 0
    %950 = vmatpush.bf16.msra.mxu0 %v446
    %951 = vmatpush.bf16.msra.mxu0 %v445
    %952 = vmatmul.bf16.gmra.mxu0 %v916
    %v953 = vpop.f32.mrf.mxu0
    %v954 = vadd.f32 %v381, %v953
    %v955 = vpop.f32.mrf.mxu0
    %956 = vdwg.mxu0
    %v958 = vrot.slane %v928, 6
    %v960 = vadd.f32 %v313, %v958
    %v961 = vxor.u32 %v960, 2147483648
    %v962 = vmul.f32 %v961, 1.442695
    %v963 = vpow.pop %v962
    %v964 = vadd.f32 %v963, 1.0
    %v965 = vrcp.pop %v964
    %v966 = vmul.f32 %v964, %v965
    %v967 = vsub.f32 1.0, %v966
    %v968 = vmul.f32 %v965, %v967
    %v969 = vadd.f32 %v965, %v968
    %vm970 = vweird.f32 %v964
    %vm971 = vweird.f32 %v965
    %vm972 = vmor %vm970, %vm971
    %v973 = vsel %vm972, %v965, %v969
    %v974 = vand.u32 2147483647, %v964
    %vm975 = vcmp.eq.f32.partialorder %v974, 8.507059e+37
    %v976 = vand.u32 %v964, 2147483648
    %v977 = vor.u32 1.1754944e-38, %v976
    %v978 = vsel %vm975, %v977, %v973
    %v979 = vmul.f32 1.0, %v978
    %v981 = vrot.slane %v941, 6
    %v983 = vadd.f32 %v339, %v981
    %v984 = vxor.u32 %v983, 2147483648
    %v985 = vmul.f32 %v984, 1.442695
    %v986 = vpow.pop %v985
    %v987 = vadd.f32 %v986, 1.0
    %v988 = vrcp.pop %v987
    %v989 = vmul.f32 %v987, %v988
    %v990 = vsub.f32 1.0, %v989
    %v991 = vmul.f32 %v988, %v990
    %v992 = vadd.f32 %v988, %v991
    %vm993 = vweird.f32 %v987
    %vm994 = vweird.f32 %v988
    %vm995 = vmor %vm993, %vm994
    %v996 = vsel %vm995, %v988, %v992
    %v997 = vand.u32 2147483647, %v987
    %vm998 = vcmp.eq.f32.partialorder %v997, 8.507059e+37
    %v999 = vand.u32 %v987, 2147483648
    %v1000 = vor.u32 1.1754944e-38, %v999
    %v1001 = vsel %vm998, %v1000, %v996
    %v1002 = vmul.f32 1.0, %v1001
    %v1004 = vrot.slane %v954, 6
    %v1006 = vmul.f32 %v979, %v1004
    %v1007 = vadd.f32 %v365, %v1006
    %v1008 = vtanh.pop %v1007
    %v1009 = vsub.f32 1.0, %v1002
    %v1010 = vmul.f32 %v1009, %v1008
    %v1012 = vrot.slane %v913, 6
    %v1014 = vmul.f32 %v1002, %v1012
    %v1015 = vadd.f32 %v1010, %v1014
    %v1016 = vpack.c.bf16 %v1015, %v1015
    %v1018 = vrot.slane %v1016, 1
    %v1020 = vsel %vm395, %v1018, 0
    %1022 = vmatpush.bf16.msra.mxu0 0
    %1023 = vmatpush.bf16.msra.mxu0 0
    %1024 = vmatpush.bf16.msra.mxu0 0
    %1025 = vmatpush.bf16.msra.mxu0 0
    %1026 = vmatpush.bf16.msra.mxu0 0
    %1027 = vmatpush.bf16.msra.mxu0 0
    %1028 = vmatpush.bf16.msra.mxu0 %v392
    %1029 = vmatpush.bf16.msra.mxu0 %v391
    %1030 = vmatmul.bf16.gmra.mxu0 %v1020
    %v1031 = vpop.f32.mrf.mxu0
    %v1032 = vadd.f32 0.0, %v1031
    %v1033 = vpop.f32.mrf.mxu0
    %1034 = vdwg.mxu0
    %1035 = vmatpush.bf16.msra.mxu0 0
    %1036 = vmatpush.bf16.msra.mxu0 0
    %1037 = vmatpush.bf16.msra.mxu0 0
    %1038 = vmatpush.bf16.msra.mxu0 0
    %1039 = vmatpush.bf16.msra.mxu0 0
    %1040 = vmatpush.bf16.msra.mxu0 0
    %1041 = vmatpush.bf16.msra.mxu0 %v421
    %1042 = vmatpush.bf16.msra.mxu0 %v420
    %1043 = vmatmul.bf16.gmra.mxu0 %v1020
    %v1044 = vpop.f32.mrf.mxu0
    %v1045 = vadd.f32 0.0, %v1044
    %v1046 = vpop.f32.mrf.mxu0
    %1047 = vdwg.mxu0
    %1048 = vmatpush.bf16.msra.mxu0 0
    %1049 = vmatpush.bf16.msra.mxu0 0
    %1050 = vmatpush.bf16.msra.mxu0 0
    %1051 = vmatpush.bf16.msra.mxu0 0
    %1052 = vmatpush.bf16.msra.mxu0 0
    %1053 = vmatpush.bf16.msra.mxu0 0
    %1054 = vmatpush.bf16.msra.mxu0 %v446
    %1055 = vmatpush.bf16.msra.mxu0 %v445
    %1056 = vmatmul.bf16.gmra.mxu0 %v1020
    %v1057 = vpop.f32.mrf.mxu0
    %v1058 = vadd.f32 %v381, %v1057
    %v1059 = vpop.f32.mrf.mxu0
    %1060 = vdwg.mxu0
    %v1062 = vrot.slane %v1032, 4
    %v1064 = vadd.f32 %v313, %v1062
    %v1065 = vxor.u32 %v1064, 2147483648
    %v1066 = vmul.f32 %v1065, 1.442695
    %v1067 = vpow.pop %v1066
    %v1068 = vadd.f32 %v1067, 1.0
    %v1069 = vrcp.pop %v1068
    %v1070 = vmul.f32 %v1068, %v1069
    %v1071 = vsub.f32 1.0, %v1070
    %v1072 = vmul.f32 %v1069, %v1071
    %v1073 = vadd.f32 %v1069, %v1072
    %vm1074 = vweird.f32 %v1068
    %vm1075 = vweird.f32 %v1069
    %vm1076 = vmor %vm1074, %vm1075
    %v1077 = vsel %vm1076, %v1069, %v1073
    %v1078 = vand.u32 2147483647, %v1068
    %vm1079 = vcmp.eq.f32.partialorder %v1078, 8.507059e+37
    %v1080 = vand.u32 %v1068, 2147483648
    %v1081 = vor.u32 1.1754944e-38, %v1080
    %v1082 = vsel %vm1079, %v1081, %v1077
    %v1083 = vmul.f32 1.0, %v1082
    %v1085 = vrot.slane %v1045, 4
    %v1087 = vadd.f32 %v339, %v1085
    %v1088 = vxor.u32 %v1087, 2147483648
    %v1089 = vmul.f32 %v1088, 1.442695
    %v1090 = vpow.pop %v1089
    %v1091 = vadd.f32 %v1090, 1.0
    %v1092 = vrcp.pop %v1091
    %v1093 = vmul.f32 %v1091, %v1092
    %v1094 = vsub.f32 1.0, %v1093
    %v1095 = vmul.f32 %v1092, %v1094
    %v1096 = vadd.f32 %v1092, %v1095
    %vm1097 = vweird.f32 %v1091
    %vm1098 = vweird.f32 %v1092
    %vm1099 = vmor %vm1097, %vm1098
    %v1100 = vsel %vm1099, %v1092, %v1096
    %v1101 = vand.u32 2147483647, %v1091
    %vm1102 = vcmp.eq.f32.partialorder %v1101, 8.507059e+37
    %v1103 = vand.u32 %v1091, 2147483648
    %v1104 = vor.u32 1.1754944e-38, %v1103
    %v1105 = vsel %vm1102, %v1104, %v1100
    %v1106 = vmul.f32 1.0, %v1105
    %v1108 = vrot.slane %v1058, 4
    %v1110 = vmul.f32 %v1083, %v1108
    %v1111 = vadd.f32 %v365, %v1110
    %v1112 = vtanh.pop %v1111
    %v1113 = vsub.f32 1.0, %v1106
    %v1114 = vmul.f32 %v1113, %v1112
    %v1116 = vrot.slane %v1015, 6
    %v1118 = vmul.f32 %v1106, %v1116
    %v1119 = vadd.f32 %v1114, %v1118
    %v1120 = vpack.c.bf16 %v1119, %v1119
    %v1122 = vrot.slane %v1120, 2
    %v1124 = vsel %vm395, %v1122, 0
    %1126 = vmatpush.bf16.msra.mxu0 0
    %1127 = vmatpush.bf16.msra.mxu0 0
    %1128 = vmatpush.bf16.msra.mxu0 0
    %1129 = vmatpush.bf16.msra.mxu0 0
    %1130 = vmatpush.bf16.msra.mxu0 0
    %1131 = vmatpush.bf16.msra.mxu0 0
    %1132 = vmatpush.bf16.msra.mxu0 %v392
    %1133 = vmatpush.bf16.msra.mxu0 %v391
    %1134 = vmatmul.bf16.gmra.mxu0 %v1124
    %v1135 = vpop.f32.mrf.mxu0
    %v1136 = vadd.f32 0.0, %v1135
    %v1137 = vpop.f32.mrf.mxu0
    %1138 = vdwg.mxu0
    %1139 = vmatpush.bf16.msra.mxu0 0
    %1140 = vmatpush.bf16.msra.mxu0 0
    %1141 = vmatpush.bf16.msra.mxu0 0
    %1142 = vmatpush.bf16.msra.mxu0 0
    %1143 = vmatpush.bf16.msra.mxu0 0
    %1144 = vmatpush.bf16.msra.mxu0 0
    %1145 = vmatpush.bf16.msra.mxu0 %v421
    %1146 = vmatpush.bf16.msra.mxu0 %v420
    %1147 = vmatmul.bf16.gmra.mxu0 %v1124
    %v1148 = vpop.f32.mrf.mxu0
    %v1149 = vadd.f32 0.0, %v1148
    %v1150 = vpop.f32.mrf.mxu0
    %1151 = vdwg.mxu0
    %1152 = vmatpush.bf16.msra.mxu0 0
    %1153 = vmatpush.bf16.msra.mxu0 0
    %1154 = vmatpush.bf16.msra.mxu0 0
    %1155 = vmatpush.bf16.msra.mxu0 0
    %1156 = vmatpush.bf16.msra.mxu0 0
    %1157 = vmatpush.bf16.msra.mxu0 0
    %1158 = vmatpush.bf16.msra.mxu0 %v446
    %1159 = vmatpush.bf16.msra.mxu0 %v445
    %1160 = vmatmul.bf16.gmra.mxu0 %v1124
    %v1161 = vpop.f32.mrf.mxu0
    %v1162 = vadd.f32 %v381, %v1161
    %v1163 = vpop.f32.mrf.mxu0
    %1164 = vdwg.mxu0
    %v1166 = vrot.slane %v1136, 2
    %v1168 = vadd.f32 %v313, %v1166
    %v1169 = vxor.u32 %v1168, 2147483648
    %v1170 = vmul.f32 %v1169, 1.442695
    %v1171 = vpow.pop %v1170
    %v1172 = vadd.f32 %v1171, 1.0
    %v1173 = vrcp.pop %v1172
    %v1174 = vmul.f32 %v1172, %v1173
    %v1175 = vsub.f32 1.0, %v1174
    %v1176 = vmul.f32 %v1173, %v1175
    %v1177 = vadd.f32 %v1173, %v1176
    %vm1178 = vweird.f32 %v1172
    %vm1179 = vweird.f32 %v1173
    %vm1180 = vmor %vm1178, %vm1179
    %v1181 = vsel %vm1180, %v1173, %v1177
    %v1182 = vand.u32 2147483647, %v1172
    %vm1183 = vcmp.eq.f32.partialorder %v1182, 8.507059e+37
    %v1184 = vand.u32 %v1172, 2147483648
    %v1185 = vor.u32 1.1754944e-38, %v1184
    %v1186 = vsel %vm1183, %v1185, %v1181
    %v1187 = vmul.f32 1.0, %v1186
    %v1189 = vrot.slane %v1149, 2
    %v1191 = vadd.f32 %v339, %v1189
    %v1192 = vxor.u32 %v1191, 2147483648
    %v1193 = vmul.f32 %v1192, 1.442695
    %v1194 = vpow.pop %v1193
    %v1195 = vadd.f32 %v1194, 1.0
    %v1196 = vrcp.pop %v1195
    %v1197 = vmul.f32 %v1195, %v1196
    %v1198 = vsub.f32 1.0, %v1197
    %v1199 = vmul.f32 %v1196, %v1198
    %v1200 = vadd.f32 %v1196, %v1199
    %vm1201 = vweird.f32 %v1195
    %vm1202 = vweird.f32 %v1196
    %vm1203 = vmor %vm1201, %vm1202
    %v1204 = vsel %vm1203, %v1196, %v1200
    %v1205 = vand.u32 2147483647, %v1195
    %vm1206 = vcmp.eq.f32.partialorder %v1205, 8.507059e+37
    %v1207 = vand.u32 %v1195, 2147483648
    %v1208 = vor.u32 1.1754944e-38, %v1207
    %v1209 = vsel %vm1206, %v1208, %v1204
    %v1210 = vmul.f32 1.0, %v1209
    %v1212 = vrot.slane %v1162, 2
    %v1214 = vmul.f32 %v1187, %v1212
    %v1215 = vadd.f32 %v365, %v1214
    %v1216 = vtanh.pop %v1215
    %v1217 = vsub.f32 1.0, %v1210
    %v1218 = vmul.f32 %v1217, %v1216
    %v1220 = vrot.slane %v1119, 6
    %v1222 = vmul.f32 %v1210, %v1220
    %v1223 = vadd.f32 %v1218, %v1222
    %vm1224 = vcmask 1041408
    %v1225 = vsel %vm1224, %v508, %v610
    %vm1226 = vcmask 1043456
    %v1227 = vsel %vm1226, %v1225, %v714
    %vm1228 = vcmask 1045504
    %v1229 = vsel %vm1228, %v1227, %v818
    %v1230 = vsel %vm1224, %v913, %v1015
    %v1231 = vsel %vm1226, %v1230, %v1119
    %v1232 = vsel %vm1228, %v1231, %v1223
    %v1233 = vld [vmem:[%s11] sm:$0xf]
    %v1234 = vld [vmem:[%s11 + $0x4] sm:$0xf]
    %v1235 = vld [vmem:[%s11 + $0x8] sm:$0xf]
    %v1236 = vld [vmem:[%s11 + $0xc] sm:$0xf]
    %v1237 = vpack.c.bf16 %v1232, %v1229
    %v1238 = vld [vmem:[%s17] sm:$0x1]
    %v1240 = vperm.slane %v1238, 0
    %v1246 = vunpack.c.l.b16 %v1233
    %v1247 = vunpack.c.l.b16 %v1234
    %v1248 = vunpack.c.l.b16 %v1235
    %v1249 = vunpack.c.l.b16 %v1236
    %v1250 = vpack.c.b16 %v1247, %v1246
    %v1251 = vpack.c.b16 %v1249, %v1248
    %v1255 = vsel %vm395, %v1237, 0
    %1257 = vmatpush.bf16.msra.mxu0 0
    %1258 = vmatpush.bf16.msra.mxu0 0
    %1259 = vmatpush.bf16.msra.mxu0 0
    %1260 = vmatpush.bf16.msra.mxu0 0
    %1261 = vmatpush.bf16.msra.mxu0 0
    %1262 = vmatpush.bf16.msra.mxu0 0
    %1263 = vmatpush.bf16.msra.mxu0 %v1251
    %1264 = vmatpush.bf16.msra.mxu0 %v1250
    %1265 = vmatmul.bf16.gmra.mxu0 %v1255
    %v1266 = vpop.f32.mrf.mxu0
    %v1267 = vadd.f32 %v1240, %v1266
    %v1268 = vpop.f32.mrf.mxu0
    %v1269 = vadd.f32 %v1240, %v1268
    %1270 = vdwg.mxu0
    %v1271 = vld [vmem:[#allocation8] sm:$0xf]
    %v1272 = vld [vmem:[#allocation8 + $0x4] sm:$0xf]
    %v1273 = vld [vmem:[#allocation8 + $0x8] sm:$0xf]
    %v1274 = vld [vmem:[#allocation8 + $0xc] sm:$0xf]
    %v1275 = vld [vmem:[%s18] sm:$0x1]
    %v1277 = vperm.slane %v1275, 0
    %v1283 = vunpack.c.l.b16 %v1271
    %v1284 = vunpack.c.l.b16 %v1272
    %v1285 = vunpack.c.l.b16 %v1273
    %v1286 = vunpack.c.l.b16 %v1274
    %v1287 = vpack.c.b16 %v1284, %v1283
    %v1288 = vpack.c.b16 %v1286, %v1285
    %1291 = vmatpush.bf16.msra.mxu0 0
    %1292 = vmatpush.bf16.msra.mxu0 0
    %1293 = vmatpush.bf16.msra.mxu0 0
    %1294 = vmatpush.bf16.msra.mxu0 0
    %1295 = vmatpush.bf16.msra.mxu0 0
    %1296 = vmatpush.bf16.msra.mxu0 0
    %1297 = vmatpush.bf16.msra.mxu0 %v1288
    %1298 = vmatpush.bf16.msra.mxu0 %v1287
    %1299 = vmatmul.bf16.gmra.mxu0 %v1255
    %v1300 = vpop.f32.mrf.mxu0
    %v1301 = vadd.f32 %v1277, %v1300
    %v1302 = vpop.f32.mrf.mxu0
    %v1303 = vadd.f32 %v1277, %v1302
    %1304 = vdwg.mxu0
    %v1305 = vld [vmem:[#allocation10] sm:$0xf]
    %v1306 = vld [vmem:[#allocation10 + $0x4] sm:$0xf]
    %v1307 = vld [vmem:[#allocation10 + $0x8] sm:$0xf]
    %v1308 = vld [vmem:[#allocation10 + $0xc] sm:$0xf]
    %v1309 = vld [vmem:[#allocation16] sm:$0x1]
    %v1311 = vperm.slane %v1309, 0
    %v1317 = vunpack.c.l.b16 %v1305
    %v1318 = vunpack.c.l.b16 %v1306
    %v1319 = vunpack.c.l.b16 %v1307
    %v1320 = vunpack.c.l.b16 %v1308
    %v1321 = vpack.c.b16 %v1318, %v1317
    %v1322 = vpack.c.b16 %v1320, %v1319
    %1325 = vmatpush.bf16.msra.mxu0 0
    %1326 = vmatpush.bf16.msra.mxu0 0
    %1327 = vmatpush.bf16.msra.mxu0 0
    %1328 = vmatpush.bf16.msra.mxu0 0
    %1329 = vmatpush.bf16.msra.mxu0 0
    %1330 = vmatpush.bf16.msra.mxu0 0
    %1331 = vmatpush.bf16.msra.mxu0 %v1322
    %1332 = vmatpush.bf16.msra.mxu0 %v1321
    %1333 = vmatmul.bf16.gmra.mxu0 %v1255
    %v1334 = vpop.f32.mrf.mxu0
    %v1335 = vadd.f32 %v1311, %v1334
    %v1336 = vpop.f32.mrf.mxu0
    %v1337 = vadd.f32 %v1311, %v1336
    %1338 = vdwg.mxu0
    %v1339 = vld [vmem:[#allocation11] sm:$0xf]
    %v1340 = vld [vmem:[#allocation11 + $0x4] sm:$0xf]
    %v1341 = vld [vmem:[#allocation11 + $0x8] sm:$0xf]
    %v1342 = vld [vmem:[#allocation11 + $0xc] sm:$0xf]
    %v1343 = vld [vmem:[#allocation13] sm:$0xf]
    %v1344 = vld [vmem:[#allocation13 + $0x4] sm:$0xf]
    %v1345 = vld [vmem:[#allocation13 + $0x8] sm:$0xf]
    %v1346 = vld [vmem:[#allocation13 + $0xc] sm:$0xf]
    %v1347 = vld [vmem:[#allocation14] sm:$0xf]
    %v1348 = vld [vmem:[#allocation14 + $0x4] sm:$0xf]
    %v1349 = vld [vmem:[#allocation14 + $0x8] sm:$0xf]
    %v1350 = vld [vmem:[#allocation14 + $0xc] sm:$0xf]
    %v1351 = vld [vmem:[#allocation17] sm:$0x1]
    %v1353 = vperm.slane %v1351, 0
    %v1359 = vunpack.c.l.b16 %v1339
    %v1360 = vunpack.c.l.b16 %v1340
    %v1361 = vunpack.c.l.b16 %v1341
    %v1362 = vunpack.c.l.b16 %v1342
    %v1363 = vpack.c.b16 %v1360, %v1359
    %v1364 = vpack.c.b16 %v1362, %v1361
    %1367 = vmatpush.bf16.msra.mxu0 0
    %1368 = vmatpush.bf16.msra.mxu0 0
    %1369 = vmatpush.bf16.msra.mxu0 0
    %1370 = vmatpush.bf16.msra.mxu0 0
    %1371 = vmatpush.bf16.msra.mxu0 0
    %1372 = vmatpush.bf16.msra.mxu0 0
    %1373 = vmatpush.bf16.msra.mxu0 %v1364
    %1374 = vmatpush.bf16.msra.mxu0 %v1363
    %1375 = vmatmul.bf16.gmra.mxu0 %v397
    %v1376 = vpop.f32.mrf.mxu0
    %v1377 = vadd.f32 0.0, %v1376
    %v1378 = vpop.f32.mrf.mxu0
    %1379 = vdwg.mxu0
    %v1384 = vunpack.c.l.b16 %v1343
    %v1385 = vunpack.c.l.b16 %v1344
    %v1386 = vunpack.c.l.b16 %v1345
    %v1387 = vunpack.c.l.b16 %v1346
    %v1388 = vpack.c.b16 %v1385, %v1384
    %v1389 = vpack.c.b16 %v1387, %v1386
    %1392 = vmatpush.bf16.msra.mxu0 0
    %1393 = vmatpush.bf16.msra.mxu0 0
    %1394 = vmatpush.bf16.msra.mxu0 0
    %1395 = vmatpush.bf16.msra.mxu0 0
    %1396 = vmatpush.bf16.msra.mxu0 0
    %1397 = vmatpush.bf16.msra.mxu0 0
    %1398 = vmatpush.bf16.msra.mxu0 %v1389
    %1399 = vmatpush.bf16.msra.mxu0 %v1388
    %1400 = vmatmul.bf16.gmra.mxu0 %v397
    %v1401 = vpop.f32.mrf.mxu0
    %v1402 = vadd.f32 0.0, %v1401
    %v1403 = vpop.f32.mrf.mxu0
    %1404 = vdwg.mxu0
    %v1409 = vunpack.c.l.b16 %v1347
    %v1410 = vunpack.c.l.b16 %v1348
    %v1411 = vunpack.c.l.b16 %v1349
    %v1412 = vunpack.c.l.b16 %v1350
    %v1413 = vpack.c.b16 %v1410, %v1409
    %v1414 = vpack.c.b16 %v1412, %v1411
    %1417 = vmatpush.bf16.msra.mxu0 0
    %1418 = vmatpush.bf16.msra.mxu0 0
    %1419 = vmatpush.bf16.msra.mxu0 0
    %1420 = vmatpush.bf16.msra.mxu0 0
    %1421 = vmatpush.bf16.msra.mxu0 0
    %1422 = vmatpush.bf16.msra.mxu0 0
    %1423 = vmatpush.bf16.msra.mxu0 %v1414
    %1424 = vmatpush.bf16.msra.mxu0 %v1413
    %1425 = vmatmul.bf16.gmra.mxu0 %v397
    %v1426 = vpop.f32.mrf.mxu0
    %v1427 = vadd.f32 %v1353, %v1426
    %v1428 = vpop.f32.mrf.mxu0
    %1429 = vdwg.mxu0
    %v1430 = vadd.f32 %v1267, %v1377
    %v1431 = vxor.u32 %v1430, 2147483648
    %v1432 = vmul.f32 %v1431, 1.442695
    %v1433 = vpow.pop %v1432
    %v1434 = vadd.f32 %v1433, 1.0
    %v1435 = vrcp.pop %v1434
    %v1436 = vmul.f32 %v1434, %v1435
    %v1437 = vsub.f32 1.0, %v1436
    %v1438 = vmul.f32 %v1435, %v1437
    %v1439 = vadd.f32 %v1435, %v1438
    %vm1440 = vweird.f32 %v1434
    %vm1441 = vweird.f32 %v1435
    %vm1442 = vmor %vm1440, %vm1441
    %v1443 = vsel %vm1442, %v1435, %v1439
    %v1444 = vand.u32 2147483647, %v1434
    %vm1445 = vcmp.eq.f32.partialorder %v1444, 8.507059e+37
    %v1446 = vand.u32 %v1434, 2147483648
    %v1447 = vor.u32 1.1754944e-38, %v1446
    %v1448 = vsel %vm1445, %v1447, %v1443
    %v1449 = vmul.f32 1.0, %v1448
    %v1450 = vadd.f32 %v1301, %v1402
    %v1451 = vxor.u32 %v1450, 2147483648
    %v1452 = vmul.f32 %v1451, 1.442695
    %v1453 = vpow.pop %v1452
    %v1454 = vadd.f32 %v1453, 1.0
    %v1455 = vrcp.pop %v1454
    %v1456 = vmul.f32 %v1454, %v1455
    %v1457 = vsub.f32 1.0, %v1456
    %v1458 = vmul.f32 %v1455, %v1457
    %v1459 = vadd.f32 %v1455, %v1458
    %vm1460 = vweird.f32 %v1454
    %vm1461 = vweird.f32 %v1455
    %vm1462 = vmor %vm1460, %vm1461
    %v1463 = vsel %vm1462, %v1455, %v1459
    %v1464 = vand.u32 2147483647, %v1454
    %vm1465 = vcmp.eq.f32.partialorder %v1464, 8.507059e+37
    %v1466 = vand.u32 %v1454, 2147483648
    %v1467 = vor.u32 1.1754944e-38, %v1466
    %v1468 = vsel %vm1465, %v1467, %v1463
    %v1469 = vmul.f32 1.0, %v1468
    %v1470 = vmul.f32 %v1449, %v1427
    %v1471 = vadd.f32 %v1335, %v1470
    %v1472 = vtanh.pop %v1471
    %v1473 = vsub.f32 1.0, %v1469
    %v1474 = vmul.f32 %v1473, %v1472
    %v1475 = vmul.f32 %v1469, 0.0
    %v1476 = vadd.f32 %v1474, %v1475
    %v1477 = vpack.c.bf16 %v1476, %v1476
    %v1479 = vsel %vm395, %v1477, 0
    %1481 = vmatpush.bf16.msra.mxu0 0
    %1482 = vmatpush.bf16.msra.mxu0 0
    %1483 = vmatpush.bf16.msra.mxu0 0
    %1484 = vmatpush.bf16.msra.mxu0 0
    %1485 = vmatpush.bf16.msra.mxu0 0
    %1486 = vmatpush.bf16.msra.mxu0 0
    %1487 = vmatpush.bf16.msra.mxu0 %v1364
    %1488 = vmatpush.bf16.msra.mxu0 %v1363
    %1489 = vmatmul.bf16.gmra.mxu0 %v1479
    %v1490 = vpop.f32.mrf.mxu0
    %v1491 = vadd.f32 0.0, %v1490
    %v1492 = vpop.f32.mrf.mxu0
    %1493 = vdwg.mxu0
    %1494 = vmatpush.bf16.msra.mxu0 0
    %1495 = vmatpush.bf16.msra.mxu0 0
    %1496 = vmatpush.bf16.msra.mxu0 0
    %1497 = vmatpush.bf16.msra.mxu0 0
    %1498 = vmatpush.bf16.msra.mxu0 0
    %1499 = vmatpush.bf16.msra.mxu0 0
    %1500 = vmatpush.bf16.msra.mxu0 %v1389
    %1501 = vmatpush.bf16.msra.mxu0 %v1388
    %1502 = vmatmul.bf16.gmra.mxu0 %v1479
    %v1503 = vpop.f32.mrf.mxu0
    %v1504 = vadd.f32 0.0, %v1503
    %v1505 = vpop.f32.mrf.mxu0
    %1506 = vdwg.mxu0
    %1507 = vmatpush.bf16.msra.mxu0 0
    %1508 = vmatpush.bf16.msra.mxu0 0
    %1509 = vmatpush.bf16.msra.mxu0 0
    %1510 = vmatpush.bf16.msra.mxu0 0
    %1511 = vmatpush.bf16.msra.mxu0 0
    %1512 = vmatpush.bf16.msra.mxu0 0
    %1513 = vmatpush.bf16.msra.mxu0 %v1414
    %1514 = vmatpush.bf16.msra.mxu0 %v1413
    %1515 = vmatmul.bf16.gmra.mxu0 %v1479
    %v1516 = vpop.f32.mrf.mxu0
    %v1517 = vadd.f32 %v1353, %v1516
    %v1518 = vpop.f32.mrf.mxu0
    %1519 = vdwg.mxu0
    %v1521 = vrot.slane %v1491, 6
    %v1523 = vadd.f32 %v1267, %v1521
    %v1524 = vxor.u32 %v1523, 2147483648
    %v1525 = vmul.f32 %v1524, 1.442695
    %v1526 = vpow.pop %v1525
    %v1527 = vadd.f32 %v1526, 1.0
    %v1528 = vrcp.pop %v1527
    %v1529 = vmul.f32 %v1527, %v1528
    %v1530 = vsub.f32 1.0, %v1529
    %v1531 = vmul.f32 %v1528, %v1530
    %v1532 = vadd.f32 %v1528, %v1531
    %vm1533 = vweird.f32 %v1527
    %vm1534 = vweird.f32 %v1528
    %vm1535 = vmor %vm1533, %vm1534
    %v1536 = vsel %vm1535, %v1528, %v1532
    %v1537 = vand.u32 2147483647, %v1527
    %vm1538 = vcmp.eq.f32.partialorder %v1537, 8.507059e+37
    %v1539 = vand.u32 %v1527, 2147483648
    %v1540 = vor.u32 1.1754944e-38, %v1539
    %v1541 = vsel %vm1538, %v1540, %v1536
    %v1542 = vmul.f32 1.0, %v1541
    %v1544 = vrot.slane %v1504, 6
    %v1546 = vadd.f32 %v1301, %v1544
    %v1547 = vxor.u32 %v1546, 2147483648
    %v1548 = vmul.f32 %v1547, 1.442695
    %v1549 = vpow.pop %v1548
    %v1550 = vadd.f32 %v1549, 1.0
    %v1551 = vrcp.pop %v1550
    %v1552 = vmul.f32 %v1550, %v1551
    %v1553 = vsub.f32 1.0, %v1552
    %v1554 = vmul.f32 %v1551, %v1553
    %v1555 = vadd.f32 %v1551, %v1554
    %vm1556 = vweird.f32 %v1550
    %vm1557 = vweird.f32 %v1551
    %vm1558 = vmor %vm1556, %vm1557
    %v1559 = vsel %vm1558, %v1551, %v1555
    %v1560 = vand.u32 2147483647, %v1550
    %vm1561 = vcmp.eq.f32.partialorder %v1560, 8.507059e+37
    %v1562 = vand.u32 %v1550, 2147483648
    %v1563 = vor.u32 1.1754944e-38, %v1562
    %v1564 = vsel %vm1561, %v1563, %v1559
    %v1565 = vmul.f32 1.0, %v1564
    %v1567 = vrot.slane %v1517, 6
    %v1569 = vmul.f32 %v1542, %v1567
    %v1570 = vadd.f32 %v1335, %v1569
    %v1571 = vtanh.pop %v1570
    %v1572 = vsub.f32 1.0, %v1565
    %v1573 = vmul.f32 %v1572, %v1571
    %v1575 = vrot.slane %v1476, 6
    %v1577 = vmul.f32 %v1565, %v1575
    %v1578 = vadd.f32 %v1573, %v1577
    %v1579 = vpack.c.bf16 %v1578, %v1578
    %v1581 = vrot.slane %v1579, 1
    %v1583 = vsel %vm395, %v1581, 0
    %1585 = vmatpush.bf16.msra.mxu0 0
    %1586 = vmatpush.bf16.msra.mxu0 0
    %1587 = vmatpush.bf16.msra.mxu0 0
    %1588 = vmatpush.bf16.msra.mxu0 0
    %1589 = vmatpush.bf16.msra.mxu0 0
    %1590 = vmatpush.bf16.msra.mxu0 0
    %1591 = vmatpush.bf16.msra.mxu0 %v1364
    %1592 = vmatpush.bf16.msra.mxu0 %v1363
    %1593 = vmatmul.bf16.gmra.mxu0 %v1583
    %v1594 = vpop.f32.mrf.mxu0
    %v1595 = vadd.f32 0.0, %v1594
    %v1596 = vpop.f32.mrf.mxu0
    %1597 = vdwg.mxu0
    %1598 = vmatpush.bf16.msra.mxu0 0
    %1599 = vmatpush.bf16.msra.mxu0 0
    %1600 = vmatpush.bf16.msra.mxu0 0
    %1601 = vmatpush.bf16.msra.mxu0 0
    %1602 = vmatpush.bf16.msra.mxu0 0
    %1603 = vmatpush.bf16.msra.mxu0 0
    %1604 = vmatpush.bf16.msra.mxu0 %v1389
    %1605 = vmatpush.bf16.msra.mxu0 %v1388
    %1606 = vmatmul.bf16.gmra.mxu0 %v1583
    %v1607 = vpop.f32.mrf.mxu0
    %v1608 = vadd.f32 0.0, %v1607
    %v1609 = vpop.f32.mrf.mxu0
    %1610 = vdwg.mxu0
    %1611 = vmatpush.bf16.msra.mxu0 0
    %1612 = vmatpush.bf16.msra.mxu0 0
    %1613 = vmatpush.bf16.msra.mxu0 0
    %1614 = vmatpush.bf16.msra.mxu0 0
    %1615 = vmatpush.bf16.msra.mxu0 0
    %1616 = vmatpush.bf16.msra.mxu0 0
    %1617 = vmatpush.bf16.msra.mxu0 %v1414
    %1618 = vmatpush.bf16.msra.mxu0 %v1413
    %1619 = vmatmul.bf16.gmra.mxu0 %v1583
    %v1620 = vpop.f32.mrf.mxu0
    %v1621 = vadd.f32 %v1353, %v1620
    %v1622 = vpop.f32.mrf.mxu0
    %1623 = vdwg.mxu0
    %v1625 = vrot.slane %v1595, 4
    %v1627 = vadd.f32 %v1267, %v1625
    %v1628 = vxor.u32 %v1627, 2147483648
    %v1629 = vmul.f32 %v1628, 1.442695
    %v1630 = vpow.pop %v1629
    %v1631 = vadd.f32 %v1630, 1.0
    %v1632 = vrcp.pop %v1631
    %v1633 = vmul.f32 %v1631, %v1632
    %v1634 = vsub.f32 1.0, %v1633
    %v1635 = vmul.f32 %v1632, %v1634
    %v1636 = vadd.f32 %v1632, %v1635
    %vm1637 = vweird.f32 %v1631
    %vm1638 = vweird.f32 %v1632
    %vm1639 = vmor %vm1637, %vm1638
    %v1640 = vsel %vm1639, %v1632, %v1636
    %v1641 = vand.u32 2147483647, %v1631
    %vm1642 = vcmp.eq.f32.partialorder %v1641, 8.507059e+37
    %v1643 = vand.u32 %v1631, 2147483648
    %v1644 = vor.u32 1.1754944e-38, %v1643
    %v1645 = vsel %vm1642, %v1644, %v1640
    %v1646 = vmul.f32 1.0, %v1645
    %v1648 = vrot.slane %v1608, 4
    %v1650 = vadd.f32 %v1301, %v1648
    %v1651 = vxor.u32 %v1650, 2147483648
    %v1652 = vmul.f32 %v1651, 1.442695
    %v1653 = vpow.pop %v1652
    %v1654 = vadd.f32 %v1653, 1.0
    %v1655 = vrcp.pop %v1654
    %v1656 = vmul.f32 %v1654, %v1655
    %v1657 = vsub.f32 1.0, %v1656
    %v1658 = vmul.f32 %v1655, %v1657
    %v1659 = vadd.f32 %v1655, %v1658
    %vm1660 = vweird.f32 %v1654
    %vm1661 = vweird.f32 %v1655
    %vm1662 = vmor %vm1660, %vm1661
    %v1663 = vsel %vm1662, %v1655, %v1659
    %v1664 = vand.u32 2147483647, %v1654
    %vm1665 = vcmp.eq.f32.partialorder %v1664, 8.507059e+37
    %v1666 = vand.u32 %v1654, 2147483648
    %v1667 = vor.u32 1.1754944e-38, %v1666
    %v1668 = vsel %vm1665, %v1667, %v1663
    %v1669 = vmul.f32 1.0, %v1668
    %v1671 = vrot.slane %v1621, 4
    %v1673 = vmul.f32 %v1646, %v1671
    %v1674 = vadd.f32 %v1335, %v1673
    %v1675 = vtanh.pop %v1674
    %v1676 = vsub.f32 1.0, %v1669
    %v1677 = vmul.f32 %v1676, %v1675
    %v1679 = vrot.slane %v1578, 6
    %v1681 = vmul.f32 %v1669, %v1679
    %v1682 = vadd.f32 %v1677, %v1681
    %v1683 = vpack.c.bf16 %v1682, %v1682
    %v1685 = vrot.slane %v1683, 2
    %v1687 = vsel %vm395, %v1685, 0
    %1689 = vmatpush.bf16.msra.mxu0 0
    %1690 = vmatpush.bf16.msra.mxu0 0
    %1691 = vmatpush.bf16.msra.mxu0 0
    %1692 = vmatpush.bf16.msra.mxu0 0
    %1693 = vmatpush.bf16.msra.mxu0 0
    %1694 = vmatpush.bf16.msra.mxu0 0
    %1695 = vmatpush.bf16.msra.mxu0 %v1364
    %1696 = vmatpush.bf16.msra.mxu0 %v1363
    %1697 = vmatmul.bf16.gmra.mxu0 %v1687
    %v1698 = vpop.f32.mrf.mxu0
    %v1699 = vadd.f32 0.0, %v1698
    %v1700 = vpop.f32.mrf.mxu0
    %1701 = vdwg.mxu0
    %1702 = vmatpush.bf16.msra.mxu0 0
    %1703 = vmatpush.bf16.msra.mxu0 0
    %1704 = vmatpush.bf16.msra.mxu0 0
    %1705 = vmatpush.bf16.msra.mxu0 0
    %1706 = vmatpush.bf16.msra.mxu0 0
    %1707 = vmatpush.bf16.msra.mxu0 0
    %1708 = vmatpush.bf16.msra.mxu0 %v1389
    %1709 = vmatpush.bf16.msra.mxu0 %v1388
    %1710 = vmatmul.bf16.gmra.mxu0 %v1687
    %v1711 = vpop.f32.mrf.mxu0
    %v1712 = vadd.f32 0.0, %v1711
    %v1713 = vpop.f32.mrf.mxu0
    %1714 = vdwg.mxu0
    %1715 = vmatpush.bf16.msra.mxu0 0
    %1716 = vmatpush.bf16.msra.mxu0 0
    %1717 = vmatpush.bf16.msra.mxu0 0
    %1718 = vmatpush.bf16.msra.mxu0 0
    %1719 = vmatpush.bf16.msra.mxu0 0
    %1720 = vmatpush.bf16.msra.mxu0 0
    %1721 = vmatpush.bf16.msra.mxu0 %v1414
    %1722 = vmatpush.bf16.msra.mxu0 %v1413
    %1723 = vmatmul.bf16.gmra.mxu0 %v1687
    %v1724 = vpop.f32.mrf.mxu0
    %v1725 = vadd.f32 %v1353, %v1724
    %v1726 = vpop.f32.mrf.mxu0
    %1727 = vdwg.mxu0
    %v1729 = vrot.slane %v1699, 2
    %v1731 = vadd.f32 %v1267, %v1729
    %v1732 = vxor.u32 %v1731, 2147483648
    %v1733 = vmul.f32 %v1732, 1.442695
    %v1734 = vpow.pop %v1733
    %v1735 = vadd.f32 %v1734, 1.0
    %v1736 = vrcp.pop %v1735
    %v1737 = vmul.f32 %v1735, %v1736
    %v1738 = vsub.f32 1.0, %v1737
    %v1739 = vmul.f32 %v1736, %v1738
    %v1740 = vadd.f32 %v1736, %v1739
    %vm1741 = vweird.f32 %v1735
    %vm1742 = vweird.f32 %v1736
    %vm1743 = vmor %vm1741, %vm1742
    %v1744 = vsel %vm1743, %v1736, %v1740
    %v1745 = vand.u32 2147483647, %v1735
    %vm1746 = vcmp.eq.f32.partialorder %v1745, 8.507059e+37
    %v1747 = vand.u32 %v1735, 2147483648
    %v1748 = vor.u32 1.1754944e-38, %v1747
    %v1749 = vsel %vm1746, %v1748, %v1744
    %v1750 = vmul.f32 1.0, %v1749
    %v1752 = vrot.slane %v1712, 2
    %v1754 = vadd.f32 %v1301, %v1752
    %v1755 = vxor.u32 %v1754, 2147483648
    %v1756 = vmul.f32 %v1755, 1.442695
    %v1757 = vpow.pop %v1756
    %v1758 = vadd.f32 %v1757, 1.0
    %v1759 = vrcp.pop %v1758
    %v1760 = vmul.f32 %v1758, %v1759
    %v1761 = vsub.f32 1.0, %v1760
    %v1762 = vmul.f32 %v1759, %v1761
    %v1763 = vadd.f32 %v1759, %v1762
    %vm1764 = vweird.f32 %v1758
    %vm1765 = vweird.f32 %v1759
    %vm1766 = vmor %vm1764, %vm1765
    %v1767 = vsel %vm1766, %v1759, %v1763
    %v1768 = vand.u32 2147483647, %v1758
    %vm1769 = vcmp.eq.f32.partialorder %v1768, 8.507059e+37
    %v1770 = vand.u32 %v1758, 2147483648
    %v1771 = vor.u32 1.1754944e-38, %v1770
    %v1772 = vsel %vm1769, %v1771, %v1767
    %v1773 = vmul.f32 1.0, %v1772
    %v1775 = vrot.slane %v1725, 2
    %v1777 = vmul.f32 %v1750, %v1775
    %v1778 = vadd.f32 %v1335, %v1777
    %v1779 = vtanh.pop %v1778
    %v1780 = vsub.f32 1.0, %v1773
    %v1781 = vmul.f32 %v1780, %v1779
    %v1783 = vrot.slane %v1682, 6
    %v1785 = vmul.f32 %v1773, %v1783
    %v1786 = vadd.f32 %v1781, %v1785
    %v1787 = vpack.c.bf16 %v1786, %v1786
    %v1789 = vrot.slane %v1787, 3
    %v1791 = vsel %vm395, %v1789, 0
    %1793 = vmatpush.bf16.msra.mxu0 0
    %1794 = vmatpush.bf16.msra.mxu0 0
    %1795 = vmatpush.bf16.msra.mxu0 0
    %1796 = vmatpush.bf16.msra.mxu0 0
    %1797 = vmatpush.bf16.msra.mxu0 0
    %1798 = vmatpush.bf16.msra.mxu0 0
    %1799 = vmatpush.bf16.msra.mxu0 %v1364
    %1800 = vmatpush.bf16.msra.mxu0 %v1363
    %1801 = vmatmul.bf16.gmra.mxu0 %v1791
    %v1802 = vpop.f32.mrf.mxu0
    %v1803 = vadd.f32 0.0, %v1802
    %v1804 = vpop.f32.mrf.mxu0
    %1805 = vdwg.mxu0
    %1806 = vmatpush.bf16.msra.mxu0 0
    %1807 = vmatpush.bf16.msra.mxu0 0
    %1808 = vmatpush.bf16.msra.mxu0 0
    %1809 = vmatpush.bf16.msra.mxu0 0
    %1810 = vmatpush.bf16.msra.mxu0 0
    %1811 = vmatpush.bf16.msra.mxu0 0
    %1812 = vmatpush.bf16.msra.mxu0 %v1389
    %1813 = vmatpush.bf16.msra.mxu0 %v1388
    %1814 = vmatmul.bf16.gmra.mxu0 %v1791
    %v1815 = vpop.f32.mrf.mxu0
    %v1816 = vadd.f32 0.0, %v1815
    %v1817 = vpop.f32.mrf.mxu0
    %1818 = vdwg.mxu0
    %1819 = vmatpush.bf16.msra.mxu0 0
    %1820 = vmatpush.bf16.msra.mxu0 0
    %1821 = vmatpush.bf16.msra.mxu0 0
    %1822 = vmatpush.bf16.msra.mxu0 0
    %1823 = vmatpush.bf16.msra.mxu0 0
    %1824 = vmatpush.bf16.msra.mxu0 0
    %1825 = vmatpush.bf16.msra.mxu0 %v1414
    %1826 = vmatpush.bf16.msra.mxu0 %v1413
    %1827 = vmatmul.bf16.gmra.mxu0 %v1791
    %v1828 = vpop.f32.mrf.mxu0
    %v1829 = vadd.f32 %v1353, %v1828
    %v1830 = vpop.f32.mrf.mxu0
    %1831 = vdwg.mxu0
    %v1832 = vadd.f32 %v1269, %v1803
    %v1833 = vxor.u32 %v1832, 2147483648
    %v1834 = vmul.f32 %v1833, 1.442695
    %v1835 = vpow.pop %v1834
    %v1836 = vadd.f32 %v1835, 1.0
    %v1837 = vrcp.pop %v1836
    %v1838 = vmul.f32 %v1836, %v1837
    %v1839 = vsub.f32 1.0, %v1838
    %v1840 = vmul.f32 %v1837, %v1839
    %v1841 = vadd.f32 %v1837, %v1840
    %vm1842 = vweird.f32 %v1836
    %vm1843 = vweird.f32 %v1837
    %vm1844 = vmor %vm1842, %vm1843
    %v1845 = vsel %vm1844, %v1837, %v1841
    %v1846 = vand.u32 2147483647, %v1836
    %vm1847 = vcmp.eq.f32.partialorder %v1846, 8.507059e+37
    %v1848 = vand.u32 %v1836, 2147483648
    %v1849 = vor.u32 1.1754944e-38, %v1848
    %v1850 = vsel %vm1847, %v1849, %v1845
    %v1851 = vmul.f32 1.0, %v1850
    %v1852 = vadd.f32 %v1303, %v1816
    %v1853 = vxor.u32 %v1852, 2147483648
    %v1854 = vmul.f32 %v1853, 1.442695
    %v1855 = vpow.pop %v1854
    %v1856 = vadd.f32 %v1855, 1.0
    %v1857 = vrcp.pop %v1856
    %v1858 = vmul.f32 %v1856, %v1857
    %v1859 = vsub.f32 1.0, %v1858
    %v1860 = vmul.f32 %v1857, %v1859
    %v1861 = vadd.f32 %v1857, %v1860
    %vm1862 = vweird.f32 %v1856
    %vm1863 = vweird.f32 %v1857
    %vm1864 = vmor %vm1862, %vm1863
    %v1865 = vsel %vm1864, %v1857, %v1861
    %v1866 = vand.u32 2147483647, %v1856
    %vm1867 = vcmp.eq.f32.partialorder %v1866, 8.507059e+37
    %v1868 = vand.u32 %v1856, 2147483648
    %v1869 = vor.u32 1.1754944e-38, %v1868
    %v1870 = vsel %vm1867, %v1869, %v1865
    %v1871 = vmul.f32 1.0, %v1870
    %v1872 = vmul.f32 %v1851, %v1829
    %v1873 = vadd.f32 %v1337, %v1872
    %v1874 = vtanh.pop %v1873
    %v1875 = vsub.f32 1.0, %v1871
    %v1876 = vmul.f32 %v1875, %v1874
    %v1878 = vrot.slane %v1786, 6
    %v1880 = vmul.f32 %v1871, %v1878
    %v1881 = vadd.f32 %v1876, %v1880
    %v1882 = vpack.c.bf16 %v1881, %v1881
    %v1884 = vsel %vm395, %v1882, 0
    %1886 = vmatpush.bf16.msra.mxu0 0
    %1887 = vmatpush.bf16.msra.mxu0 0
    %1888 = vmatpush.bf16.msra.mxu0 0
    %1889 = vmatpush.bf16.msra.mxu0 0
    %1890 = vmatpush.bf16.msra.mxu0 0
    %1891 = vmatpush.bf16.msra.mxu0 0
    %1892 = vmatpush.bf16.msra.mxu0 %v1364
    %1893 = vmatpush.bf16.msra.mxu0 %v1363
    %1894 = vmatmul.bf16.gmra.mxu0 %v1884
    %v1895 = vpop.f32.mrf.mxu0
    %v1896 = vadd.f32 0.0, %v1895
    %v1897 = vpop.f32.mrf.mxu0
    %1898 = vdwg.mxu0
    %1899 = vmatpush.bf16.msra.mxu0 0
    %1900 = vmatpush.bf16.msra.mxu0 0
    %1901 = vmatpush.bf16.msra.mxu0 0
    %1902 = vmatpush.bf16.msra.mxu0 0
    %1903 = vmatpush.bf16.msra.mxu0 0
    %1904 = vmatpush.bf16.msra.mxu0 0
    %1905 = vmatpush.bf16.msra.mxu0 %v1389
    %1906 = vmatpush.bf16.msra.mxu0 %v1388
    %1907 = vmatmul.bf16.gmra.mxu0 %v1884
    %v1908 = vpop.f32.mrf.mxu0
    %v1909 = vadd.f32 0.0, %v1908
    %v1910 = vpop.f32.mrf.mxu0
    %1911 = vdwg.mxu0
    %1912 = vmatpush.bf16.msra.mxu0 0
    %1913 = vmatpush.bf16.msra.mxu0 0
    %1914 = vmatpush.bf16.msra.mxu0 0
    %1915 = vmatpush.bf16.msra.mxu0 0
    %1916 = vmatpush.bf16.msra.mxu0 0
    %1917 = vmatpush.bf16.msra.mxu0 0
    %1918 = vmatpush.bf16.msra.mxu0 %v1414
    %1919 = vmatpush.bf16.msra.mxu0 %v1413
    %1920 = vmatmul.bf16.gmra.mxu0 %v1884
    %v1921 = vpop.f32.mrf.mxu0
    %v1922 = vadd.f32 %v1353, %v1921
    %v1923 = vpop.f32.mrf.mxu0
    %1924 = vdwg.mxu0
    %v1926 = vrot.slane %v1896, 6
    %v1928 = vadd.f32 %v1269, %v1926
    %v1929 = vxor.u32 %v1928, 2147483648
    %v1930 = vmul.f32 %v1929, 1.442695
    %v1931 = vpow.pop %v1930
    %v1932 = vadd.f32 %v1931, 1.0
    %v1933 = vrcp.pop %v1932
    %v1934 = vmul.f32 %v1932, %v1933
    %v1935 = vsub.f32 1.0, %v1934
    %v1936 = vmul.f32 %v1933, %v1935
    %v1937 = vadd.f32 %v1933, %v1936
    %vm1938 = vweird.f32 %v1932
    %vm1939 = vweird.f32 %v1933
    %vm1940 = vmor %vm1938, %vm1939
    %v1941 = vsel %vm1940, %v1933, %v1937
    %v1942 = vand.u32 2147483647, %v1932
    %vm1943 = vcmp.eq.f32.partialorder %v1942, 8.507059e+37
    %v1944 = vand.u32 %v1932, 2147483648
    %v1945 = vor.u32 1.1754944e-38, %v1944
    %v1946 = vsel %vm1943, %v1945, %v1941
    %v1947 = vmul.f32 1.0, %v1946
    %v1949 = vrot.slane %v1909, 6
    %v1951 = vadd.f32 %v1303, %v1949
    %v1952 = vxor.u32 %v1951, 2147483648
    %v1953 = vmul.f32 %v1952, 1.442695
    %v1954 = vpow.pop %v1953
    %v1955 = vadd.f32 %v1954, 1.0
    %v1956 = vrcp.pop %v1955
    %v1957 = vmul.f32 %v1955, %v1956
    %v1958 = vsub.f32 1.0, %v1957
    %v1959 = vmul.f32 %v1956, %v1958
    %v1960 = vadd.f32 %v1956, %v1959
    %vm1961 = vweird.f32 %v1955
    %vm1962 = vweird.f32 %v1956
    %vm1963 = vmor %vm1961, %vm1962
    %v1964 = vsel %vm1963, %v1956, %v1960
    %v1965 = vand.u32 2147483647, %v1955
    %vm1966 = vcmp.eq.f32.partialorder %v1965, 8.507059e+37
    %v1967 = vand.u32 %v1955, 2147483648
    %v1968 = vor.u32 1.1754944e-38, %v1967
    %v1969 = vsel %vm1966, %v1968, %v1964
    %v1970 = vmul.f32 1.0, %v1969
    %v1972 = vrot.slane %v1922, 6
    %v1974 = vmul.f32 %v1947, %v1972
    %v1975 = vadd.f32 %v1337, %v1974
    %v1976 = vtanh.pop %v1975
    %v1977 = vsub.f32 1.0, %v1970
    %v1978 = vmul.f32 %v1977, %v1976
    %v1980 = vrot.slane %v1881, 6
    %v1982 = vmul.f32 %v1970, %v1980
    %v1983 = vadd.f32 %v1978, %v1982
    %v1984 = vpack.c.bf16 %v1983, %v1983
    %v1986 = vrot.slane %v1984, 1
    %v1988 = vsel %vm395, %v1986, 0
    %1990 = vmatpush.bf16.msra.mxu0 0
    %1991 = vmatpush.bf16.msra.mxu0 0
    %1992 = vmatpush.bf16.msra.mxu0 0
    %1993 = vmatpush.bf16.msra.mxu0 0
    %1994 = vmatpush.bf16.msra.mxu0 0
    %1995 = vmatpush.bf16.msra.mxu0 0
    %1996 = vmatpush.bf16.msra.mxu0 %v1364
    %1997 = vmatpush.bf16.msra.mxu0 %v1363
    %1998 = vmatmul.bf16.gmra.mxu0 %v1988
    %v1999 = vpop.f32.mrf.mxu0
    %v2000 = vadd.f32 0.0, %v1999
    %v2001 = vpop.f32.mrf.mxu0
    %2002 = vdwg.mxu0
    %2003 = vmatpush.bf16.msra.mxu0 0
    %2004 = vmatpush.bf16.msra.mxu0 0
    %2005 = vmatpush.bf16.msra.mxu0 0
    %2006 = vmatpush.bf16.msra.mxu0 0
    %2007 = vmatpush.bf16.msra.mxu0 0
    %2008 = vmatpush.bf16.msra.mxu0 0
    %2009 = vmatpush.bf16.msra.mxu0 %v1389
    %2010 = vmatpush.bf16.msra.mxu0 %v1388
    %2011 = vmatmul.bf16.gmra.mxu0 %v1988
    %v2012 = vpop.f32.mrf.mxu0
    %v2013 = vadd.f32 0.0, %v2012
    %v2014 = vpop.f32.mrf.mxu0
    %2015 = vdwg.mxu0
    %2016 = vmatpush.bf16.msra.mxu0 0
    %2017 = vmatpush.bf16.msra.mxu0 0
    %2018 = vmatpush.bf16.msra.mxu0 0
    %2019 = vmatpush.bf16.msra.mxu0 0
    %2020 = vmatpush.bf16.msra.mxu0 0
    %2021 = vmatpush.bf16.msra.mxu0 0
    %2022 = vmatpush.bf16.msra.mxu0 %v1414
    %2023 = vmatpush.bf16.msra.mxu0 %v1413
    %2024 = vmatmul.bf16.gmra.mxu0 %v1988
    %v2025 = vpop.f32.mrf.mxu0
    %v2026 = vadd.f32 %v1353, %v2025
    %v2027 = vpop.f32.mrf.mxu0
    %2028 = vdwg.mxu0
    %v2030 = vrot.slane %v2000, 4
    %v2032 = vadd.f32 %v1269, %v2030
    %v2033 = vxor.u32 %v2032, 2147483648
    %v2034 = vmul.f32 %v2033, 1.442695
    %v2035 = vpow.pop %v2034
    %v2036 = vadd.f32 %v2035, 1.0
    %v2037 = vrcp.pop %v2036
    %v2038 = vmul.f32 %v2036, %v2037
    %v2039 = vsub.f32 1.0, %v2038
    %v2040 = vmul.f32 %v2037, %v2039
    %v2041 = vadd.f32 %v2037, %v2040
    %vm2042 = vweird.f32 %v2036
    %vm2043 = vweird.f32 %v2037
    %vm2044 = vmor %vm2042, %vm2043
    %v2045 = vsel %vm2044, %v2037, %v2041
    %v2046 = vand.u32 2147483647, %v2036
    %vm2047 = vcmp.eq.f32.partialorder %v2046, 8.507059e+37
    %v2048 = vand.u32 %v2036, 2147483648
    %v2049 = vor.u32 1.1754944e-38, %v2048
    %v2050 = vsel %vm2047, %v2049, %v2045
    %v2051 = vmul.f32 1.0, %v2050
    %v2053 = vrot.slane %v2013, 4
    %v2055 = vadd.f32 %v1303, %v2053
    %v2056 = vxor.u32 %v2055, 2147483648
    %v2057 = vmul.f32 %v2056, 1.442695
    %v2058 = vpow.pop %v2057
    %v2059 = vadd.f32 %v2058, 1.0
    %v2060 = vrcp.pop %v2059
    %v2061 = vmul.f32 %v2059, %v2060
    %v2062 = vsub.f32 1.0, %v2061
    %v2063 = vmul.f32 %v2060, %v2062
    %v2064 = vadd.f32 %v2060, %v2063
    %vm2065 = vweird.f32 %v2059
    %vm2066 = vweird.f32 %v2060
    %vm2067 = vmor %vm2065, %vm2066
    %v2068 = vsel %vm2067, %v2060, %v2064
    %v2069 = vand.u32 2147483647, %v2059
    %vm2070 = vcmp.eq.f32.partialorder %v2069, 8.507059e+37
    %v2071 = vand.u32 %v2059, 2147483648
    %v2072 = vor.u32 1.1754944e-38, %v2071
    %v2073 = vsel %vm2070, %v2072, %v2068
    %v2074 = vmul.f32 1.0, %v2073
    %v2076 = vrot.slane %v2026, 4
    %v2078 = vmul.f32 %v2051, %v2076
    %v2079 = vadd.f32 %v1337, %v2078
    %v2080 = vtanh.pop %v2079
    %v2081 = vsub.f32 1.0, %v2074
    %v2082 = vmul.f32 %v2081, %v2080
    %v2084 = vrot.slane %v1983, 6
    %v2086 = vmul.f32 %v2074, %v2084
    %v2087 = vadd.f32 %v2082, %v2086
    %v2088 = vpack.c.bf16 %v2087, %v2087
    %v2090 = vrot.slane %v2088, 2
    %v2092 = vsel %vm395, %v2090, 0
    %2094 = vmatpush.bf16.msra.mxu0 0
    %2095 = vmatpush.bf16.msra.mxu0 0
    %2096 = vmatpush.bf16.msra.mxu0 0
    %2097 = vmatpush.bf16.msra.mxu0 0
    %2098 = vmatpush.bf16.msra.mxu0 0
    %2099 = vmatpush.bf16.msra.mxu0 0
    %2100 = vmatpush.bf16.msra.mxu0 %v1364
    %2101 = vmatpush.bf16.msra.mxu0 %v1363
    %2102 = vmatmul.bf16.gmra.mxu0 %v2092
    %v2103 = vpop.f32.mrf.mxu0
    %v2104 = vadd.f32 0.0, %v2103
    %v2105 = vpop.f32.mrf.mxu0
    %2106 = vdwg.mxu0
    %2107 = vmatpush.bf16.msra.mxu0 0
    %2108 = vmatpush.bf16.msra.mxu0 0
    %2109 = vmatpush.bf16.msra.mxu0 0
    %2110 = vmatpush.bf16.msra.mxu0 0
    %2111 = vmatpush.bf16.msra.mxu0 0
    %2112 = vmatpush.bf16.msra.mxu0 0
    %2113 = vmatpush.bf16.msra.mxu0 %v1389
    %2114 = vmatpush.bf16.msra.mxu0 %v1388
    %2115 = vmatmul.bf16.gmra.mxu0 %v2092
    %v2116 = vpop.f32.mrf.mxu0
    %v2117 = vadd.f32 0.0, %v2116
    %v2118 = vpop.f32.mrf.mxu0
    %2119 = vdwg.mxu0
    %2120 = vmatpush.bf16.msra.mxu0 0
    %2121 = vmatpush.bf16.msra.mxu0 0
    %2122 = vmatpush.bf16.msra.mxu0 0
    %2123 = vmatpush.bf16.msra.mxu0 0
    %2124 = vmatpush.bf16.msra.mxu0 0
    %2125 = vmatpush.bf16.msra.mxu0 0
    %2126 = vmatpush.bf16.msra.mxu0 %v1414
    %2127 = vmatpush.bf16.msra.mxu0 %v1413
    %2128 = vmatmul.bf16.gmra.mxu0 %v2092
    %v2129 = vpop.f32.mrf.mxu0
    %v2130 = vadd.f32 %v1353, %v2129
    %v2131 = vpop.f32.mrf.mxu0
    %2132 = vdwg.mxu0
    %v2134 = vrot.slane %v2104, 2
    %v2136 = vadd.f32 %v1269, %v2134
    %v2137 = vxor.u32 %v2136, 2147483648
    %v2138 = vmul.f32 %v2137, 1.442695
    %v2139 = vpow.pop %v2138
    %v2140 = vadd.f32 %v2139, 1.0
    %v2141 = vrcp.pop %v2140
    %v2142 = vmul.f32 %v2140, %v2141
    %v2143 = vsub.f32 1.0, %v2142
    %v2144 = vmul.f32 %v2141, %v2143
    %v2145 = vadd.f32 %v2141, %v2144
    %vm2146 = vweird.f32 %v2140
    %vm2147 = vweird.f32 %v2141
    %vm2148 = vmor %vm2146, %vm2147
    %v2149 = vsel %vm2148, %v2141, %v2145
    %v2150 = vand.u32 2147483647, %v2140
    %vm2151 = vcmp.eq.f32.partialorder %v2150, 8.507059e+37
    %v2152 = vand.u32 %v2140, 2147483648
    %v2153 = vor.u32 1.1754944e-38, %v2152
    %v2154 = vsel %vm2151, %v2153, %v2149
    %v2155 = vmul.f32 1.0, %v2154
    %v2157 = vrot.slane %v2117, 2
    %v2159 = vadd.f32 %v1303, %v2157
    %v2160 = vxor.u32 %v2159, 2147483648
    %v2161 = vmul.f32 %v2160, 1.442695
    %v2162 = vpow.pop %v2161
    %v2163 = vadd.f32 %v2162, 1.0
    %v2164 = vrcp.pop %v2163
    %v2165 = vmul.f32 %v2163, %v2164
    %v2166 = vsub.f32 1.0, %v2165
    %v2167 = vmul.f32 %v2164, %v2166
    %v2168 = vadd.f32 %v2164, %v2167
    %vm2169 = vweird.f32 %v2163
    %vm2170 = vweird.f32 %v2164
    %vm2171 = vmor %vm2169, %vm2170
    %v2172 = vsel %vm2171, %v2164, %v2168
    %v2173 = vand.u32 2147483647, %v2163
    %vm2174 = vcmp.eq.f32.partialorder %v2173, 8.507059e+37
    %v2175 = vand.u32 %v2163, 2147483648
    %v2176 = vor.u32 1.1754944e-38, %v2175
    %v2177 = vsel %vm2174, %v2176, %v2172
    %v2178 = vmul.f32 1.0, %v2177
    %v2180 = vrot.slane %v2130, 2
    %v2182 = vmul.f32 %v2155, %v2180
    %v2183 = vadd.f32 %v1337, %v2182
    %v2184 = vtanh.pop %v2183
    %v2185 = vsub.f32 1.0, %v2178
    %v2186 = vmul.f32 %v2185, %v2184
    %v2188 = vrot.slane %v2087, 6
    %v2190 = vmul.f32 %v2178, %v2188
    %v2191 = vadd.f32 %v2186, %v2190
    %v2192 = vld [vmem:[#allocation19] sm:$0xf]
    %v2193 = vld [vmem:[#allocation19 + $0x4] sm:$0xf]
    %v2194 = vld [vmem:[#allocation19 + $0x8] sm:$0xf]
    %v2195 = vld [vmem:[#allocation19 + $0xc] sm:$0xf]
    %v2196 = vpack.c.bf16 %v2191, %v2191
    %v2197 = vld [vmem:[#allocation20] sm:$0x1]
    %v2199 = vperm.slane %v2197, 0
    %v2202 = vrot.slane %v2196, 3
    %v2207 = vunpack.c.l.b16 %v2192
    %v2208 = vunpack.c.l.b16 %v2193
    %v2209 = vunpack.c.l.b16 %v2194
    %v2210 = vunpack.c.l.b16 %v2195
    %v2211 = vpack.c.b16 %v2208, %v2207
    %v2212 = vpack.c.b16 %v2210, %v2209
    %v2216 = vsel %vm395, %v2202, 0
    %2218 = vmatpush.bf16.msra.mxu0 0
    %2219 = vmatpush.bf16.msra.mxu0 0
    %2220 = vmatpush.bf16.msra.mxu0 0
    %2221 = vmatpush.bf16.msra.mxu0 0
    %2222 = vmatpush.bf16.msra.mxu0 0
    %2223 = vmatpush.bf16.msra.mxu0 0
    %2224 = vmatpush.bf16.msra.mxu0 %v2212
    %2225 = vmatpush.bf16.msra.mxu0 %v2211
    %2226 = vmatmul.bf16.gmra.mxu0 %v2216
    %v2227 = vpop.f32.mrf.mxu0
    %v2228 = vadd.f32 %v2199, %v2227
    %v2229 = vpop.f32.mrf.mxu0
    %2230 = vdwg.mxu0
    %v2231 = vld [vmem:[%s23] sm:$0xff]
    %v2232 = vld [vmem:[%s23 + $0x8] sm:$0xff]
    %v2233 = vld [vmem:[%s23 + $0x10] sm:$0xff]
    %v2234 = vld [vmem:[%s23 + $0x18] sm:$0xff]
    %v2235 = vld [vmem:[%s23 + $0x20] sm:$0xff]
    %v2236 = vld [vmem:[%s23 + $0x28] sm:$0xff]
    %v2237 = vld [vmem:[%s23 + $0x30] sm:$0xff]
    %v2238 = vld [vmem:[%s23 + $0x38] sm:$0xff]
    %v2239 = vpack.c.bf16 %v2228, %v2228
    %v2240 = vld [vmem:[%s24] sm:$0x3]
    %v2242 = vperm.slane %v2240, 0
    %v2243 = vperm.slane %v2240, 1
    %v2254 = vunpack.c.l.b16 %v2231
    %v2255 = vunpack.c.h.b16 %v2231
    %v2256 = vunpack.c.l.b16 %v2232
    %v2257 = vunpack.c.h.b16 %v2232
    %v2258 = vunpack.c.l.b16 %v2233
    %v2259 = vunpack.c.h.b16 %v2233
    %v2260 = vunpack.c.l.b16 %v2234
    %v2261 = vunpack.c.h.b16 %v2234
    %v2262 = vunpack.c.l.b16 %v2235
    %v2263 = vunpack.c.h.b16 %v2235
    %v2264 = vunpack.c.l.b16 %v2236
    %v2265 = vunpack.c.h.b16 %v2236
    %v2266 = vunpack.c.l.b16 %v2237
    %v2267 = vunpack.c.h.b16 %v2237
    %v2268 = vunpack.c.l.b16 %v2238
    %v2269 = vunpack.c.h.b16 %v2238
    %v2270 = vpack.c.b16 %v2256, %v2254
    %v2271 = vpack.c.b16 %v2257, %v2255
    %v2272 = vpack.c.b16 %v2260, %v2258
    %v2273 = vpack.c.b16 %v2261, %v2259
    %v2274 = vpack.c.b16 %v2264, %v2262
    %v2275 = vpack.c.b16 %v2265, %v2263
    %v2276 = vpack.c.b16 %v2268, %v2266
    %v2277 = vpack.c.b16 %v2269, %v2267
    %vm2286 = vcmask 523264
    %v2288 = vsel %vm2286, %v2239, 0
    %2290 = vmatpush.bf16.msra.mxu0 0
    %2291 = vmatpush.bf16.msra.mxu0 0
    %2292 = vmatpush.bf16.msra.mxu0 0
    %2293 = vmatpush.bf16.msra.mxu0 0
    %2294 = vmatpush.bf16.msra.mxu0 %v2276
    %2295 = vmatpush.bf16.msra.mxu0 %v2274
    %2296 = vmatpush.bf16.msra.mxu0 %v2272
    %2297 = vmatpush.bf16.msra.mxu0 %v2270
    %2298 = vmatmul.bf16.gmra.mxu0 %v2288
    %v2299 = vpop.f32.mrf.mxu0
    %v2300 = vadd.f32 %v2242, %v2299
    %v2301 = vpop.f32.mrf.mxu0
    %2302 = vdwg.mxu0
    %2303 = vmatpush.bf16.msra.mxu0 0
    %2304 = vmatpush.bf16.msra.mxu0 0
    %2305 = vmatpush.bf16.msra.mxu0 0
    %2306 = vmatpush.bf16.msra.mxu0 0
    %2307 = vmatpush.bf16.msra.mxu0 %v2277
    %2308 = vmatpush.bf16.msra.mxu0 %v2275
    %2309 = vmatpush.bf16.msra.mxu0 %v2273
    %2310 = vmatpush.bf16.msra.mxu0 %v2271
    %2311 = vmatmul.bf16.gmra.mxu0 %v2288
    %v2312 = vpop.f32.mrf.mxu0
    %v2313 = vadd.f32 %v2243, %v2312
    %v2314 = vpop.f32.mrf.mxu0
    %2315 = vdwg.mxu0
    %v2316 = vld [vmem:[%s25] sm:$0xf]
    %v2317 = vld [vmem:[%s25 + $0x4] sm:$0xf]
    %v2318 = vld [vmem:[%s25 + $0x8] sm:$0xf]
    %v2319 = vld [vmem:[%s25 + $0xc] sm:$0xf]
    %v2320 = vld [vmem:[%s25 + $0x10] sm:$0xf]
    %v2321 = vld [vmem:[%s25 + $0x14] sm:$0xf]
    %v2322 = vld [vmem:[%s25 + $0x18] sm:$0xf]
    %v2323 = vld [vmem:[%s25 + $0x1c] sm:$0xf]
    %v2324 = vld [vmem:[%s25 + $0x20] sm:$0xf]
    %v2325 = vld [vmem:[%s25 + $0x24] sm:$0xf]
    %v2326 = vld [vmem:[%s25 + $0x28] sm:$0xf]
    %v2327 = vld [vmem:[%s25 + $0x2c] sm:$0xf]
    %v2328 = vld [vmem:[%s25 + $0x30] sm:$0xf]
    %v2329 = vld [vmem:[%s25 + $0x34] sm:$0xf]
    %v2330 = vld [vmem:[%s25 + $0x38] sm:$0xf]
    %v2331 = vld [vmem:[%s25 + $0x3c] sm:$0xf]
    %v2332 = vld [vmem:[%s25 + $0x40] sm:$0xf]
    %v2333 = vld [vmem:[%s25 + $0x44] sm:$0xf]
    %v2334 = vld [vmem:[%s25 + $0x48] sm:$0xf]
    %v2335 = vld [vmem:[%s25 + $0x4c] sm:$0xf]
    %v2336 = vld [vmem:[%s25 + $0x50] sm:$0xf]
    %v2337 = vld [vmem:[%s25 + $0x54] sm:$0xf]
    %v2338 = vld [vmem:[%s25 + $0x58] sm:$0xf]
    %v2339 = vld [vmem:[%s25 + $0x5c] sm:$0xf]
    %v2340 = vld [vmem:[%s25 + $0x60] sm:$0xf]
    %v2341 = vld [vmem:[%s25 + $0x64] sm:$0xf]
    %v2342 = vld [vmem:[%s25 + $0x68] sm:$0xf]
    %v2343 = vld [vmem:[%s25 + $0x6c] sm:$0xf]
    %v2344 = vld [vmem:[%s25 + $0x70] sm:$0xf]
    %v2345 = vld [vmem:[%s25 + $0x74] sm:$0xf]
    %v2346 = vld [vmem:[%s25 + $0x78] sm:$0xf]
    %v2347 = vld [vmem:[%s25 + $0x7c] sm:$0xf]
    %v2348 = vpack.c.bf16 %v2300, %v2300
    %v2349 = vpack.c.bf16 %v2313, %v2313
    %v2350 = vld [vmem:[#allocation22] sm:$0x1]
    %v2352 = vperm.slane %v2350, 0
    %v2386 = vunpack.c.l.b16 %v2316
    %v2387 = vunpack.c.l.b16 %v2317
    %v2388 = vunpack.c.l.b16 %v2318
    %v2389 = vunpack.c.l.b16 %v2319
    %v2390 = vunpack.c.l.b16 %v2320
    %v2391 = vunpack.c.l.b16 %v2321
    %v2392 = vunpack.c.l.b16 %v2322
    %v2393 = vunpack.c.l.b16 %v2323
    %v2394 = vunpack.c.l.b16 %v2324
    %v2395 = vunpack.c.l.b16 %v2325
    %v2396 = vunpack.c.l.b16 %v2326
    %v2397 = vunpack.c.l.b16 %v2327
    %v2398 = vunpack.c.l.b16 %v2328
    %v2399 = vunpack.c.l.b16 %v2329
    %v2400 = vunpack.c.l.b16 %v2330
    %v2401 = vunpack.c.l.b16 %v2331
    %v2402 = vunpack.c.l.b16 %v2332
    %v2403 = vunpack.c.l.b16 %v2333
    %v2404 = vunpack.c.l.b16 %v2334
    %v2405 = vunpack.c.l.b16 %v2335
    %v2406 = vunpack.c.l.b16 %v2336
    %v2407 = vunpack.c.l.b16 %v2337
    %v2408 = vunpack.c.l.b16 %v2338
    %v2409 = vunpack.c.l.b16 %v2339
    %v2410 = vunpack.c.l.b16 %v2340
    %v2411 = vunpack.c.l.b16 %v2341
    %v2412 = vunpack.c.l.b16 %v2342
    %v2413 = vunpack.c.l.b16 %v2343
    %v2414 = vunpack.c.l.b16 %v2344
    %v2415 = vunpack.c.l.b16 %v2345
    %v2416 = vunpack.c.l.b16 %v2346
    %v2417 = vunpack.c.l.b16 %v2347
    %v2418 = vpack.c.b16 %v2387, %v2386
    %v2419 = vpack.c.b16 %v2389, %v2388
    %v2420 = vpack.c.b16 %v2391, %v2390
    %v2421 = vpack.c.b16 %v2393, %v2392
    %v2422 = vpack.c.b16 %v2395, %v2394
    %v2423 = vpack.c.b16 %v2397, %v2396
    %v2424 = vpack.c.b16 %v2399, %v2398
    %v2425 = vpack.c.b16 %v2401, %v2400
    %v2426 = vpack.c.b16 %v2403, %v2402
    %v2427 = vpack.c.b16 %v2405, %v2404
    %v2428 = vpack.c.b16 %v2407, %v2406
    %v2429 = vpack.c.b16 %v2409, %v2408
    %v2430 = vpack.c.b16 %v2411, %v2410
    %v2431 = vpack.c.b16 %v2413, %v2412
    %v2432 = vpack.c.b16 %v2415, %v2414
    %v2433 = vpack.c.b16 %v2417, %v2416
    %2450 = vmatpush.bf16.msra.mxu0 %v2425
    %2451 = vmatpush.bf16.msra.mxu0 %v2424
    %2452 = vmatpush.bf16.msra.mxu0 %v2423
    %2453 = vmatpush.bf16.msra.mxu0 %v2422
    %2454 = vmatpush.bf16.msra.mxu0 %v2421
    %2455 = vmatpush.bf16.msra.mxu0 %v2420
    %2456 = vmatpush.bf16.msra.mxu0 %v2419
    %2457 = vmatpush.bf16.msra.mxu0 %v2418
    %2458 = vmatmul.bf16.gmra.mxu0 %v2348
    %v2459 = vpop.f32.mrf.mxu0
    %v2460 = vadd.f32 %v2352, %v2459
    %v2461 = vpop.f32.mrf.mxu0
    %2462 = vdwg.mxu0
    %2463 = vmatpush.bf16.msra.mxu0 %v2433
    %2464 = vmatpush.bf16.msra.mxu0 %v2432
    %2465 = vmatpush.bf16.msra.mxu0 %v2431
    %2466 = vmatpush.bf16.msra.mxu0 %v2430
    %2467 = vmatpush.bf16.msra.mxu0 %v2429
    %2468 = vmatpush.bf16.msra.mxu0 %v2428
    %2469 = vmatpush.bf16.msra.mxu0 %v2427
    %2470 = vmatpush.bf16.msra.mxu0 %v2426
    %2471 = vmatmul.bf16.gmra.mxu0 %v2349
    %v2472 = vpop.f32.mrf.mxu0
    %v2473 = vadd.f32 %v2460, %v2472
    %v2474 = vpop.f32.mrf.mxu0
    %2475 = vdwg.mxu0
    %2477 = vset.pattern.permute.xlu0 0
    %2478 = vperm.xlu0 %2477, %v2473
    %v2479 = vpop.permute.xlu0 %2478
    %v2481 = vadd.f32 %v2479, %v2473
    %2482 = vrot.lane.b32.xlu0 %v2473, 127
    %v2483 = vpop.permute.xlu0 %2482
    %vm2485 = vcmask 33792
    %v2486 = vsel %vm2485, %v2483, 0.0
    %2487 = vadd.xlane.f32.xlu0 %v2486
    %v2488 = vpop.xlane.xlu0 %2487
    %v2489 = vrcp.pop 5.0
    %v2490 = vmul.f32 5.0, %v2489
    %v2491 = vsub.f32 1.0, %v2490
    %v2492 = vmul.f32 %v2489, %v2491
    %v2493 = vadd.f32 %v2489, %v2492
    %vm2494 = vweird.f32 %v2489
    %v2495 = vsel %vm2494, %v2489, %v2493
    %v2496 = vmul.f32 %v2488, %v2495
    %v2497 = vsub.f32 %v2481, %v2496
    %2498 = vrot.lane.b32.xlu0 %v2473, 122
    %v2499 = vpop.permute.xlu0 %2498
    %v2501 = vsel %vm2485, %v2499, 0.0
    %2502 = vadd.xlane.f32.xlu0 %v2501
    %v2503 = vpop.xlane.xlu0 %2502
    %v2504 = vmul.f32 %v2503, %v2495
    %v2505 = vsub.f32 %v2481, %v2504
    %2506 = vrot.lane.b32.xlu0 %v2473, 117
    %v2507 = vpop.permute.xlu0 %2506
    %v2509 = vsel %vm2485, %v2507, 0.0
    %2510 = vadd.xlane.f32.xlu0 %v2509
    %v2511 = vpop.xlane.xlu0 %2510
    %v2512 = vmul.f32 %v2511, %v2495
    %v2513 = vsub.f32 %v2481, %v2512
    %2515 = vrot.lane.b32.xlu0 %v2497, 127
    %v2516 = vpop.permute.xlu0 %2515
    %2519 = vrot.lane.b32.xlu0 %v2505, 127
    %v2520 = vpop.permute.xlu0 %2519
    %2523 = vrot.lane.b32.xlu0 %v2513, 127
    %v2524 = vpop.permute.xlu0 %2523
    %vm2526 = vcmask 39936
    %v2527 = vsel %vm2526, %v2516, %v2520
    %vm2528 = vcmask 80896
    %v2529 = vsel %vm2528, %v2527, %v2524
    %vm2530 = vcmask 115712
    %2531 = vst.msk [vmem:[#allocation23] sm:$0x3] %vm2530, %v2529
    // Predicated region
    $region162: #{tpu_custom_call.1} parent=1 // pred_check
      _
    $region163: #{tpu_custom_call.1} parent=1 // pred_check_branch
      %2533 = sbr.rel (0) target = $region165
    $region164: #{tpu_custom_call.1} parent=1 // pred_region
      %2535 = vsyncadd [#allocation4], 0
      %s2537 = sshll.u32 [#allocation23], 4
      %s2538 = int_to_ptr.vmem [resolvable:$true] %s2537
      %s2539 = sshll.u32 %s27, 4
      %s2540 = int_to_ptr.hbm [resolvable:$true] %s2539
      %2542 = dma.vmem_to_hbm [thread:$0]  %s2538, 32, %s2540, [#allocation4]
    $region165: #{tpu_custom_call.1} parent=1 // pred_fallthru
      _
    // Predicated region
    $region166: #{tpu_custom_call.1} parent=1 // pred_check
      _
    $region167: #{tpu_custom_call.1} parent=1 // pred_check_branch
      %2544 = sbr.rel (0) target = $region169
    $region168: #{tpu_custom_call.1} parent=1 // pred_region
      %2546 = dma.done [#allocation4], 32
    $region169: #{tpu_custom_call.1} parent=1 // pred_fallthru
      _
    %2547 = vsyncpa [#allocation3], 1
    %2548 = vsyncpa [#allocation6], 1
    %2549 = vsyncpa [#allocation9], 1
    %2550 = vsyncpa [#allocation12], 1
    %2551 = vsyncpa [#allocation15], 1
    %2552 = vsyncpa [#allocation18], 1
    %2553 = vsyncpa [#allocation21], 1
    %2554 = vsyncpa [#allocation4], 1

</llo_original>
